<compile_context>
chip_gen: v7x
topology: tpu7x:2x2x1
jax: 0.10.0
libtpu: 0.0.40
codegen_flags: <defaults>
</compile_context>

<pallas_src>
import functools

import jax
import jax.numpy as jnp
from jax.experimental import pallas as pl
from jax.experimental.pallas import tpu as pltpu


# ----------------------------------------------------------------------------
# Pallas kernels
# ----------------------------------------------------------------------------
def _round_up(x: int, m: int) -> int:
    return ((x + m - 1) // m) * m


def _mm_bias_kernel(x_ref, w_ref, b_ref, o_ref, *, relu: bool):
    # bf16 operands on the MXU, f32 accumulation + epilogue (v5e-safe).
    acc = jnp.dot(x_ref[...], w_ref[...], preferred_element_type=jnp.float32)
    acc = acc + b_ref[...]
    if relu:
        acc = jnp.maximum(acc, 0.0)
    o_ref[...] = acc.astype(o_ref.dtype)


def _mm_bias_skip_kernel(x_ref, w_ref, b_ref, s_ref, o_ref, *, relu: bool):
    # Same as above but fuses an elementwise residual/skip add (FPN top-down
    # pathway) into the epilogue before the store.
    acc = jnp.dot(x_ref[...], w_ref[...], preferred_element_type=jnp.float32)
    acc = acc + b_ref[...] + s_ref[...].astype(jnp.float32)
    if relu:
        acc = jnp.maximum(acc, 0.0)
    o_ref[...] = acc.astype(o_ref.dtype)


def pallas_matmul_bias(x, w, b, *, relu: bool = False, skip=None,
                       out_dtype=jnp.bfloat16):
    """(M, K) @ (K, N) + b [+ skip] with optional ReLU on the MXU.

    * x is cast to bf16; w is expected to already be bf16, b f32 (init-time).
    * K and N are used as full-extent blocks (no padding, no output slicing
      in N); only M is tiled / padded.  Max K here is 2304 so the bf16 weight
      slab (~1.1 MiB) plus a (TM, K) activation block fit comfortably in VMEM
      on every generation (v7x's 32 MiB scoped limit included).
    """
    M, K = x.shape
    Kw, N = w.shape
    assert Kw == K and b.shape == (1, N)

    TM = 128 if M >= 128 else _round_up(max(M, 1), 8)
    Mp = _round_up(M, TM)

    x = x.astype(jnp.bfloat16)
    if Mp != M:                                   # only tiny layers (M=2) hit this
        x = jnp.pad(x, ((0, Mp - M), (0, 0)))

    inputs = [x, w, b]
    in_specs = [
        pl.BlockSpec((TM, K), lambda i: (i, 0)),
        pl.BlockSpec((K, N), lambda i: (0, 0)),
        pl.BlockSpec((1, N), lambda i: (0, 0)),
    ]
    skip_bytes = 0
    if skip is not None:
        s = skip.astype(jnp.bfloat16)
        if Mp != M:
            s = jnp.pad(s, ((0, Mp - M), (0, 0)))
        inputs.append(s)
        in_specs.append(pl.BlockSpec((TM, N), lambda i: (i, 0)))
        kernel = functools.partial(_mm_bias_skip_kernel, relu=relu)
        skip_bytes = Mp * N * 2
    else:
        kernel = functools.partial(_mm_bias_kernel, relu=relu)

    cost = pl.CostEstimate(
        flops=2 * Mp * K * N,
        transcendentals=0,
        bytes_accessed=(Mp * K + K * N) * 2 + N * 4 + Mp * N * 2 + skip_bytes,
    )

    out = pl.pallas_call(
        kernel,
        out_shape=jax.ShapeDtypeStruct((Mp, N), out_dtype),
        grid=(Mp // TM,),
        in_specs=in_specs,
        out_specs=pl.BlockSpec((TM, N), lambda i: (i, 0)),
        compiler_params=pltpu.CompilerParams(
            dimension_semantics=("parallel",),
            vmem_limit_bytes=32 * 1024 * 1024,
        ),
        cost_estimate=cost,
    )(*inputs)

    if Mp != M:
        out = out[:M]
    return out


# ----------------------------------------------------------------------------
# Plain-JAX glue: im2col, upsample, layer wrappers
# ----------------------------------------------------------------------------
def _im2col(x_nhwc, kh, kw, stride, pad):
    # TODO(synk): the 3x3 tap loop is still materialized in HBM (bf16, so half
    # the traffic of before); folding taps into the kernel via a K grid axis /
    # shifted-window index_map is left as a further optimization.
    N, H, W, C = x_nhwc.shape
    xpad = jnp.pad(x_nhwc, ((0, 0), (pad, pad), (pad, pad), (0, 0)))
    Ho = (H + 2 * pad - kh) // stride + 1
    Wo = (W + 2 * pad - kw) // stride + 1
    cols = []
    for i in range(kh):
        for j in range(kw):
            cols.append(xpad[:, i:i + Ho * stride:stride, j:j + Wo * stride:stride, :])
    patches = jnp.concatenate(cols, axis=-1)          # (N, Ho, Wo, kh*kw*C) bf16
    return patches.reshape(N * Ho * Wo, kh * kw * C), (N, Ho, Wo)


def conv2d(x_nhwc, p, kh, kw, *, stride=1, pad=0, relu=False, skip=None):
    """Conv via im2col + Pallas matmul. 1x1 convs skip im2col entirely."""
    N, H, W, C = x_nhwc.shape
    cout = p["w"].shape[1]
    if kh == 1 and kw == 1 and stride == 1 and pad == 0:
        patches = x_nhwc.reshape(N * H * W, C)        # layout-free reshape
        Ho, Wo = H, W
    else:
        patches, (N, Ho, Wo) = _im2col(x_nhwc, kh, kw, stride, pad)
    skip2d = None if skip is None else skip.reshape(N * Ho * Wo, cout)
    out = pallas_matmul_bias(patches, p["w"], p["b"], relu=relu, skip=skip2d)
    return out.reshape(N, Ho, Wo, cout)


def linear(x, p, *, relu=False):
    return pallas_matmul_bias(x, p["w"], p["b"], relu=relu)


def upsample2x_nearest(x_nhwc):
    # TODO(synk): nearest upsample is materialized in JAX; fusing the 2x repeat
    # into the lateral-conv kernel (half-index reads) is a possible further win.
    return jnp.repeat(jnp.repeat(x_nhwc, 2, axis=1), 2, axis=2)


# ----------------------------------------------------------------------------
# Deterministic parameter construction (weights stored once in matmul layout:
# (K, N) bf16, bias (1, N) f32 -> no per-call weight padding / reshaping cost)
# ----------------------------------------------------------------------------
def init_conv(key, kh, kw, cin, cout):
    kw_, kb_ = jax.random.split(key)
    scale = 1.0 / jnp.sqrt(jnp.float32(kh * kw * cin))
    w = jax.random.uniform(kw_, (kh * kw * cin, cout), jnp.float32, -scale, scale)
    b = jax.random.uniform(kb_, (1, cout), jnp.float32, -scale, scale)
    return {"w": w.astype(jnp.bfloat16), "b": b}


def init_linear(key, cin, cout):
    return init_conv(key, 1, 1, cin, cout)


FPN_CH = 256
REG_MAX = 16
NUM_CLASSES = 10
BACKBONE_CH = (8, 16, 32, 64, 128)   # stages 1..5; stage_indices=(3,4,5) -> (32, 64, 128)


def init_params(key):
    keys = iter(jax.random.split(key, 32))
    p = {}
    # backbone: 5 stride-2 3x3 conv stages
    cin = 3
    p["backbone"] = []
    for cout in BACKBONE_CH:
        p["backbone"].append(init_conv(next(keys), 3, 3, cin, cout))
        cin = cout
    stage_ch = [BACKBONE_CH[2], BACKBONE_CH[3], BACKBONE_CH[4]]
    # FPN: 1x1 laterals + 3x3 output smoothing convs
    p["fpn_lateral"] = [init_conv(next(keys), 1, 1, c, FPN_CH) for c in stage_ch]
    p["fpn_output"] = [init_conv(next(keys), 3, 3, FPN_CH, FPN_CH) for _ in stage_ch]
    # bbox head: 3x3 conv + 1x1 conv -> 4*reg_max channels
    p["bbox_conv"] = init_conv(next(keys), 3, 3, FPN_CH, FPN_CH)
    p["bbox_pred"] = init_conv(next(keys), 1, 1, FPN_CH, 4 * REG_MAX)
    # classification head: GAP + linear
    p["cls_fc"] = init_linear(next(keys), FPN_CH, NUM_CLASSES)
    return p


# ----------------------------------------------------------------------------
# YOLO forward
# ----------------------------------------------------------------------------
def yolo_forward(params, x_nchw):
    # NCHW (PyTorch) -> NHWC bf16 for TPU kernels.
    x = jnp.transpose(x_nchw, (0, 2, 3, 1)).astype(jnp.bfloat16)

    # backbone with return_stages=True -> features from stage_indices (3, 4, 5)
    feats = []
    h = x
    for si, conv_p in enumerate(params["backbone"]):
        h = conv2d(h, conv_p, 3, 3, stride=2, pad=1, relu=True)
        if si >= 2:                       # stages 3, 4, 5
            feats.append(h)
    c3, c4, c5 = feats

    # FPN neck: lateral 1x1 convs with the top-down skip-add fused into the
    # same Pallas kernel (no separate add kernel / extra HBM round trip).
    p5 = conv2d(c5, params["fpn_lateral"][2], 1, 1)
    p4 = conv2d(c4, params["fpn_lateral"][1], 1, 1, skip=upsample2x_nearest(p5))
    p3 = conv2d(c3, params["fpn_lateral"][0], 1, 1, skip=upsample2x_nearest(p4))
    o3 = conv2d(p3, params["fpn_output"][0], 3, 3, stride=1, pad=1)
    o4 = conv2d(p4, params["fpn_output"][1], 3, 3, stride=1, pad=1)
    o5 = conv2d(p5, params["fpn_output"][2], 3, 3, stride=1, pad=1)
    pyramid_feats = [o3, o4, o5]
    top = pyramid_feats[-1]

    # bbox head on the last pyramid level
    bb = conv2d(top, params["bbox_conv"], 3, 3, stride=1, pad=1, relu=True)
    bb = conv2d(bb, params["bbox_pred"], 1, 1)
    bbox = jnp.transpose(bb, (0, 3, 1, 2)).astype(jnp.float32)   # NCHW like PyTorch

    # classification head on the last pyramid level: GAP + linear
    pooled = jnp.mean(top.astype(jnp.float32), axis=(1, 2))      # (N, FPN_CH)
    cls = linear(pooled, params["cls_fc"]).astype(jnp.float32)   # (N, NUM_CLASSES)

    # TODO(synk): extra_heads is empty in this config (nn.ModuleDict({})), nothing to emit.
    return {"bbox": bbox, "class": cls}


# ----------------------------------------------------------------------------
# main
# ----------------------------------------------------------------------------
if __name__ == "__main__":
    key = jax.random.PRNGKey(0)
    pkey, xkey = jax.random.split(key)
    params = init_params(pkey)

    # small input consistent with the module: batch=2, 3 channels, 32x32
    x = jax.random.normal(xkey, (2, 3, 32, 32), dtype=jnp.float32)

    fwd = jax.jit(yolo_forward)
    out = fwd(params, x)
    out = jax.block_until_ready(out)

    assert out["bbox"].shape == (2, 4 * REG_MAX, 1, 1), out["bbox"].shape
    assert out["class"].shape == (2, NUM_CLASSES), out["class"].shape
    assert jnp.all(jnp.isfinite(out["bbox"])) and jnp.all(jnp.isfinite(out["class"]))
    print("KERNEL_OK")
</pallas_src>

<mosaic_0001>
module attributes {stable_mosaic.version = 11 : i64} {
  func.func @_mm_bias_kernel(%arg0: i32, %arg1: memref<128x27xbf16, #tpu.memory_space<vmem>>, %arg2: memref<27x8xbf16, #tpu.memory_space<vmem>>, %arg3: memref<1x8xf32, #tpu.memory_space<vmem>>, %arg4: memref<128x8xbf16, #tpu.memory_space<vmem>>) attributes {dimension_semantics = [#tpu.dimension_semantics<parallel>], iteration_bounds = array<i64: 4>, scalar_prefetch = 0 : i64, scratch_operands = 0 : i64, tpu.core_type = #tpu.core_type<tc>, window_params = [{transform_indices = @transform_0, window_bounds = array<i64: 128, 27>}, {pipeline_mode = #tpu.pipeline_mode<synchronous>, transform_indices = @transform_1, window_bounds = array<i64: 27, 8>}, {pipeline_mode = #tpu.pipeline_mode<synchronous>, transform_indices = @transform_2, window_bounds = array<i64: 1, 8>}, {transform_indices = @transform_3, window_bounds = array<i64: 128, 8>}]} {
    %c0 = arith.constant 0 : index
    %c0_0 = arith.constant 0 : index
    %0 = vector.load %arg1[%c0, %c0_0] : memref<128x27xbf16, #tpu.memory_space<vmem>>, vector<128x27xbf16>
    %c0_1 = arith.constant 0 : index
    %c0_2 = arith.constant 0 : index
    %1 = vector.load %arg2[%c0_1, %c0_2] : memref<27x8xbf16, #tpu.memory_space<vmem>>, vector<27x8xbf16>
    %cst = arith.constant dense<0.000000e+00> : vector<128x8xf32>
    %2 = tpu.matmul %0, %1, %cst {dimension_numbers = #tpu.dot_dimension_numbers<[1], [0], [0], [1], [0, 0, 1, 1], [], []>} : vector<128x27xbf16>, vector<27x8xbf16>, vector<128x8xf32> -> vector<128x8xf32>
    %c0_3 = arith.constant 0 : index
    %c0_4 = arith.constant 0 : index
    %3 = vector.load %arg3[%c0_3, %c0_4] : memref<1x8xf32, #tpu.memory_space<vmem>>, vector<1x8xf32>
    %4 = vector.broadcast %3 : vector<1x8xf32> to vector<128x8xf32>
    %5 = arith.addf %2, %4 : vector<128x8xf32>
    %cst_5 = arith.constant 0.000000e+00 : f32
    %6 = vector.broadcast %cst_5 : f32 to vector<128x8xf32>
    %7 = arith.maximumf %5, %6 : vector<128x8xf32>
    %8 = arith.truncf %7 : vector<128x8xf32> to vector<128x8xbf16>
    %c0_6 = arith.constant 0 : index
    %c0_7 = arith.constant 0 : index
    %9 = vector.load %arg4[%c0_6, %c0_7] : memref<128x8xbf16, #tpu.memory_space<vmem>>, vector<128x8xbf16>
    tpu.vector_store %arg4[%c0_6, %c0_7], %8 {strides = array<i32>} : memref<128x8xbf16, #tpu.memory_space<vmem>>, vector<128x8xbf16>,
    return
  }
  func.func @transform_0(%arg0: i32) -> (i32, i32) {
    %c0_i32 = arith.constant 0 : i32
    %c0_i32_0 = arith.constant 0 : i32
    return %arg0, %c0_i32 : i32, i32
  }
  func.func @transform_1(%arg0: i32) -> (i32, i32) {
    %c0_i32 = arith.constant 0 : i32
    %c0_i32_0 = arith.constant 0 : i32
    %c0_i32_1 = arith.constant 0 : i32
    return %c0_i32, %c0_i32_0 : i32, i32
  }
  func.func @transform_2(%arg0: i32) -> (i32, i32) {
    %c0_i32 = arith.constant 0 : i32
    %c0_i32_0 = arith.constant 0 : i32
    %c0_i32_1 = arith.constant 0 : i32
    return %c0_i32, %c0_i32_0 : i32, i32
  }
  func.func @transform_3(%arg0: i32) -> (i32, i32) {
    %c0_i32 = arith.constant 0 : i32
    %c0_i32_0 = arith.constant 0 : i32
    return %arg0, %c0_i32 : i32, i32
  }
}

module attributes {stable_mosaic.version = 11 : i64} {
  func.func @_mm_bias_kernel(%arg0: i32, %arg1: memref<128x72xbf16, #tpu.memory_space<vmem>>, %arg2: memref<72x16xbf16, #tpu.memory_space<vmem>>, %arg3: memref<1x16xf32, #tpu.memory_space<vmem>>, %arg4: memref<128x16xbf16, #tpu.memory_space<vmem>>) attributes {dimension_semantics = [#tpu.dimension_semantics<parallel>], iteration_bounds = array<i64: 1>, scalar_prefetch = 0 : i64, scratch_operands = 0 : i64, tpu.core_type = #tpu.core_type<tc>, window_params = [{transform_indices = @transform_0, window_bounds = array<i64: 128, 72>}, {pipeline_mode = #tpu.pipeline_mode<synchronous>, transform_indices = @transform_1, window_bounds = array<i64: 72, 16>}, {pipeline_mode = #tpu.pipeline_mode<synchronous>, transform_indices = @transform_2, window_bounds = array<i64: 1, 16>}, {transform_indices = @transform_3, window_bounds = array<i64: 128, 16>}]} {
    %c0 = arith.constant 0 : index
    %c0_0 = arith.constant 0 : index
    %0 = vector.load %arg1[%c0, %c0_0] : memref<128x72xbf16, #tpu.memory_space<vmem>>, vector<128x72xbf16>
    %c0_1 = arith.constant 0 : index
    %c0_2 = arith.constant 0 : index
    %1 = vector.load %arg2[%c0_1, %c0_2] : memref<72x16xbf16, #tpu.memory_space<vmem>>, vector<72x16xbf16>
    %cst = arith.constant dense<0.000000e+00> : vector<128x16xf32>
    %2 = tpu.matmul %0, %1, %cst {dimension_numbers = #tpu.dot_dimension_numbers<[1], [0], [0], [1], [0, 0, 1, 1], [], []>} : vector<128x72xbf16>, vector<72x16xbf16>, vector<128x16xf32> -> vector<128x16xf32>
    %c0_3 = arith.constant 0 : index
    %c0_4 = arith.constant 0 : index
    %3 = vector.load %arg3[%c0_3, %c0_4] : memref<1x16xf32, #tpu.memory_space<vmem>>, vector<1x16xf32>
    %4 = vector.broadcast %3 : vector<1x16xf32> to vector<128x16xf32>
    %5 = arith.addf %2, %4 : vector<128x16xf32>
    %cst_5 = arith.constant 0.000000e+00 : f32
    %6 = vector.broadcast %cst_5 : f32 to vector<128x16xf32>
    %7 = arith.maximumf %5, %6 : vector<128x16xf32>
    %8 = arith.truncf %7 : vector<128x16xf32> to vector<128x16xbf16>
    %c0_6 = arith.constant 0 : index
    %c0_7 = arith.constant 0 : index
    %9 = vector.load %arg4[%c0_6, %c0_7] : memref<128x16xbf16, #tpu.memory_space<vmem>>, vector<128x16xbf16>
    tpu.vector_store %arg4[%c0_6, %c0_7], %8 {strides = array<i32>} : memref<128x16xbf16, #tpu.memory_space<vmem>>, vector<128x16xbf16>,
    return
  }
  func.func @transform_0(%arg0: i32) -> (i32, i32) {
    %c0_i32 = arith.constant 0 : i32
    %c0_i32_0 = arith.constant 0 : i32
    return %arg0, %c0_i32 : i32, i32
  }
  func.func @transform_1(%arg0: i32) -> (i32, i32) {
    %c0_i32 = arith.constant 0 : i32
    %c0_i32_0 = arith.constant 0 : i32
    %c0_i32_1 = arith.constant 0 : i32
    return %c0_i32, %c0_i32_0 : i32, i32
  }
  func.func @transform_2(%arg0: i32) -> (i32, i32) {
    %c0_i32 = arith.constant 0 : i32
    %c0_i32_0 = arith.constant 0 : i32
    %c0_i32_1 = arith.constant 0 : i32
    return %c0_i32, %c0_i32_0 : i32, i32
  }
  func.func @transform_3(%arg0: i32) -> (i32, i32) {
    %c0_i32 = arith.constant 0 : i32
    %c0_i32_0 = arith.constant 0 : i32
    return %arg0, %c0_i32 : i32, i32
  }
}

module attributes {stable_mosaic.version = 11 : i64} {
  func.func @_mm_bias_kernel(%arg0: i32, %arg1: memref<32x144xbf16, #tpu.memory_space<vmem>>, %arg2: memref<144x32xbf16, #tpu.memory_space<vmem>>, %arg3: memref<1x32xf32, #tpu.memory_space<vmem>>, %arg4: memref<32x32xbf16, #tpu.memory_space<vmem>>) attributes {dimension_semantics = [#tpu.dimension_semantics<parallel>], iteration_bounds = array<i64: 1>, scalar_prefetch = 0 : i64, scratch_operands = 0 : i64, tpu.core_type = #tpu.core_type<tc>, window_params = [{transform_indices = @transform_0, window_bounds = array<i64: 32, 144>}, {pipeline_mode = #tpu.pipeline_mode<synchronous>, transform_indices = @transform_1, window_bounds = array<i64: 144, 32>}, {pipeline_mode = #tpu.pipeline_mode<synchronous>, transform_indices = @transform_2, window_bounds = array<i64: 1, 32>}, {transform_indices = @transform_3, window_bounds = array<i64: 32, 32>}]} {
    %c0 = arith.constant 0 : index
    %c0_0 = arith.constant 0 : index
    %0 = vector.load %arg1[%c0, %c0_0] : memref<32x144xbf16, #tpu.memory_space<vmem>>, vector<32x144xbf16>
    %c0_1 = arith.constant 0 : index
    %c0_2 = arith.constant 0 : index
    %1 = vector.load %arg2[%c0_1, %c0_2] : memref<144x32xbf16, #tpu.memory_space<vmem>>, vector<144x32xbf16>
    %cst = arith.constant dense<0.000000e+00> : vector<32x32xf32>
    %2 = tpu.matmul %0, %1, %cst {dimension_numbers = #tpu.dot_dimension_numbers<[1], [0], [0], [1], [0, 0, 1, 1], [], []>} : vector<32x144xbf16>, vector<144x32xbf16>, vector<32x32xf32> -> vector<32x32xf32>
    %c0_3 = arith.constant 0 : index
    %c0_4 = arith.constant 0 : index
    %3 = vector.load %arg3[%c0_3, %c0_4] : memref<1x32xf32, #tpu.memory_space<vmem>>, vector<1x32xf32>
    %4 = vector.broadcast %3 : vector<1x32xf32> to vector<32x32xf32>
    %5 = arith.addf %2, %4 : vector<32x32xf32>
    %cst_5 = arith.constant 0.000000e+00 : f32
    %6 = vector.broadcast %cst_5 : f32 to vector<32x32xf32>
    %7 = arith.maximumf %5, %6 : vector<32x32xf32>
    %8 = arith.truncf %7 : vector<32x32xf32> to vector<32x32xbf16>
    %c0_6 = arith.constant 0 : index
    %c0_7 = arith.constant 0 : index
    %9 = vector.load %arg4[%c0_6, %c0_7] : memref<32x32xbf16, #tpu.memory_space<vmem>>, vector<32x32xbf16>
    tpu.vector_store %arg4[%c0_6, %c0_7], %8 {strides = array<i32>} : memref<32x32xbf16, #tpu.memory_space<vmem>>, vector<32x32xbf16>,
    return
  }
  func.func @transform_0(%arg0: i32) -> (i32, i32) {
    %c0_i32 = arith.constant 0 : i32
    %c0_i32_0 = arith.constant 0 : i32
    return %arg0, %c0_i32 : i32, i32
  }
  func.func @transform_1(%arg0: i32) -> (i32, i32) {
    %c0_i32 = arith.constant 0 : i32
    %c0_i32_0 = arith.constant 0 : i32
    %c0_i32_1 = arith.constant 0 : i32
    return %c0_i32, %c0_i32_0 : i32, i32
  }
  func.func @transform_2(%arg0: i32) -> (i32, i32) {
    %c0_i32 = arith.constant 0 : i32
    %c0_i32_0 = arith.constant 0 : i32
    %c0_i32_1 = arith.constant 0 : i32
    return %c0_i32, %c0_i32_0 : i32, i32
  }
  func.func @transform_3(%arg0: i32) -> (i32, i32) {
    %c0_i32 = arith.constant 0 : i32
    %c0_i32_0 = arith.constant 0 : i32
    return %arg0, %c0_i32 : i32, i32
  }
}

module attributes {stable_mosaic.version = 11 : i64} {
  func.func @_mm_bias_kernel(%arg0: i32, %arg1: memref<8x576xbf16, #tpu.memory_space<vmem>>, %arg2: memref<576x128xbf16, #tpu.memory_space<vmem>>, %arg3: memref<1x128xf32, #tpu.memory_space<vmem>>, %arg4: memref<8x128xbf16, #tpu.memory_space<vmem>>) attributes {dimension_semantics = [#tpu.dimension_semantics<parallel>], iteration_bounds = array<i64: 1>, scalar_prefetch = 0 : i64, scratch_operands = 0 : i64, tpu.core_type = #tpu.core_type<tc>, window_params = [{transform_indices = @transform_0, window_bounds = array<i64: 8, 576>}, {pipeline_mode = #tpu.pipeline_mode<synchronous>, transform_indices = @transform_1, window_bounds = array<i64: 576, 128>}, {pipeline_mode = #tpu.pipeline_mode<synchronous>, transform_indices = @transform_2, window_bounds = array<i64: 1, 128>}, {transform_indices = @transform_3, window_bounds = array<i64: 8, 128>}]} {
    %c0 = arith.constant 0 : index
    %c0_0 = arith.constant 0 : index
    %0 = vector.load %arg1[%c0, %c0_0] : memref<8x576xbf16, #tpu.memory_space<vmem>>, vector<8x576xbf16>
    %c0_1 = arith.constant 0 : index
    %c0_2 = arith.constant 0 : index
    %1 = vector.load %arg2[%c0_1, %c0_2] : memref<576x128xbf16, #tpu.memory_space<vmem>>, vector<576x128xbf16>
    %cst = arith.constant dense<0.000000e+00> : vector<8x128xf32>
    %2 = tpu.matmul %0, %1, %cst {dimension_numbers = #tpu.dot_dimension_numbers<[1], [0], [0], [1], [0, 0, 1, 1], [], []>} : vector<8x576xbf16>, vector<576x128xbf16>, vector<8x128xf32> -> vector<8x128xf32>
    %c0_3 = arith.constant 0 : index
    %c0_4 = arith.constant 0 : index
    %3 = vector.load %arg3[%c0_3, %c0_4] : memref<1x128xf32, #tpu.memory_space<vmem>>, vector<1x128xf32>
    %4 = vector.broadcast %3 : vector<1x128xf32> to vector<8x128xf32>
    %5 = arith.addf %2, %4 : vector<8x128xf32>
    %cst_5 = arith.constant 0.000000e+00 : f32
    %6 = vector.broadcast %cst_5 : f32 to vector<8x128xf32>
    %7 = arith.maximumf %5, %6 : vector<8x128xf32>
    %8 = arith.truncf %7 : vector<8x128xf32> to vector<8x128xbf16>
    %c0_6 = arith.constant 0 : index
    %c0_7 = arith.constant 0 : index
    %9 = vector.load %arg4[%c0_6, %c0_7] : memref<8x128xbf16, #tpu.memory_space<vmem>>, vector<8x128xbf16>
    tpu.vector_store %arg4[%c0_6, %c0_7], %8 {strides = array<i32>} : memref<8x128xbf16, #tpu.memory_space<vmem>>, vector<8x128xbf16>,
    return
  }
  func.func @transform_0(%arg0: i32) -> (i32, i32) {
    %c0_i32 = arith.constant 0 : i32
    %c0_i32_0 = arith.constant 0 : i32
    return %arg0, %c0_i32 : i32, i32
  }
  func.func @transform_1(%arg0: i32) -> (i32, i32) {
    %c0_i32 = arith.constant 0 : i32
    %c0_i32_0 = arith.constant 0 : i32
    %c0_i32_1 = arith.constant 0 : i32
    return %c0_i32, %c0_i32_0 : i32, i32
  }
  func.func @transform_2(%arg0: i32) -> (i32, i32) {
    %c0_i32 = arith.constant 0 : i32
    %c0_i32_0 = arith.constant 0 : i32
    %c0_i32_1 = arith.constant 0 : i32
    return %c0_i32, %c0_i32_0 : i32, i32
  }
  func.func @transform_3(%arg0: i32) -> (i32, i32) {
    %c0_i32 = arith.constant 0 : i32
    %c0_i32_0 = arith.constant 0 : i32
    return %arg0, %c0_i32 : i32, i32
  }
}

module attributes {stable_mosaic.version = 11 : i64} {
  func.func @_mm_bias_kernel(%arg0: i32, %arg1: memref<8x288xbf16, #tpu.memory_space<vmem>>, %arg2: memref<288x64xbf16, #tpu.memory_space<vmem>>, %arg3: memref<1x64xf32, #tpu.memory_space<vmem>>, %arg4: memref<8x64xbf16, #tpu.memory_space<vmem>>) attributes {dimension_semantics = [#tpu.dimension_semantics<parallel>], iteration_bounds = array<i64: 1>, scalar_prefetch = 0 : i64, scratch_operands = 0 : i64, tpu.core_type = #tpu.core_type<tc>, window_params = [{transform_indices = @transform_0, window_bounds = array<i64: 8, 288>}, {pipeline_mode = #tpu.pipeline_mode<synchronous>, transform_indices = @transform_1, window_bounds = array<i64: 288, 64>}, {pipeline_mode = #tpu.pipeline_mode<synchronous>, transform_indices = @transform_2, window_bounds = array<i64: 1, 64>}, {transform_indices = @transform_3, window_bounds = array<i64: 8, 64>}]} {
    %c0 = arith.constant 0 : index
    %c0_0 = arith.constant 0 : index
    %0 = vector.load %arg1[%c0, %c0_0] : memref<8x288xbf16, #tpu.memory_space<vmem>>, vector<8x288xbf16>
    %c0_1 = arith.constant 0 : index
    %c0_2 = arith.constant 0 : index
    %1 = vector.load %arg2[%c0_1, %c0_2] : memref<288x64xbf16, #tpu.memory_space<vmem>>, vector<288x64xbf16>
    %cst = arith.constant dense<0.000000e+00> : vector<8x64xf32>
    %2 = tpu.matmul %0, %1, %cst {dimension_numbers = #tpu.dot_dimension_numbers<[1], [0], [0], [1], [0, 0, 1, 1], [], []>} : vector<8x288xbf16>, vector<288x64xbf16>, vector<8x64xf32> -> vector<8x64xf32>
    %c0_3 = arith.constant 0 : index
    %c0_4 = arith.constant 0 : index
    %3 = vector.load %arg3[%c0_3, %c0_4] : memref<1x64xf32, #tpu.memory_space<vmem>>, vector<1x64xf32>
    %4 = vector.broadcast %3 : vector<1x64xf32> to vector<8x64xf32>
    %5 = arith.addf %2, %4 : vector<8x64xf32>
    %cst_5 = arith.constant 0.000000e+00 : f32
    %6 = vector.broadcast %cst_5 : f32 to vector<8x64xf32>
    %7 = arith.maximumf %5, %6 : vector<8x64xf32>
    %8 = arith.truncf %7 : vector<8x64xf32> to vector<8x64xbf16>
    %c0_6 = arith.constant 0 : index
    %c0_7 = arith.constant 0 : index
    %9 = vector.load %arg4[%c0_6, %c0_7] : memref<8x64xbf16, #tpu.memory_space<vmem>>, vector<8x64xbf16>
    tpu.vector_store %arg4[%c0_6, %c0_7], %8 {strides = array<i32>} : memref<8x64xbf16, #tpu.memory_space<vmem>>, vector<8x64xbf16>,
    return
  }
  func.func @transform_0(%arg0: i32) -> (i32, i32) {
    %c0_i32 = arith.constant 0 : i32
    %c0_i32_0 = arith.constant 0 : i32
    return %arg0, %c0_i32 : i32, i32
  }
  func.func @transform_1(%arg0: i32) -> (i32, i32) {
    %c0_i32 = arith.constant 0 : i32
    %c0_i32_0 = arith.constant 0 : i32
    %c0_i32_1 = arith.constant 0 : i32
    return %c0_i32, %c0_i32_0 : i32, i32
  }
  func.func @transform_2(%arg0: i32) -> (i32, i32) {
    %c0_i32 = arith.constant 0 : i32
    %c0_i32_0 = arith.constant 0 : i32
    %c0_i32_1 = arith.constant 0 : i32
    return %c0_i32, %c0_i32_0 : i32, i32
  }
  func.func @transform_3(%arg0: i32) -> (i32, i32) {
    %c0_i32 = arith.constant 0 : i32
    %c0_i32_0 = arith.constant 0 : i32
    return %arg0, %c0_i32 : i32, i32
  }
}

module attributes {stable_mosaic.version = 11 : i64} {
  func.func @_mm_bias_kernel(%arg0: i32, %arg1: memref<8x128xbf16, #tpu.memory_space<vmem>>, %arg2: memref<128x256xbf16, #tpu.memory_space<vmem>>, %arg3: memref<1x256xf32, #tpu.memory_space<vmem>>, %arg4: memref<8x256xbf16, #tpu.memory_space<vmem>>) attributes {dimension_semantics = [#tpu.dimension_semantics<parallel>], iteration_bounds = array<i64: 1>, scalar_prefetch = 0 : i64, scratch_operands = 0 : i64, tpu.core_type = #tpu.core_type<tc>, window_params = [{transform_indices = @transform_0, window_bounds = array<i64: 8, 128>}, {pipeline_mode = #tpu.pipeline_mode<synchronous>, transform_indices = @transform_1, window_bounds = array<i64: 128, 256>}, {pipeline_mode = #tpu.pipeline_mode<synchronous>, transform_indices = @transform_2, window_bounds = array<i64: 1, 256>}, {transform_indices = @transform_3, window_bounds = array<i64: 8, 256>}]} {
    %c0 = arith.constant 0 : index
    %c0_0 = arith.constant 0 : index
    %0 = vector.load %arg1[%c0, %c0_0] : memref<8x128xbf16, #tpu.memory_space<vmem>>, vector<8x128xbf16>
    %c0_1 = arith.constant 0 : index
    %c0_2 = arith.constant 0 : index
    %1 = vector.load %arg2[%c0_1, %c0_2] : memref<128x256xbf16, #tpu.memory_space<vmem>>, vector<128x256xbf16>
    %cst = arith.constant dense<0.000000e+00> : vector<8x256xf32>
    %2 = tpu.matmul %0, %1, %cst {dimension_numbers = #tpu.dot_dimension_numbers<[1], [0], [0], [1], [0, 0, 1, 1], [], []>} : vector<8x128xbf16>, vector<128x256xbf16>, vector<8x256xf32> -> vector<8x256xf32>
    %c0_3 = arith.constant 0 : index
    %c0_4 = arith.constant 0 : index
    %3 = vector.load %arg3[%c0_3, %c0_4] : memref<1x256xf32, #tpu.memory_space<vmem>>, vector<1x256xf32>
    %4 = vector.broadcast %3 : vector<1x256xf32> to vector<8x256xf32>
    %5 = arith.addf %2, %4 : vector<8x256xf32>
    %6 = arith.truncf %5 : vector<8x256xf32> to vector<8x256xbf16>
    %c0_5 = arith.constant 0 : index
    %c0_6 = arith.constant 0 : index
    %7 = vector.load %arg4[%c0_5, %c0_6] : memref<8x256xbf16, #tpu.memory_space<vmem>>, vector<8x256xbf16>
    tpu.vector_store %arg4[%c0_5, %c0_6], %6 {strides = array<i32>} : memref<8x256xbf16, #tpu.memory_space<vmem>>, vector<8x256xbf16>,
    return
  }
  func.func @transform_0(%arg0: i32) -> (i32, i32) {
    %c0_i32 = arith.constant 0 : i32
    %c0_i32_0 = arith.constant 0 : i32
    return %arg0, %c0_i32 : i32, i32
  }
  func.func @transform_1(%arg0: i32) -> (i32, i32) {
    %c0_i32 = arith.constant 0 : i32
    %c0_i32_0 = arith.constant 0 : i32
    %c0_i32_1 = arith.constant 0 : i32
    return %c0_i32, %c0_i32_0 : i32, i32
  }
  func.func @transform_2(%arg0: i32) -> (i32, i32) {
    %c0_i32 = arith.constant 0 : i32
    %c0_i32_0 = arith.constant 0 : i32
    %c0_i32_1 = arith.constant 0 : i32
    return %c0_i32, %c0_i32_0 : i32, i32
  }
  func.func @transform_3(%arg0: i32) -> (i32, i32) {
    %c0_i32 = arith.constant 0 : i32
    %c0_i32_0 = arith.constant 0 : i32
    return %arg0, %c0_i32 : i32, i32
  }
}

module attributes {stable_mosaic.version = 11 : i64} {
  func.func @_mm_bias_kernel(%arg0: i32, %arg1: memref<8x2304xbf16, #tpu.memory_space<vmem>>, %arg2: memref<2304x256xbf16, #tpu.memory_space<vmem>>, %arg3: memref<1x256xf32, #tpu.memory_space<vmem>>, %arg4: memref<8x256xbf16, #tpu.memory_space<vmem>>) attributes {dimension_semantics = [#tpu.dimension_semantics<parallel>], iteration_bounds = array<i64: 1>, scalar_prefetch = 0 : i64, scratch_operands = 0 : i64, tpu.core_type = #tpu.core_type<tc>, window_params = [{transform_indices = @transform_0, window_bounds = array<i64: 8, 2304>}, {pipeline_mode = #tpu.pipeline_mode<synchronous>, transform_indices = @transform_1, window_bounds = array<i64: 2304, 256>}, {pipeline_mode = #tpu.pipeline_mode<synchronous>, transform_indices = @transform_2, window_bounds = array<i64: 1, 256>}, {transform_indices = @transform_3, window_bounds = array<i64: 8, 256>}]} {
    %c0 = arith.constant 0 : index
    %c0_0 = arith.constant 0 : index
    %0 = vector.load %arg1[%c0, %c0_0] : memref<8x2304xbf16, #tpu.memory_space<vmem>>, vector<8x2304xbf16>
    %c0_1 = arith.constant 0 : index
    %c0_2 = arith.constant 0 : index
    %1 = vector.load %arg2[%c0_1, %c0_2] : memref<2304x256xbf16, #tpu.memory_space<vmem>>, vector<2304x256xbf16>
    %cst = arith.constant dense<0.000000e+00> : vector<8x256xf32>
    %2 = tpu.matmul %0, %1, %cst {dimension_numbers = #tpu.dot_dimension_numbers<[1], [0], [0], [1], [0, 0, 1, 1], [], []>} : vector<8x2304xbf16>, vector<2304x256xbf16>, vector<8x256xf32> -> vector<8x256xf32>
    %c0_3 = arith.constant 0 : index
    %c0_4 = arith.constant 0 : index
    %3 = vector.load %arg3[%c0_3, %c0_4] : memref<1x256xf32, #tpu.memory_space<vmem>>, vector<1x256xf32>
    %4 = vector.broadcast %3 : vector<1x256xf32> to vector<8x256xf32>
    %5 = arith.addf %2, %4 : vector<8x256xf32>
    %cst_5 = arith.constant 0.000000e+00 : f32
    %6 = vector.broadcast %cst_5 : f32 to vector<8x256xf32>
    %7 = arith.maximumf %5, %6 : vector<8x256xf32>
    %8 = arith.truncf %7 : vector<8x256xf32> to vector<8x256xbf16>
    %c0_6 = arith.constant 0 : index
    %c0_7 = arith.constant 0 : index
    %9 = vector.load %arg4[%c0_6, %c0_7] : memref<8x256xbf16, #tpu.memory_space<vmem>>, vector<8x256xbf16>
    tpu.vector_store %arg4[%c0_6, %c0_7], %8 {strides = array<i32>} : memref<8x256xbf16, #tpu.memory_space<vmem>>, vector<8x256xbf16>,
    return
  }
  func.func @transform_0(%arg0: i32) -> (i32, i32) {
    %c0_i32 = arith.constant 0 : i32
    %c0_i32_0 = arith.constant 0 : i32
    return %arg0, %c0_i32 : i32, i32
  }
  func.func @transform_1(%arg0: i32) -> (i32, i32) {
    %c0_i32 = arith.constant 0 : i32
    %c0_i32_0 = arith.constant 0 : i32
    %c0_i32_1 = arith.constant 0 : i32
    return %c0_i32, %c0_i32_0 : i32, i32
  }
  func.func @transform_2(%arg0: i32) -> (i32, i32) {
    %c0_i32 = arith.constant 0 : i32
    %c0_i32_0 = arith.constant 0 : i32
    %c0_i32_1 = arith.constant 0 : i32
    return %c0_i32, %c0_i32_0 : i32, i32
  }
  func.func @transform_3(%arg0: i32) -> (i32, i32) {
    %c0_i32 = arith.constant 0 : i32
    %c0_i32_0 = arith.constant 0 : i32
    return %arg0, %c0_i32 : i32, i32
  }
}

module attributes {stable_mosaic.version = 11 : i64} {
  func.func @_mm_bias_kernel(%arg0: i32, %arg1: memref<8x2304xbf16, #tpu.memory_space<vmem>>, %arg2: memref<2304x256xbf16, #tpu.memory_space<vmem>>, %arg3: memref<1x256xf32, #tpu.memory_space<vmem>>, %arg4: memref<8x256xbf16, #tpu.memory_space<vmem>>) attributes {dimension_semantics = [#tpu.dimension_semantics<parallel>], iteration_bounds = array<i64: 1>, scalar_prefetch = 0 : i64, scratch_operands = 0 : i64, tpu.core_type = #tpu.core_type<tc>, window_params = [{transform_indices = @transform_0, window_bounds = array<i64: 8, 2304>}, {pipeline_mode = #tpu.pipeline_mode<synchronous>, transform_indices = @transform_1, window_bounds = array<i64: 2304, 256>}, {pipeline_mode = #tpu.pipeline_mode<synchronous>, transform_indices = @transform_2, window_bounds = array<i64: 1, 256>}, {transform_indices = @transform_3, window_bounds = array<i64: 8, 256>}]} {
    %c0 = arith.constant 0 : index
    %c0_0 = arith.constant 0 : index
    %0 = vector.load %arg1[%c0, %c0_0] : memref<8x2304xbf16, #tpu.memory_space<vmem>>, vector<8x2304xbf16>
    %c0_1 = arith.constant 0 : index
    %c0_2 = arith.constant 0 : index
    %1 = vector.load %arg2[%c0_1, %c0_2] : memref<2304x256xbf16, #tpu.memory_space<vmem>>, vector<2304x256xbf16>
    %cst = arith.constant dense<0.000000e+00> : vector<8x256xf32>
    %2 = tpu.matmul %0, %1, %cst {dimension_numbers = #tpu.dot_dimension_numbers<[1], [0], [0], [1], [0, 0, 1, 1], [], []>} : vector<8x2304xbf16>, vector<2304x256xbf16>, vector<8x256xf32> -> vector<8x256xf32>
    %c0_3 = arith.constant 0 : index
    %c0_4 = arith.constant 0 : index
    %3 = vector.load %arg3[%c0_3, %c0_4] : memref<1x256xf32, #tpu.memory_space<vmem>>, vector<1x256xf32>
    %4 = vector.broadcast %3 : vector<1x256xf32> to vector<8x256xf32>
    %5 = arith.addf %2, %4 : vector<8x256xf32>
    %6 = arith.truncf %5 : vector<8x256xf32> to vector<8x256xbf16>
    %c0_5 = arith.constant 0 : index
    %c0_6 = arith.constant 0 : index
    %7 = vector.load %arg4[%c0_5, %c0_6] : memref<8x256xbf16, #tpu.memory_space<vmem>>, vector<8x256xbf16>
    tpu.vector_store %arg4[%c0_5, %c0_6], %6 {strides = array<i32>} : memref<8x256xbf16, #tpu.memory_space<vmem>>, vector<8x256xbf16>,
    return
  }
  func.func @transform_0(%arg0: i32) -> (i32, i32) {
    %c0_i32 = arith.constant 0 : i32
    %c0_i32_0 = arith.constant 0 : i32
    return %arg0, %c0_i32 : i32, i32
  }
  func.func @transform_1(%arg0: i32) -> (i32, i32) {
    %c0_i32 = arith.constant 0 : i32
    %c0_i32_0 = arith.constant 0 : i32
    %c0_i32_1 = arith.constant 0 : i32
    return %c0_i32, %c0_i32_0 : i32, i32
  }
  func.func @transform_2(%arg0: i32) -> (i32, i32) {
    %c0_i32 = arith.constant 0 : i32
    %c0_i32_0 = arith.constant 0 : i32
    %c0_i32_1 = arith.constant 0 : i32
    return %c0_i32, %c0_i32_0 : i32, i32
  }
  func.func @transform_3(%arg0: i32) -> (i32, i32) {
    %c0_i32 = arith.constant 0 : i32
    %c0_i32_0 = arith.constant 0 : i32
    return %arg0, %c0_i32 : i32, i32
  }
}

module attributes {stable_mosaic.version = 11 : i64} {
  func.func @_mm_bias_kernel(%arg0: i32, %arg1: memref<8x256xbf16, #tpu.memory_space<vmem>>, %arg2: memref<256x64xbf16, #tpu.memory_space<vmem>>, %arg3: memref<1x64xf32, #tpu.memory_space<vmem>>, %arg4: memref<8x64xbf16, #tpu.memory_space<vmem>>) attributes {dimension_semantics = [#tpu.dimension_semantics<parallel>], iteration_bounds = array<i64: 1>, scalar_prefetch = 0 : i64, scratch_operands = 0 : i64, tpu.core_type = #tpu.core_type<tc>, window_params = [{transform_indices = @transform_0, window_bounds = array<i64: 8, 256>}, {pipeline_mode = #tpu.pipeline_mode<synchronous>, transform_indices = @transform_1, window_bounds = array<i64: 256, 64>}, {pipeline_mode = #tpu.pipeline_mode<synchronous>, transform_indices = @transform_2, window_bounds = array<i64: 1, 64>}, {transform_indices = @transform_3, window_bounds = array<i64: 8, 64>}]} {
    %c0 = arith.constant 0 : index
    %c0_0 = arith.constant 0 : index
    %0 = vector.load %arg1[%c0, %c0_0] : memref<8x256xbf16, #tpu.memory_space<vmem>>, vector<8x256xbf16>
    %c0_1 = arith.constant 0 : index
    %c0_2 = arith.constant 0 : index
    %1 = vector.load %arg2[%c0_1, %c0_2] : memref<256x64xbf16, #tpu.memory_space<vmem>>, vector<256x64xbf16>
    %cst = arith.constant dense<0.000000e+00> : vector<8x64xf32>
    %2 = tpu.matmul %0, %1, %cst {dimension_numbers = #tpu.dot_dimension_numbers<[1], [0], [0], [1], [0, 0, 1, 1], [], []>} : vector<8x256xbf16>, vector<256x64xbf16>, vector<8x64xf32> -> vector<8x64xf32>
    %c0_3 = arith.constant 0 : index
    %c0_4 = arith.constant 0 : index
    %3 = vector.load %arg3[%c0_3, %c0_4] : memref<1x64xf32, #tpu.memory_space<vmem>>, vector<1x64xf32>
    %4 = vector.broadcast %3 : vector<1x64xf32> to vector<8x64xf32>
    %5 = arith.addf %2, %4 : vector<8x64xf32>
    %6 = arith.truncf %5 : vector<8x64xf32> to vector<8x64xbf16>
    %c0_5 = arith.constant 0 : index
    %c0_6 = arith.constant 0 : index
    %7 = vector.load %arg4[%c0_5, %c0_6] : memref<8x64xbf16, #tpu.memory_space<vmem>>, vector<8x64xbf16>
    tpu.vector_store %arg4[%c0_5, %c0_6], %6 {strides = array<i32>} : memref<8x64xbf16, #tpu.memory_space<vmem>>, vector<8x64xbf16>,
    return
  }
  func.func @transform_0(%arg0: i32) -> (i32, i32) {
    %c0_i32 = arith.constant 0 : i32
    %c0_i32_0 = arith.constant 0 : i32
    return %arg0, %c0_i32 : i32, i32
  }
  func.func @transform_1(%arg0: i32) -> (i32, i32) {
    %c0_i32 = arith.constant 0 : i32
    %c0_i32_0 = arith.constant 0 : i32
    %c0_i32_1 = arith.constant 0 : i32
    return %c0_i32, %c0_i32_0 : i32, i32
  }
  func.func @transform_2(%arg0: i32) -> (i32, i32) {
    %c0_i32 = arith.constant 0 : i32
    %c0_i32_0 = arith.constant 0 : i32
    %c0_i32_1 = arith.constant 0 : i32
    return %c0_i32, %c0_i32_0 : i32, i32
  }
  func.func @transform_3(%arg0: i32) -> (i32, i32) {
    %c0_i32 = arith.constant 0 : i32
    %c0_i32_0 = arith.constant 0 : i32
    return %arg0, %c0_i32 : i32, i32
  }
}

module attributes {stable_mosaic.version = 11 : i64} {
  func.func @_mm_bias_kernel(%arg0: i32, %arg1: memref<8x256xbf16, #tpu.memory_space<vmem>>, %arg2: memref<256x10xbf16, #tpu.memory_space<vmem>>, %arg3: memref<1x10xf32, #tpu.memory_space<vmem>>, %arg4: memref<8x10xbf16, #tpu.memory_space<vmem>>) attributes {dimension_semantics = [#tpu.dimension_semantics<parallel>], iteration_bounds = array<i64: 1>, scalar_prefetch = 0 : i64, scratch_operands = 0 : i64, tpu.core_type = #tpu.core_type<tc>, window_params = [{transform_indices = @transform_0, window_bounds = array<i64: 8, 256>}, {pipeline_mode = #tpu.pipeline_mode<synchronous>, transform_indices = @transform_1, window_bounds = array<i64: 256, 10>}, {pipeline_mode = #tpu.pipeline_mode<synchronous>, transform_indices = @transform_2, window_bounds = array<i64: 1, 10>}, {transform_indices = @transform_3, window_bounds = array<i64: 8, 10>}]} {
    %c0 = arith.constant 0 : index
    %c0_0 = arith.constant 0 : index
    %0 = vector.load %arg1[%c0, %c0_0] : memref<8x256xbf16, #tpu.memory_space<vmem>>, vector<8x256xbf16>
    %c0_1 = arith.constant 0 : index
    %c0_2 = arith.constant 0 : index
    %1 = vector.load %arg2[%c0_1, %c0_2] : memref<256x10xbf16, #tpu.memory_space<vmem>>, vector<256x10xbf16>
    %cst = arith.constant dense<0.000000e+00> : vector<8x10xf32>
    %2 = tpu.matmul %0, %1, %cst {dimension_numbers = #tpu.dot_dimension_numbers<[1], [0], [0], [1], [0, 0, 1, 1], [], []>} : vector<8x256xbf16>, vector<256x10xbf16>, vector<8x10xf32> -> vector<8x10xf32>
    %c0_3 = arith.constant 0 : index
    %c0_4 = arith.constant 0 : index
    %3 = vector.load %arg3[%c0_3, %c0_4] : memref<1x10xf32, #tpu.memory_space<vmem>>, vector<1x10xf32>
    %4 = vector.broadcast %3 : vector<1x10xf32> to vector<8x10xf32>
    %5 = arith.addf %2, %4 : vector<8x10xf32>
    %6 = arith.truncf %5 : vector<8x10xf32> to vector<8x10xbf16>
    %c0_5 = arith.constant 0 : index
    %c0_6 = arith.constant 0 : index
    %7 = vector.load %arg4[%c0_5, %c0_6] : memref<8x10xbf16, #tpu.memory_space<vmem>>, vector<8x10xbf16>
    tpu.vector_store %arg4[%c0_5, %c0_6], %6 {strides = array<i32>} : memref<8x10xbf16, #tpu.memory_space<vmem>>, vector<8x10xbf16>,
    return
  }
  func.func @transform_0(%arg0: i32) -> (i32, i32) {
    %c0_i32 = arith.constant 0 : i32
    %c0_i32_0 = arith.constant 0 : i32
    return %arg0, %c0_i32 : i32, i32
  }
  func.func @transform_1(%arg0: i32) -> (i32, i32) {
    %c0_i32 = arith.constant 0 : i32
    %c0_i32_0 = arith.constant 0 : i32
    %c0_i32_1 = arith.constant 0 : i32
    return %c0_i32, %c0_i32_0 : i32, i32
  }
  func.func @transform_2(%arg0: i32) -> (i32, i32) {
    %c0_i32 = arith.constant 0 : i32
    %c0_i32_0 = arith.constant 0 : i32
    %c0_i32_1 = arith.constant 0 : i32
    return %c0_i32, %c0_i32_0 : i32, i32
  }
  func.func @transform_3(%arg0: i32) -> (i32, i32) {
    %c0_i32 = arith.constant 0 : i32
    %c0_i32_0 = arith.constant 0 : i32
    return %arg0, %c0_i32 : i32, i32
  }
}

</mosaic_0001>

<llo_original>
// kernel: yolo_forward.10
$region0: #{yolo_forward.10}
  #allocation0 [shape = 'u32[]', space=smem, size = 0x4, offset = 0x4, fixed_abs, tag = 'smem constant byte address 0x4 - core index']
  #allocation1 [shape = 'u32[144,128]{1,0:T(1,128)}', space=vmem, size = 0x12000, scoped, tag = 'internal scratch']
  %s0 = inlined_call_operand.vmem [shape: bf16[512,27], index: 0, kind: input, shape index: {}]
  %s1 = inlined_call_operand.vmem [shape: bf16[27,8], index: 1, kind: input, shape index: {}]
  %s2 = inlined_call_operand.vmem [shape: f32[1,8], index: 2, kind: input, shape index: {}]
  %s3 = inlined_call_operand.vmem [shape: bf16[512,8], index: 3, kind: output, shape index: {}]
  %s4 = sld [smem:[#allocation0]]
  $region45: #{yolo_forward.10} parent=0
    _
  %s6 = ssub.s32 1, %s4
  %s7 = scalar_select 0, %s6, %s4
  loop: start=0, step=1, limit=6
  $region2: #{yolo_forward.10} parent=0 // loop_pre_header
    _
  $region3: #{yolo_forward.10} parent=0 // loop_header
    %s9 = sphi 0, %s13
    %p10 = scmp.ge.s32.totalorder %s9, 6
    %s19 = sphi 0, %s21
    %s22 = sphi 0, %s19
    %s23 = sphi 0, %s22
    %s39 = sphi 0, %s23
    %s43 = sphi 0, %s43
    %s45 = sphi 0, %s43
    %s46 = sphi 0, %s45
    %s60 = sphi 0, %s46
    %s64 = sphi 0, %s64
    %s66 = sphi 0, %s64
    %s67 = sphi 0, %s66
    %s81 = sphi 0, %s67
    %s87 = sphi 0, %s89
    %s90 = sphi 0, %s87
    %s91 = sphi 0, %s90
    %s107 = sphi 0, %s91
  $region4: #{yolo_forward.10} parent=0 // loop_header_branch
    %12 = sbr.rel (%p10) target = $region8
  $region5: #{yolo_forward.10} parent=0 // loop_body
    %s14 = ssub.s32 %s9, 1
    %s15 = ssub.s32 %s9, 2
    %s16 = sadd.s32 %s9, 1
    %s17 = ssub.s32 %s9, %s16
    %p18 = scmp.eq.s32.totalorder %s17, 0
    %s20 = sadd.s32 %s19, 1
    %s21 = scalar_select %p18, %s19, %s20
    %p24 = pneg %p18
    %p25 = scmp.eq.s32.totalorder %s9, 3
    %p26 = por %p24, %p25
    %p27 = scmp.ne.s32.totalorder %s19, %s22
    %p28 = scmp.eq.s32.totalorder %s9, 0
    %p29 = por %p27, %p28
    %p30 = scmp.ne.s32.totalorder %s19, %s22
    %p31 = scmp.eq.s32.totalorder %s14, 3
    %p32 = por %p30, %p31
    %p33 = scmp.ne.s32.totalorder %s22, %s23
    %p34 = scmp.eq.s32.totalorder %s14, 0
    %p35 = por %p33, %p34
    %p36 = scmp.ne.s32.totalorder %s22, %s23
    %p37 = scmp.eq.s32.totalorder %s15, 3
    %p38 = por %p36, %p37
    %p40 = scmp.ne.s32.totalorder %s23, %s39
    %p41 = scmp.eq.s32.totalorder %s15, 0
    %p42 = por %p40, %p41
    %s44 = sadd.s32 %s43, 1
    %p47 = scmp.eq.s32.totalorder %s9, 3
    %p48 = scmp.ne.s32.totalorder %s43, %s45
    %p49 = scmp.eq.s32.totalorder %s9, 0
    %p50 = por %p48, %p49
    %p51 = scmp.ne.s32.totalorder %s43, %s45
    %p52 = scmp.eq.s32.totalorder %s14, 3
    %p53 = por %p51, %p52
    %p54 = scmp.ne.s32.totalorder %s45, %s46
    %p55 = scmp.eq.s32.totalorder %s14, 0
    %p56 = por %p54, %p55
    %p57 = scmp.ne.s32.totalorder %s45, %s46
    %p58 = scmp.eq.s32.totalorder %s15, 3
    %p59 = por %p57, %p58
    %p61 = scmp.ne.s32.totalorder %s46, %s60
    %p62 = scmp.eq.s32.totalorder %s15, 0
    %p63 = por %p61, %p62
    %s65 = sadd.s32 %s64, 1
    %p68 = scmp.eq.s32.totalorder %s9, 3
    %p69 = scmp.ne.s32.totalorder %s64, %s66
    %p70 = scmp.eq.s32.totalorder %s9, 0
    %p71 = por %p69, %p70
    %p72 = scmp.ne.s32.totalorder %s64, %s66
    %p73 = scmp.eq.s32.totalorder %s14, 3
    %p74 = por %p72, %p73
    %p75 = scmp.ne.s32.totalorder %s66, %s67
    %p76 = scmp.eq.s32.totalorder %s14, 0
    %p77 = por %p75, %p76
    %p78 = scmp.ne.s32.totalorder %s66, %s67
    %p79 = scmp.eq.s32.totalorder %s15, 3
    %p80 = por %p78, %p79
    %p82 = scmp.ne.s32.totalorder %s67, %s81
    %p83 = scmp.eq.s32.totalorder %s15, 0
    %p84 = por %p82, %p83
    %s85 = ssub.s32 %s9, %s16
    %p86 = scmp.eq.s32.totalorder %s85, 0
    %s88 = sadd.s32 %s87, 1
    %s89 = scalar_select %p86, %s87, %s88
    %p92 = pneg %p86
    %p93 = scmp.eq.s32.totalorder %s9, 3
    %p94 = por %p92, %p93
    %p95 = scmp.ne.s32.totalorder %s87, %s90
    %p96 = scmp.eq.s32.totalorder %s9, 0
    %p97 = por %p95, %p96
    %p98 = scmp.ne.s32.totalorder %s87, %s90
    %p99 = scmp.eq.s32.totalorder %s14, 3
    %p100 = por %p98, %p99
    %p101 = scmp.ne.s32.totalorder %s90, %s91
    %p102 = scmp.eq.s32.totalorder %s14, 0
    %p103 = por %p101, %p102
    %p104 = scmp.ne.s32.totalorder %s90, %s91
    %p105 = scmp.eq.s32.totalorder %s15, 3
    %p106 = por %p104, %p105
    %p108 = scmp.ne.s32.totalorder %s91, %s107
    %p109 = scmp.eq.s32.totalorder %s15, 0
    %p110 = por %p108, %p109
    %p111 = scmp.le.s32.totalorder 1, %s9
    %p112 = scmp.lt.s32.totalorder %s9, 5
    %p113 = pnand %p111, %p112
    %p114 = pneg %p113
    // Predicated region
    $region9: #{yolo_forward.10} parent=5 // pred_check
      _
    $region10: #{yolo_forward.10} parent=5 // pred_check_branch
      %116 = sbr.rel (%p113) target = $region12
    $region11: #{yolo_forward.10} parent=5 // pred_region
      %s117 = ssub.s32 %s9, 1
      // Predicated region
      $region13: #{yolo_forward.10} parent=11 // pred_check
        %p118 = pneg %p56
      $region14: #{yolo_forward.10} parent=11 // pred_check_branch
        %120 = sbr.rel (%p118) target = $region16
      $region15: #{yolo_forward.10} parent=11 // pred_region
        _
      $region16: #{yolo_forward.10} parent=11 // pred_fallthru
        _
      // Predicated region
      $region17: #{yolo_forward.10} parent=11 // pred_check
        %p121 = pneg %p77
      $region18: #{yolo_forward.10} parent=11 // pred_check_branch
        %123 = sbr.rel (%p121) target = $region20
      $region19: #{yolo_forward.10} parent=11 // pred_region
        _
      $region20: #{yolo_forward.10} parent=11 // pred_fallthru
        _
    $region12: #{yolo_forward.10} parent=5 // pred_fallthru
      _
    %p124 = scmp.lt.s32.totalorder %s9, 4
    // Predicated region
    $region21: #{yolo_forward.10} parent=5 // pred_check
      %p125 = pneg %p124
    $region22: #{yolo_forward.10} parent=5 // pred_check_branch
      %127 = sbr.rel (%p125) target = $region24
    $region23: #{yolo_forward.10} parent=5 // pred_region
      // Predicated region
      $region25: #{yolo_forward.10} parent=23 // pred_check
        %p128 = pneg %p29
      $region26: #{yolo_forward.10} parent=23 // pred_check_branch
        %130 = sbr.rel (%p128) target = $region28
      $region27: #{yolo_forward.10} parent=23 // pred_region
        %s131 = smul.u32 16, %s9
        %p132 = scmp.lt.s32.totalorder %s131, 63
        %s133 = scalar_select %p132, %s131, 63
        %s134 = smul.addr %s133, 4
        %s135 = scalar_lea.vmem %s0, %s134
        %s136 = smul.u32 16, %s9
      $region28: #{yolo_forward.10} parent=23 // pred_fallthru
        _
    $region24: #{yolo_forward.10} parent=5 // pred_fallthru
      _
    %p137 = scmp.le.s32.totalorder 1, %s9
    %p138 = scmp.lt.s32.totalorder %s9, 5
    %p139 = pnand %p137, %p138
    %p140 = pneg %p139
    // Predicated region
    $region29: #{yolo_forward.10} parent=5 // pred_check
      _
    $region30: #{yolo_forward.10} parent=5 // pred_check_branch
      %142 = sbr.rel (%p139) target = $region32
    $region31: #{yolo_forward.10} parent=5 // pred_region
      %s143 = ssub.s32 %s9, 1
      %s144 = smul.u32 16, %s14
      %p145 = scmp.lt.s32.totalorder %s144, 63
      %s146 = scalar_select %p145, %s144, 63
      %s147 = smul.addr %s146, 4
      %s148 = scalar_lea.vmem %s0, %s147
      %p149 = pneg %p35
      %p150 = pneg %p32
      %p151 = pneg %p56
      %p152 = pneg %p53
      %p153 = pneg %p77
      %p154 = pneg %p74
      %p155 = pneg %p103
      %p156 = pneg %p100
      %s157 = smul.u32 16, %s14
      %p158 = scmp.lt.s32.totalorder %s157, 63
      %s159 = scalar_select %p158, %s157, 63
      %s160 = smul.addr %s159, 4
      %s161 = scalar_lea.vmem %s3, %s160
      %s162 = smul.u32 16, %s14
      %p163 = scmp.lt.s32.totalorder %s162, 63
      %s164 = scalar_select %p163, %s162, 63
      %s165 = smul.addr %s164, 4
      %s166 = scalar_lea.vmem %s0, %s165
      %s167 = smul.u32 16, %s14
      %s168 = smul.u32 16, %s14
      %p169 = scmp.lt.s32.totalorder %s168, 63
      %s170 = scalar_select %p169, %s168, 63
      %s171 = smul.addr %s170, 4
      %s172 = scalar_lea.vmem %s3, %s171
      %s173 = smul.u32 16, %s14
      %v175 = vld [vmem:[%s166] sm:$0xf]
      %v176 = vld [vmem:[%s166 + $0x4] sm:$0xf]
      %v177 = vld [vmem:[%s166 + $0x8] sm:$0xf]
      %v178 = vld [vmem:[%s166 + $0xc] sm:$0xf]
      %v179 = vld [vmem:[%s166 + $0x10] sm:$0xf]
      %v180 = vld [vmem:[%s166 + $0x14] sm:$0xf]
      %v181 = vld [vmem:[%s166 + $0x18] sm:$0xf]
      %v182 = vld [vmem:[%s166 + $0x1c] sm:$0xf]
      %v183 = vld [vmem:[%s166 + $0x20] sm:$0xf]
      %v184 = vld [vmem:[%s166 + $0x24] sm:$0xf]
      %v185 = vld [vmem:[%s166 + $0x28] sm:$0xf]
      %v186 = vld [vmem:[%s166 + $0x2c] sm:$0xf]
      %v187 = vld [vmem:[%s166 + $0x30] sm:$0xf]
      %v188 = vld [vmem:[%s166 + $0x34] sm:$0xf]
      %v189 = vld [vmem:[%s166 + $0x38] sm:$0xf]
      %v190 = vld [vmem:[%s166 + $0x3c] sm:$0xf]
      %v191 = vld [vmem:[%s1] sm:$0xf]
      %v192 = vld [vmem:[%s1 + $0x4] sm:$0xf]
      %v193 = vld [vmem:[%s1 + $0x8] sm:$0xf]
      %v194 = vld [vmem:[%s1 + $0xc] sm:$0x3]
      %v195 = vld [vmem:[%s2] sm:$0x1]
      %v197 = vlaneseq
      %v198 = vshrl.u32 %v197, 7
      %v199 = vsub.s32 0, %v198
      %v200 = vrot.slane %v195, %v199
      %v218 = vunpack.c.l.b16 %v175
      %v219 = vunpack.c.l.b16 %v176
      %v220 = vunpack.c.l.b16 %v177
      %v221 = vunpack.c.l.b16 %v178
      %v222 = vunpack.c.l.b16 %v179
      %v223 = vunpack.c.l.b16 %v180
      %v224 = vunpack.c.l.b16 %v181
      %v225 = vunpack.c.l.b16 %v182
      %v226 = vunpack.c.l.b16 %v183
      %v227 = vunpack.c.l.b16 %v184
      %v228 = vunpack.c.l.b16 %v185
      %v229 = vunpack.c.l.b16 %v186
      %v230 = vunpack.c.l.b16 %v187
      %v231 = vunpack.c.l.b16 %v188
      %v232 = vunpack.c.l.b16 %v189
      %v233 = vunpack.c.l.b16 %v190
      %v234 = vpack.c.b16 %v219, %v218
      %v235 = vpack.c.b16 %v221, %v220
      %v236 = vpack.c.b16 %v223, %v222
      %v237 = vpack.c.b16 %v225, %v224
      %v238 = vpack.c.b16 %v227, %v226
      %v239 = vpack.c.b16 %v229, %v228
      %v240 = vpack.c.b16 %v231, %v230
      %v241 = vpack.c.b16 %v233, %v232
      %v246 = vunpack.c.l.b16 %v191
      %v247 = vunpack.c.l.b16 %v192
      %v248 = vunpack.c.l.b16 %v193
      %v249 = vunpack.c.l.b16 %v194
      %v250 = vpack.c.b16 %v247, %v246
      %v251 = vpack.c.b16 %v249, %v248
      %vm253 = vcmask 220160
      %v255 = vsel %vm253, %v234, 0
      %v258 = vsel %vm253, %v235, 0
      %v261 = vsel %vm253, %v236, 0
      %v264 = vsel %vm253, %v237, 0
      %v267 = vsel %vm253, %v238, 0
      %v270 = vsel %vm253, %v239, 0
      %v273 = vsel %vm253, %v240, 0
      %v276 = vsel %vm253, %v241, 0
      %vm278 = vcmask 1044480
      %vm279 = vcmask 1045504
      %v280 = vsel %vm278, 4294967295, 65535
      %v281 = vsel %vm279, %v280, 0
      %v283 = vand.u32 %v251, %v281
      %285 = vmatprep.subr.bf16.mxu0 0
      %286 = vmatpush1.bf16.msra.mxu0 %v250
      %287 = vmatprep.subr.bf16.mxu0 0
      %288 = vmatpush1.bf16.msra.mxu0 %v283
      %289 = vmatprep.subr.bf16.mxu0 0
      %290 = vmatpush1.bf16.msra.mxu0 0
      %291 = vmatprep.subr.bf16.mxu0 0
      %292 = vmatpush1.bf16.msra.mxu0 0
      %293 = vmatprep.subr.bf16.mxu0 0
      %294 = vmatpush1.bf16.msra.mxu0 0
      %295 = vmatprep.subr.bf16.mxu0 0
      %296 = vmatpush1.bf16.msra.mxu0 0
      %297 = vmatprep.subr.bf16.mxu0 0
      %298 = vmatpush1.bf16.msra.mxu0 0
      %299 = vmatprep.subr.bf16.mxu0 0
      %300 = vmatpush1.bf16.msra.mxu0 0
      %301 = vmatprep.subr.bf16.mxu0 0
      %302 = vmatpush1.bf16.msra.mxu0 0
      %303 = vmatprep.subr.bf16.mxu0 0
      %304 = vmatpush1.bf16.msra.mxu0 0
      %305 = vmatprep.subr.bf16.mxu0 0
      %306 = vmatpush1.bf16.msra.mxu0 0
      %307 = vmatprep.subr.bf16.mxu0 0
      %308 = vmatpush1.bf16.msra.mxu0 0
      %309 = vmatprep.subr.bf16.mxu0 0
      %310 = vmatpush1.bf16.msra.mxu0 0
      %311 = vmatprep.subr.bf16.mxu0 0
      %312 = vmatpush1.bf16.msra.mxu0 0
      %313 = vmatprep.subr.bf16.mxu0 0
      %314 = vmatpush1.bf16.msra.mxu0 0
      %315 = vmatprep.subr.bf16.mxu0 0
      %316 = vmatpush1.bf16.msra.mxu0 0
      %317 = vmatprep.mubr.bf16.mxu0 0
      %318 = vmatmul.mubr.bf16.gmra.mrb[0].mxu0 %v255
      %v319 = vpop.f32.mrb[0].mxu0
      %v320 = vadd.f32 %v200, %v319
      %v321 = vpop.f32.mrb[0].mxu0
      %v322 = vpop.f32.mrb[0].mxu0
      %v323 = vadd.f32 %v200, %v322
      %v324 = vpop.f32.mrb[0].mxu0
      %325 = vmatprep.mubr.bf16.mxu0 0
      %326 = vmatmul.mubr.bf16.gmra.mrb[0].mxu0 %v258
      %v327 = vpop.f32.mrb[0].mxu0
      %v328 = vadd.f32 %v200, %v327
      %v329 = vpop.f32.mrb[0].mxu0
      %v330 = vpop.f32.mrb[0].mxu0
      %v331 = vadd.f32 %v200, %v330
      %v332 = vpop.f32.mrb[0].mxu0
      %333 = vmatprep.mubr.bf16.mxu0 0
      %334 = vmatmul.mubr.bf16.gmra.mrb[0].mxu0 %v261
      %v335 = vpop.f32.mrb[0].mxu0
      %v336 = vadd.f32 %v200, %v335
      %v337 = vpop.f32.mrb[0].mxu0
      %v338 = vpop.f32.mrb[0].mxu0
      %v339 = vadd.f32 %v200, %v338
      %v340 = vpop.f32.mrb[0].mxu0
      %341 = vmatprep.mubr.bf16.mxu0 0
      %342 = vmatmul.mubr.bf16.gmra.mrb[0].mxu0 %v264
      %v343 = vpop.f32.mrb[0].mxu0
      %v344 = vadd.f32 %v200, %v343
      %v345 = vpop.f32.mrb[0].mxu0
      %v346 = vpop.f32.mrb[0].mxu0
      %v347 = vadd.f32 %v200, %v346
      %v348 = vpop.f32.mrb[0].mxu0
      %349 = vmatprep.mubr.bf16.mxu0 0
      %350 = vmatmul.mubr.bf16.gmra.mrb[0].mxu0 %v267
      %v351 = vpop.f32.mrb[0].mxu0
      %v352 = vadd.f32 %v200, %v351
      %v353 = vpop.f32.mrb[0].mxu0
      %v354 = vpop.f32.mrb[0].mxu0
      %v355 = vadd.f32 %v200, %v354
      %v356 = vpop.f32.mrb[0].mxu0
      %357 = vmatprep.mubr.bf16.mxu0 0
      %358 = vmatmul.mubr.bf16.gmra.mrb[0].mxu0 %v270
      %v359 = vpop.f32.mrb[0].mxu0
      %v360 = vadd.f32 %v200, %v359
      %v361 = vpop.f32.mrb[0].mxu0
      %v362 = vpop.f32.mrb[0].mxu0
      %v363 = vadd.f32 %v200, %v362
      %v364 = vpop.f32.mrb[0].mxu0
      %365 = vmatprep.mubr.bf16.mxu0 0
      %366 = vmatmul.mubr.bf16.gmra.mrb[0].mxu0 %v273
      %v367 = vpop.f32.mrb[0].mxu0
      %v368 = vadd.f32 %v200, %v367
      %v369 = vpop.f32.mrb[0].mxu0
      %v370 = vpop.f32.mrb[0].mxu0
      %v371 = vadd.f32 %v200, %v370
      %v372 = vpop.f32.mrb[0].mxu0
      %373 = vmatprep.mubr.bf16.mxu0 0
      %374 = vmatmul.mubr.bf16.gmra.mrb[0].mxu0 %v276
      %v375 = vpop.f32.mrb[0].mxu0
      %v376 = vadd.f32 %v200, %v375
      %v377 = vpop.f32.mrb[0].mxu0
      %v378 = vpop.f32.mrb[0].mxu0
      %v379 = vadd.f32 %v200, %v378
      %v380 = vpop.f32.mrb[0].mxu0
      %381 = vdwg.mxu0
      %v382 = vmax.f32 %v320, 0.0
      %v383 = vmax.f32 %v323, 0.0
      %v384 = vmax.f32 %v328, 0.0
      %v385 = vmax.f32 %v331, 0.0
      %v386 = vmax.f32 %v336, 0.0
      %v387 = vmax.f32 %v339, 0.0
      %v388 = vmax.f32 %v344, 0.0
      %v389 = vmax.f32 %v347, 0.0
      %v390 = vmax.f32 %v352, 0.0
      %v391 = vmax.f32 %v355, 0.0
      %v392 = vmax.f32 %v360, 0.0
      %v393 = vmax.f32 %v363, 0.0
      %v394 = vmax.f32 %v368, 0.0
      %v395 = vmax.f32 %v371, 0.0
      %v396 = vmax.f32 %v376, 0.0
      %v397 = vmax.f32 %v379, 0.0
      %v398 = vpack.c.bf16 %v383, %v382
      %v399 = vpack.c.bf16 %v385, %v384
      %v400 = vpack.c.bf16 %v387, %v386
      %v401 = vpack.c.bf16 %v389, %v388
      %v402 = vpack.c.bf16 %v391, %v390
      %v403 = vpack.c.bf16 %v393, %v392
      %v404 = vpack.c.bf16 %v395, %v394
      %v405 = vpack.c.bf16 %v397, %v396
      %v414 = vunpack.c.l.b16 %v398
      %v415 = vunpack.c.h.b16 %v398
      %v416 = vunpack.c.l.b16 %v399
      %v417 = vunpack.c.h.b16 %v399
      %v418 = vunpack.c.l.b16 %v400
      %v419 = vunpack.c.h.b16 %v400
      %v420 = vunpack.c.l.b16 %v401
      %v421 = vunpack.c.h.b16 %v401
      %v422 = vunpack.c.l.b16 %v402
      %v423 = vunpack.c.h.b16 %v402
      %v424 = vunpack.c.l.b16 %v403
      %v425 = vunpack.c.h.b16 %v403
      %v426 = vunpack.c.l.b16 %v404
      %v427 = vunpack.c.h.b16 %v404
      %v428 = vunpack.c.l.b16 %v405
      %v429 = vunpack.c.h.b16 %v405
      %v430 = vpack.c.b16 %v414, %v414
      %v431 = vpack.c.b16 %v415, %v415
      %v432 = vpack.c.b16 %v416, %v416
      %v433 = vpack.c.b16 %v417, %v417
      %v434 = vpack.c.b16 %v418, %v418
      %v435 = vpack.c.b16 %v419, %v419
      %v436 = vpack.c.b16 %v420, %v420
      %v437 = vpack.c.b16 %v421, %v421
      %v438 = vpack.c.b16 %v422, %v422
      %v439 = vpack.c.b16 %v423, %v423
      %v440 = vpack.c.b16 %v424, %v424
      %v441 = vpack.c.b16 %v425, %v425
      %v442 = vpack.c.b16 %v426, %v426
      %v443 = vpack.c.b16 %v427, %v427
      %v444 = vpack.c.b16 %v428, %v428
      %v445 = vpack.c.b16 %v429, %v429
      %vm462 = vcmask 60416
      %463 = vst.msk [vmem:[%s172] sm:$0xf] %vm462, %v430
      %464 = vst.msk [vmem:[%s172 + $0x4] sm:$0xf] %vm462, %v431
      %465 = vst.msk [vmem:[%s172 + $0x8] sm:$0xf] %vm462, %v432
      %466 = vst.msk [vmem:[%s172 + $0xc] sm:$0xf] %vm462, %v433
      %467 = vst.msk [vmem:[%s172 + $0x10] sm:$0xf] %vm462, %v434
      %468 = vst.msk [vmem:[%s172 + $0x14] sm:$0xf] %vm462, %v435
      %469 = vst.msk [vmem:[%s172 + $0x18] sm:$0xf] %vm462, %v436
      %470 = vst.msk [vmem:[%s172 + $0x1c] sm:$0xf] %vm462, %v437
      %471 = vst.msk [vmem:[%s172 + $0x20] sm:$0xf] %vm462, %v438
      %472 = vst.msk [vmem:[%s172 + $0x24] sm:$0xf] %vm462, %v439
      %473 = vst.msk [vmem:[%s172 + $0x28] sm:$0xf] %vm462, %v440
      %474 = vst.msk [vmem:[%s172 + $0x2c] sm:$0xf] %vm462, %v441
      %475 = vst.msk [vmem:[%s172 + $0x30] sm:$0xf] %vm462, %v442
      %476 = vst.msk [vmem:[%s172 + $0x34] sm:$0xf] %vm462, %v443
      %477 = vst.msk [vmem:[%s172 + $0x38] sm:$0xf] %vm462, %v444
      %478 = vst.msk [vmem:[%s172 + $0x3c] sm:$0xf] %vm462, %v445
      %s479 = smul.u32 16, %s14
      %p480 = scmp.lt.s32.totalorder %s479, 63
      %s481 = scalar_select %p480, %s479, 63
      %s482 = smul.addr %s481, 4
      %s483 = scalar_lea.vmem %s3, %s482
      // Predicated region
      $region33: #{yolo_forward.10} parent=31 // pred_check
        %p484 = pneg %p100
      $region34: #{yolo_forward.10} parent=31 // pred_check_branch
        %486 = sbr.rel (%p484) target = $region36
      $region35: #{yolo_forward.10} parent=31 // pred_region
        %s487 = smul.u32 16, %s14
      $region36: #{yolo_forward.10} parent=31 // pred_fallthru
        _
    $region32: #{yolo_forward.10} parent=5 // pred_fallthru
      _
    %p488 = scmp.le.s32.totalorder 2, %s9
    // Predicated region
    $region37: #{yolo_forward.10} parent=5 // pred_check
      %p489 = pneg %p488
    $region38: #{yolo_forward.10} parent=5 // pred_check_branch
      %491 = sbr.rel (%p489) target = $region40
    $region39: #{yolo_forward.10} parent=5 // pred_region
      %s492 = ssub.s32 %s9, 2
      // Predicated region
      $region41: #{yolo_forward.10} parent=39 // pred_check
        %p493 = pneg %p106
      $region42: #{yolo_forward.10} parent=39 // pred_check_branch
        %495 = sbr.rel (%p493) target = $region44
      $region43: #{yolo_forward.10} parent=39 // pred_region
        %s496 = smul.u32 16, %s15
        %p497 = scmp.lt.s32.totalorder %s496, 63
        %s498 = scalar_select %p497, %s496, 63
        %s499 = smul.addr %s498, 4
        %s500 = scalar_lea.vmem %s3, %s499
      $region44: #{yolo_forward.10} parent=39 // pred_fallthru
        _
    $region40: #{yolo_forward.10} parent=5 // pred_fallthru
      _
  $region6: #{yolo_forward.10} parent=0 // loop_footer
    %s13 = sadd.s32 1, %s9
  $region7: #{yolo_forward.10} parent=0 // loop_footer_branch
    %8 = sbr.rel target = $region3
  $region8: #{yolo_forward.10} parent=0 // loop_exit
    _

// kernel: yolo_forward.11
$region0: #{yolo_forward.11}
  #allocation0 [shape = 'u32[]', space=smem, size = 0x4, offset = 0x4, fixed_abs, tag = 'smem constant byte address 0x4 - core index']
  #allocation1 [shape = 'u32[144,128]{1,0:T(1,128)}', space=vmem, size = 0x12000, scoped, tag = 'internal scratch']
  %s0 = inlined_call_operand.vmem [shape: bf16[128,72], index: 0, kind: input, shape index: {}]
  %s1 = inlined_call_operand.vmem [shape: bf16[72,16], index: 1, kind: input, shape index: {}]
  %s2 = inlined_call_operand.vmem [shape: f32[1,16], index: 2, kind: input, shape index: {}]
  %s3 = inlined_call_operand.vmem [shape: bf16[128,16], index: 3, kind: output, shape index: {}]
  %s4 = sld [smem:[#allocation0]]
  $region22: #{yolo_forward.11} parent=0
    _
  %s6 = ssub.s32 1, %s4
  %s7 = scalar_select 0, %s6, %s4
  // Predicated region
  $region2: #{yolo_forward.11} parent=0 // pred_check
    _
  $region3: #{yolo_forward.11} parent=0 // pred_check_branch
    %9 = sbr.rel (0) target = $region5
  $region4: #{yolo_forward.11} parent=0 // pred_region
    _
  $region5: #{yolo_forward.11} parent=0 // pred_fallthru
    _
  // Predicated region
  $region6: #{yolo_forward.11} parent=0 // pred_check
    _
  $region7: #{yolo_forward.11} parent=0 // pred_check_branch
    %11 = sbr.rel (0) target = $region9
  $region8: #{yolo_forward.11} parent=0 // pred_region
    _
  $region9: #{yolo_forward.11} parent=0 // pred_fallthru
    _
  // Predicated region
  $region10: #{yolo_forward.11} parent=0 // pred_check
    _
  $region11: #{yolo_forward.11} parent=0 // pred_check_branch
    %13 = sbr.rel (0) target = $region13
  $region12: #{yolo_forward.11} parent=0 // pred_region
    _
  $region13: #{yolo_forward.11} parent=0 // pred_fallthru
    _
  %v15 = vld [vmem:[%s0] sm:$0xf]
  %v16 = vld [vmem:[%s0 + $0x4] sm:$0xf]
  %v17 = vld [vmem:[%s0 + $0x8] sm:$0xf]
  %v18 = vld [vmem:[%s0 + $0xc] sm:$0xf]
  %v19 = vld [vmem:[%s0 + $0x10] sm:$0xf]
  %v20 = vld [vmem:[%s0 + $0x14] sm:$0xf]
  %v21 = vld [vmem:[%s0 + $0x18] sm:$0xf]
  %v22 = vld [vmem:[%s0 + $0x1c] sm:$0xf]
  %v23 = vld [vmem:[%s0 + $0x20] sm:$0xf]
  %v24 = vld [vmem:[%s0 + $0x24] sm:$0xf]
  %v25 = vld [vmem:[%s0 + $0x28] sm:$0xf]
  %v26 = vld [vmem:[%s0 + $0x2c] sm:$0xf]
  %v27 = vld [vmem:[%s0 + $0x30] sm:$0xf]
  %v28 = vld [vmem:[%s0 + $0x34] sm:$0xf]
  %v29 = vld [vmem:[%s0 + $0x38] sm:$0xf]
  %v30 = vld [vmem:[%s0 + $0x3c] sm:$0xf]
  %v31 = vld [vmem:[%s1] sm:$0xf]
  %v32 = vld [vmem:[%s1 + $0x4] sm:$0xf]
  %v33 = vld [vmem:[%s1 + $0x8] sm:$0xf]
  %v34 = vld [vmem:[%s1 + $0xc] sm:$0xf]
  %v35 = vld [vmem:[%s1 + $0x10] sm:$0xf]
  %v36 = vld [vmem:[%s1 + $0x14] sm:$0xf]
  %v37 = vld [vmem:[%s1 + $0x18] sm:$0xf]
  %v38 = vld [vmem:[%s1 + $0x1c] sm:$0xf]
  %v39 = vld [vmem:[%s1 + $0x20] sm:$0xf]
  %v40 = vld [vmem:[%s2] sm:$0x1]
  %v42 = vlaneseq
  %v43 = vshrl.u32 %v42, 7
  %v44 = vsub.s32 0, %v43
  %v45 = vrot.slane %v40, %v44
  %v63 = vunpack.c.l.b16 %v15
  %v64 = vunpack.c.l.b16 %v16
  %v65 = vunpack.c.l.b16 %v17
  %v66 = vunpack.c.l.b16 %v18
  %v67 = vunpack.c.l.b16 %v19
  %v68 = vunpack.c.l.b16 %v20
  %v69 = vunpack.c.l.b16 %v21
  %v70 = vunpack.c.l.b16 %v22
  %v71 = vunpack.c.l.b16 %v23
  %v72 = vunpack.c.l.b16 %v24
  %v73 = vunpack.c.l.b16 %v25
  %v74 = vunpack.c.l.b16 %v26
  %v75 = vunpack.c.l.b16 %v27
  %v76 = vunpack.c.l.b16 %v28
  %v77 = vunpack.c.l.b16 %v29
  %v78 = vunpack.c.l.b16 %v30
  %v79 = vpack.c.b16 %v64, %v63
  %v80 = vpack.c.b16 %v66, %v65
  %v81 = vpack.c.b16 %v68, %v67
  %v82 = vpack.c.b16 %v70, %v69
  %v83 = vpack.c.b16 %v72, %v71
  %v84 = vpack.c.b16 %v74, %v73
  %v85 = vpack.c.b16 %v76, %v75
  %v86 = vpack.c.b16 %v78, %v77
  %v96 = vunpack.c.l.b16 %v31
  %v97 = vunpack.c.l.b16 %v32
  %v98 = vunpack.c.l.b16 %v33
  %v99 = vunpack.c.l.b16 %v34
  %v100 = vunpack.c.l.b16 %v35
  %v101 = vunpack.c.l.b16 %v36
  %v102 = vunpack.c.l.b16 %v37
  %v103 = vunpack.c.l.b16 %v38
  %v104 = vunpack.c.l.b16 %v39
  %v105 = vpack.c.b16 %v97, %v96
  %v106 = vpack.c.b16 %v99, %v98
  %v107 = vpack.c.b16 %v101, %v100
  %v108 = vpack.c.b16 %v103, %v102
  %v109 = vpack.c.b16 %v104, %v104
  %vm114 = vcmask 588800
  %v116 = vsel %vm114, %v79, 0
  %v119 = vsel %vm114, %v80, 0
  %v122 = vsel %vm114, %v81, 0
  %v125 = vsel %vm114, %v82, 0
  %v128 = vsel %vm114, %v83, 0
  %v131 = vsel %vm114, %v84, 0
  %v134 = vsel %vm114, %v85, 0
  %v137 = vsel %vm114, %v86, 0
  %vm139 = vcmask 1043456
  %v141 = vsel %vm139, %v109, 0
  %143 = vmatprep.subr.bf16.mxu0 0
  %144 = vmatpush1.bf16.msra.mxu0 %v105
  %145 = vmatprep.subr.bf16.mxu0 0
  %146 = vmatpush1.bf16.msra.mxu0 %v106
  %147 = vmatprep.subr.bf16.mxu0 0
  %148 = vmatpush1.bf16.msra.mxu0 %v107
  %149 = vmatprep.subr.bf16.mxu0 0
  %150 = vmatpush1.bf16.msra.mxu0 %v108
  %151 = vmatprep.subr.bf16.mxu0 0
  %152 = vmatpush1.bf16.msra.mxu0 %v141
  %153 = vmatprep.subr.bf16.mxu0 0
  %154 = vmatpush1.bf16.msra.mxu0 0
  %155 = vmatprep.subr.bf16.mxu0 0
  %156 = vmatpush1.bf16.msra.mxu0 0
  %157 = vmatprep.subr.bf16.mxu0 0
  %158 = vmatpush1.bf16.msra.mxu0 0
  %159 = vmatprep.subr.bf16.mxu0 0
  %160 = vmatpush1.bf16.msra.mxu0 0
  %161 = vmatprep.subr.bf16.mxu0 0
  %162 = vmatpush1.bf16.msra.mxu0 0
  %163 = vmatprep.subr.bf16.mxu0 0
  %164 = vmatpush1.bf16.msra.mxu0 0
  %165 = vmatprep.subr.bf16.mxu0 0
  %166 = vmatpush1.bf16.msra.mxu0 0
  %167 = vmatprep.subr.bf16.mxu0 0
  %168 = vmatpush1.bf16.msra.mxu0 0
  %169 = vmatprep.subr.bf16.mxu0 0
  %170 = vmatpush1.bf16.msra.mxu0 0
  %171 = vmatprep.subr.bf16.mxu0 0
  %172 = vmatpush1.bf16.msra.mxu0 0
  %173 = vmatprep.subr.bf16.mxu0 0
  %174 = vmatpush1.bf16.msra.mxu0 0
  %175 = vmatprep.mubr.bf16.mxu0 0
  %176 = vmatmul.mubr.bf16.gmra.mrb[0].mxu0 %v116
  %v177 = vpop.f32.mrb[0].mxu0
  %v178 = vadd.f32 %v45, %v177
  %v179 = vpop.f32.mrb[0].mxu0
  %v180 = vpop.f32.mrb[0].mxu0
  %v181 = vadd.f32 %v45, %v180
  %v182 = vpop.f32.mrb[0].mxu0
  %183 = vmatprep.mubr.bf16.mxu0 0
  %184 = vmatmul.mubr.bf16.gmra.mrb[0].mxu0 %v119
  %v185 = vpop.f32.mrb[0].mxu0
  %v186 = vadd.f32 %v45, %v185
  %v187 = vpop.f32.mrb[0].mxu0
  %v188 = vpop.f32.mrb[0].mxu0
  %v189 = vadd.f32 %v45, %v188
  %v190 = vpop.f32.mrb[0].mxu0
  %191 = vmatprep.mubr.bf16.mxu0 0
  %192 = vmatmul.mubr.bf16.gmra.mrb[0].mxu0 %v122
  %v193 = vpop.f32.mrb[0].mxu0
  %v194 = vadd.f32 %v45, %v193
  %v195 = vpop.f32.mrb[0].mxu0
  %v196 = vpop.f32.mrb[0].mxu0
  %v197 = vadd.f32 %v45, %v196
  %v198 = vpop.f32.mrb[0].mxu0
  %199 = vmatprep.mubr.bf16.mxu0 0
  %200 = vmatmul.mubr.bf16.gmra.mrb[0].mxu0 %v125
  %v201 = vpop.f32.mrb[0].mxu0
  %v202 = vadd.f32 %v45, %v201
  %v203 = vpop.f32.mrb[0].mxu0
  %v204 = vpop.f32.mrb[0].mxu0
  %v205 = vadd.f32 %v45, %v204
  %v206 = vpop.f32.mrb[0].mxu0
  %207 = vmatprep.mubr.bf16.mxu0 0
  %208 = vmatmul.mubr.bf16.gmra.mrb[0].mxu0 %v128
  %v209 = vpop.f32.mrb[0].mxu0
  %v210 = vadd.f32 %v45, %v209
  %v211 = vpop.f32.mrb[0].mxu0
  %v212 = vpop.f32.mrb[0].mxu0
  %v213 = vadd.f32 %v45, %v212
  %v214 = vpop.f32.mrb[0].mxu0
  %215 = vmatprep.mubr.bf16.mxu0 0
  %216 = vmatmul.mubr.bf16.gmra.mrb[0].mxu0 %v131
  %v217 = vpop.f32.mrb[0].mxu0
  %v218 = vadd.f32 %v45, %v217
  %v219 = vpop.f32.mrb[0].mxu0
  %v220 = vpop.f32.mrb[0].mxu0
  %v221 = vadd.f32 %v45, %v220
  %v222 = vpop.f32.mrb[0].mxu0
  %223 = vmatprep.mubr.bf16.mxu0 0
  %224 = vmatmul.mubr.bf16.gmra.mrb[0].mxu0 %v134
  %v225 = vpop.f32.mrb[0].mxu0
  %v226 = vadd.f32 %v45, %v225
  %v227 = vpop.f32.mrb[0].mxu0
  %v228 = vpop.f32.mrb[0].mxu0
  %v229 = vadd.f32 %v45, %v228
  %v230 = vpop.f32.mrb[0].mxu0
  %231 = vmatprep.mubr.bf16.mxu0 0
  %232 = vmatmul.mubr.bf16.gmra.mrb[0].mxu0 %v137
  %v233 = vpop.f32.mrb[0].mxu0
  %v234 = vadd.f32 %v45, %v233
  %v235 = vpop.f32.mrb[0].mxu0
  %v236 = vpop.f32.mrb[0].mxu0
  %v237 = vadd.f32 %v45, %v236
  %v238 = vpop.f32.mrb[0].mxu0
  %239 = vdwg.mxu0
  %v240 = vmax.f32 %v178, 0.0
  %v241 = vmax.f32 %v181, 0.0
  %v242 = vmax.f32 %v186, 0.0
  %v243 = vmax.f32 %v189, 0.0
  %v244 = vmax.f32 %v194, 0.0
  %v245 = vmax.f32 %v197, 0.0
  %v246 = vmax.f32 %v202, 0.0
  %v247 = vmax.f32 %v205, 0.0
  %v248 = vmax.f32 %v210, 0.0
  %v249 = vmax.f32 %v213, 0.0
  %v250 = vmax.f32 %v218, 0.0
  %v251 = vmax.f32 %v221, 0.0
  %v252 = vmax.f32 %v226, 0.0
  %v253 = vmax.f32 %v229, 0.0
  %v254 = vmax.f32 %v234, 0.0
  %v255 = vmax.f32 %v237, 0.0
  %v256 = vpack.c.bf16 %v241, %v240
  %v257 = vpack.c.bf16 %v243, %v242
  %v258 = vpack.c.bf16 %v245, %v244
  %v259 = vpack.c.bf16 %v247, %v246
  %v260 = vpack.c.bf16 %v249, %v248
  %v261 = vpack.c.bf16 %v251, %v250
  %v262 = vpack.c.bf16 %v253, %v252
  %v263 = vpack.c.bf16 %v255, %v254
  %v272 = vunpack.c.l.b16 %v256
  %v273 = vunpack.c.h.b16 %v256
  %v274 = vunpack.c.l.b16 %v257
  %v275 = vunpack.c.h.b16 %v257
  %v276 = vunpack.c.l.b16 %v258
  %v277 = vunpack.c.h.b16 %v258
  %v278 = vunpack.c.l.b16 %v259
  %v279 = vunpack.c.h.b16 %v259
  %v280 = vunpack.c.l.b16 %v260
  %v281 = vunpack.c.h.b16 %v260
  %v282 = vunpack.c.l.b16 %v261
  %v283 = vunpack.c.h.b16 %v261
  %v284 = vunpack.c.l.b16 %v262
  %v285 = vunpack.c.h.b16 %v262
  %v286 = vunpack.c.l.b16 %v263
  %v287 = vunpack.c.h.b16 %v263
  %v288 = vpack.c.b16 %v272, %v272
  %v289 = vpack.c.b16 %v273, %v273
  %v290 = vpack.c.b16 %v274, %v274
  %v291 = vpack.c.b16 %v275, %v275
  %v292 = vpack.c.b16 %v276, %v276
  %v293 = vpack.c.b16 %v277, %v277
  %v294 = vpack.c.b16 %v278, %v278
  %v295 = vpack.c.b16 %v279, %v279
  %v296 = vpack.c.b16 %v280, %v280
  %v297 = vpack.c.b16 %v281, %v281
  %v298 = vpack.c.b16 %v282, %v282
  %v299 = vpack.c.b16 %v283, %v283
  %v300 = vpack.c.b16 %v284, %v284
  %v301 = vpack.c.b16 %v285, %v285
  %v302 = vpack.c.b16 %v286, %v286
  %v303 = vpack.c.b16 %v287, %v287
  %vm320 = vcmask 125952
  %321 = vst.msk [vmem:[%s3] sm:$0xf] %vm320, %v288
  %322 = vst.msk [vmem:[%s3 + $0x4] sm:$0xf] %vm320, %v289
  %323 = vst.msk [vmem:[%s3 + $0x8] sm:$0xf] %vm320, %v290
  %324 = vst.msk [vmem:[%s3 + $0xc] sm:$0xf] %vm320, %v291
  %325 = vst.msk [vmem:[%s3 + $0x10] sm:$0xf] %vm320, %v292
  %326 = vst.msk [vmem:[%s3 + $0x14] sm:$0xf] %vm320, %v293
  %327 = vst.msk [vmem:[%s3 + $0x18] sm:$0xf] %vm320, %v294
  %328 = vst.msk [vmem:[%s3 + $0x1c] sm:$0xf] %vm320, %v295
  %329 = vst.msk [vmem:[%s3 + $0x20] sm:$0xf] %vm320, %v296
  %330 = vst.msk [vmem:[%s3 + $0x24] sm:$0xf] %vm320, %v297
  %331 = vst.msk [vmem:[%s3 + $0x28] sm:$0xf] %vm320, %v298
  %332 = vst.msk [vmem:[%s3 + $0x2c] sm:$0xf] %vm320, %v299
  %333 = vst.msk [vmem:[%s3 + $0x30] sm:$0xf] %vm320, %v300
  %334 = vst.msk [vmem:[%s3 + $0x34] sm:$0xf] %vm320, %v301
  %335 = vst.msk [vmem:[%s3 + $0x38] sm:$0xf] %vm320, %v302
  %336 = vst.msk [vmem:[%s3 + $0x3c] sm:$0xf] %vm320, %v303
  // Predicated region
  $region14: #{yolo_forward.11} parent=0 // pred_check
    _
  $region15: #{yolo_forward.11} parent=0 // pred_check_branch
    %338 = sbr.rel (0) target = $region17
  $region16: #{yolo_forward.11} parent=0 // pred_region
    _
  $region17: #{yolo_forward.11} parent=0 // pred_fallthru
    _
  // Predicated region
  $region18: #{yolo_forward.11} parent=0 // pred_check
    _
  $region19: #{yolo_forward.11} parent=0 // pred_check_branch
    %340 = sbr.rel (0) target = $region21
  $region20: #{yolo_forward.11} parent=0 // pred_region
    _
  $region21: #{yolo_forward.11} parent=0 // pred_fallthru
    _

// kernel: yolo_forward.12
$region0: #{yolo_forward.12}
  #allocation0 [shape = 'u32[]', space=smem, size = 0x4, offset = 0x4, fixed_abs, tag = 'smem constant byte address 0x4 - core index']
  #allocation1 [shape = 'u32[144,128]{1,0:T(1,128)}', space=vmem, size = 0x12000, scoped, tag = 'internal scratch']
  %s0 = inlined_call_operand.vmem [shape: bf16[32,144], index: 0, kind: input, shape index: {}]
  %s1 = inlined_call_operand.vmem [shape: bf16[144,32], index: 1, kind: input, shape index: {}]
  %s2 = inlined_call_operand.vmem [shape: f32[1,32], index: 2, kind: input, shape index: {}]
  %s3 = inlined_call_operand.vmem [shape: bf16[32,32], index: 3, kind: output, shape index: {}]
  %s4 = sld [smem:[#allocation0]]
  $region22: #{yolo_forward.12} parent=0
    _
  %s6 = ssub.s32 1, %s4
  %s7 = scalar_select 0, %s6, %s4
  // Predicated region
  $region2: #{yolo_forward.12} parent=0 // pred_check
    _
  $region3: #{yolo_forward.12} parent=0 // pred_check_branch
    %9 = sbr.rel (0) target = $region5
  $region4: #{yolo_forward.12} parent=0 // pred_region
    _
  $region5: #{yolo_forward.12} parent=0 // pred_fallthru
    _
  // Predicated region
  $region6: #{yolo_forward.12} parent=0 // pred_check
    _
  $region7: #{yolo_forward.12} parent=0 // pred_check_branch
    %11 = sbr.rel (0) target = $region9
  $region8: #{yolo_forward.12} parent=0 // pred_region
    _
  $region9: #{yolo_forward.12} parent=0 // pred_fallthru
    _
  // Predicated region
  $region10: #{yolo_forward.12} parent=0 // pred_check
    _
  $region11: #{yolo_forward.12} parent=0 // pred_check_branch
    %13 = sbr.rel (0) target = $region13
  $region12: #{yolo_forward.12} parent=0 // pred_region
    _
  $region13: #{yolo_forward.12} parent=0 // pred_fallthru
    _
  %v15 = vld [vmem:[%s0] sm:$0xff]
  %v16 = vld [vmem:[%s0 + $0x8] sm:$0xff]
  %v17 = vld [vmem:[%s0 + $0x10] sm:$0xff]
  %v18 = vld [vmem:[%s0 + $0x18] sm:$0xff]
  %v19 = vld [vmem:[%s1] sm:$0xf]
  %v20 = vld [vmem:[%s1 + $0x4] sm:$0xf]
  %v21 = vld [vmem:[%s1 + $0x8] sm:$0xf]
  %v22 = vld [vmem:[%s1 + $0xc] sm:$0xf]
  %v23 = vld [vmem:[%s1 + $0x10] sm:$0xf]
  %v24 = vld [vmem:[%s1 + $0x14] sm:$0xf]
  %v25 = vld [vmem:[%s1 + $0x18] sm:$0xf]
  %v26 = vld [vmem:[%s1 + $0x1c] sm:$0xf]
  %v27 = vld [vmem:[%s1 + $0x20] sm:$0xf]
  %v28 = vld [vmem:[%s1 + $0x24] sm:$0xf]
  %v29 = vld [vmem:[%s1 + $0x28] sm:$0xf]
  %v30 = vld [vmem:[%s1 + $0x2c] sm:$0xf]
  %v31 = vld [vmem:[%s1 + $0x30] sm:$0xf]
  %v32 = vld [vmem:[%s1 + $0x34] sm:$0xf]
  %v33 = vld [vmem:[%s1 + $0x38] sm:$0xf]
  %v34 = vld [vmem:[%s1 + $0x3c] sm:$0xf]
  %v35 = vld [vmem:[%s1 + $0x40] sm:$0xf]
  %v36 = vld [vmem:[%s1 + $0x44] sm:$0xf]
  %v37 = vld [vmem:[%s2] sm:$0x1]
  %v39 = vlaneseq
  %v40 = vshrl.u32 %v39, 7
  %v41 = vsub.s32 0, %v40
  %v42 = vrot.slane %v37, %v41
  %v48 = vunpack.c.l.b16 %v15
  %v49 = vunpack.c.h.b16 %v15
  %v50 = vunpack.c.l.b16 %v16
  %v51 = vunpack.c.h.b16 %v16
  %v52 = vunpack.c.l.b16 %v17
  %v53 = vunpack.c.h.b16 %v17
  %v54 = vunpack.c.l.b16 %v18
  %v55 = vunpack.c.h.b16 %v18
  %v56 = vpack.c.b16 %v50, %v48
  %v57 = vpack.c.b16 %v51, %v49
  %v58 = vpack.c.b16 %v54, %v52
  %v59 = vpack.c.b16 %v55, %v53
  %v80 = vunpack.c.l.b16 %v19
  %v81 = vunpack.c.l.b16 %v20
  %v82 = vunpack.c.l.b16 %v21
  %v83 = vunpack.c.l.b16 %v22
  %v84 = vunpack.c.l.b16 %v23
  %v85 = vunpack.c.l.b16 %v24
  %v86 = vunpack.c.l.b16 %v25
  %v87 = vunpack.c.l.b16 %v26
  %v88 = vunpack.c.l.b16 %v27
  %v89 = vunpack.c.l.b16 %v28
  %v90 = vunpack.c.l.b16 %v29
  %v91 = vunpack.c.l.b16 %v30
  %v92 = vunpack.c.l.b16 %v31
  %v93 = vunpack.c.l.b16 %v32
  %v94 = vunpack.c.l.b16 %v33
  %v95 = vunpack.c.l.b16 %v34
  %v96 = vunpack.c.l.b16 %v35
  %v97 = vunpack.c.l.b16 %v36
  %v98 = vpack.c.b16 %v81, %v80
  %v99 = vpack.c.b16 %v83, %v82
  %v100 = vpack.c.b16 %v85, %v84
  %v101 = vpack.c.b16 %v87, %v86
  %v102 = vpack.c.b16 %v89, %v88
  %v103 = vpack.c.b16 %v91, %v90
  %v104 = vpack.c.b16 %v93, %v92
  %v105 = vpack.c.b16 %v95, %v94
  %v106 = vpack.c.b16 %v97, %v96
  %vm116 = vcmask 130048
  %v118 = vsel %vm116, %v57, 0
  %v121 = vsel %vm116, %v59, 0
  %123 = vmatprep.subr.bf16.mxu0 0
  %124 = vmatpush1.bf16.msra.mxu0 %v98
  %125 = vmatprep.subr.bf16.mxu0 0
  %126 = vmatpush1.bf16.msra.mxu0 %v99
  %127 = vmatprep.subr.bf16.mxu0 0
  %128 = vmatpush1.bf16.msra.mxu0 %v100
  %129 = vmatprep.subr.bf16.mxu0 0
  %130 = vmatpush1.bf16.msra.mxu0 %v101
  %131 = vmatprep.subr.bf16.mxu0 0
  %132 = vmatpush1.bf16.msra.mxu0 %v102
  %133 = vmatprep.subr.bf16.mxu0 0
  %134 = vmatpush1.bf16.msra.mxu0 %v103
  %135 = vmatprep.subr.bf16.mxu0 0
  %136 = vmatpush1.bf16.msra.mxu0 %v104
  %137 = vmatprep.subr.bf16.mxu0 0
  %138 = vmatpush1.bf16.msra.mxu0 %v105
  %139 = vmatprep.subr.bf16.mxu0 0
  %140 = vmatpush1.bf16.msra.mxu0 %v106
  %141 = vmatprep.subr.bf16.mxu0 0
  %142 = vmatpush1.bf16.msra.mxu0 0
  %143 = vmatprep.subr.bf16.mxu0 0
  %144 = vmatpush1.bf16.msra.mxu0 0
  %145 = vmatprep.subr.bf16.mxu0 0
  %146 = vmatpush1.bf16.msra.mxu0 0
  %147 = vmatprep.subr.bf16.mxu0 0
  %148 = vmatpush1.bf16.msra.mxu0 0
  %149 = vmatprep.subr.bf16.mxu0 0
  %150 = vmatpush1.bf16.msra.mxu0 0
  %151 = vmatprep.subr.bf16.mxu0 0
  %152 = vmatpush1.bf16.msra.mxu0 0
  %153 = vmatprep.subr.bf16.mxu0 0
  %154 = vmatpush1.bf16.msra.mxu0 0
  %155 = vmatprep.mubr.bf16.mxu0 %v118
  %156 = vmatmul.mubr.bf16.gmra.mrb[0].mxu0 %v56
  %v157 = vpop.f32.mrb[0].mxu0
  %v158 = vadd.f32 %v42, %v157
  %v159 = vpop.f32.mrb[0].mxu0
  %v160 = vpop.f32.mrb[0].mxu0
  %v161 = vadd.f32 %v42, %v160
  %v162 = vpop.f32.mrb[0].mxu0
  %163 = vmatprep.mubr.bf16.mxu0 %v121
  %164 = vmatmul.mubr.bf16.gmra.mrb[0].mxu0 %v58
  %v165 = vpop.f32.mrb[0].mxu0
  %v166 = vadd.f32 %v42, %v165
  %v167 = vpop.f32.mrb[0].mxu0
  %v168 = vpop.f32.mrb[0].mxu0
  %v169 = vadd.f32 %v42, %v168
  %v170 = vpop.f32.mrb[0].mxu0
  %171 = vdwg.mxu0
  %v172 = vmax.f32 %v158, 0.0
  %v173 = vmax.f32 %v161, 0.0
  %v174 = vmax.f32 %v166, 0.0
  %v175 = vmax.f32 %v169, 0.0
  %v176 = vpack.c.bf16 %v173, %v172
  %v177 = vpack.c.bf16 %v175, %v174
  %v180 = vunpack.c.l.b16 %v176
  %v181 = vunpack.c.h.b16 %v176
  %v182 = vunpack.c.l.b16 %v177
  %v183 = vunpack.c.h.b16 %v177
  %v184 = vpack.c.b16 %v180, %v180
  %v185 = vpack.c.b16 %v181, %v181
  %v186 = vpack.c.b16 %v182, %v182
  %v187 = vpack.c.b16 %v183, %v183
  %vm192 = vcmask 257024
  %193 = vst.msk [vmem:[%s3] sm:$0xf] %vm192, %v184
  %194 = vst.msk [vmem:[%s3 + $0x4] sm:$0xf] %vm192, %v185
  %195 = vst.msk [vmem:[%s3 + $0x8] sm:$0xf] %vm192, %v186
  %196 = vst.msk [vmem:[%s3 + $0xc] sm:$0xf] %vm192, %v187
  // Predicated region
  $region14: #{yolo_forward.12} parent=0 // pred_check
    _
  $region15: #{yolo_forward.12} parent=0 // pred_check_branch
    %198 = sbr.rel (0) target = $region17
  $region16: #{yolo_forward.12} parent=0 // pred_region
    _
  $region17: #{yolo_forward.12} parent=0 // pred_fallthru
    _
  // Predicated region
  $region18: #{yolo_forward.12} parent=0 // pred_check
    _
  $region19: #{yolo_forward.12} parent=0 // pred_check_branch
    %200 = sbr.rel (0) target = $region21
  $region20: #{yolo_forward.12} parent=0 // pred_region
    _
  $region21: #{yolo_forward.12} parent=0 // pred_fallthru
    _

// kernel: yolo_forward.13
$region0: #{yolo_forward.13}
  #allocation0 [shape = 'u32[]', space=smem, size = 0x4, offset = 0x4, fixed_abs, tag = 'smem constant byte address 0x4 - core index']
  #allocation1 [shape = 'u32[144,128]{1,0:T(1,128)}', space=vmem, size = 0x12000, scoped, tag = 'internal scratch']
  %s0 = inlined_call_operand.vmem [shape: bf16[8,288], index: 0, kind: input, shape index: {}]
  %s1 = inlined_call_operand.vmem [shape: bf16[288,64], index: 1, kind: input, shape index: {}]
  %s2 = inlined_call_operand.vmem [shape: f32[1,64], index: 2, kind: input, shape index: {}]
  %s3 = inlined_call_operand.vmem [shape: bf16[8,64], index: 3, kind: output, shape index: {}]
  %s4 = sld [smem:[#allocation0]]
  $region22: #{yolo_forward.13} parent=0
    _
  %s6 = ssub.s32 1, %s4
  %s7 = scalar_select 0, %s6, %s4
  // Predicated region
  $region2: #{yolo_forward.13} parent=0 // pred_check
    _
  $region3: #{yolo_forward.13} parent=0 // pred_check_branch
    %9 = sbr.rel (0) target = $region5
  $region4: #{yolo_forward.13} parent=0 // pred_region
    _
  $region5: #{yolo_forward.13} parent=0 // pred_fallthru
    _
  // Predicated region
  $region6: #{yolo_forward.13} parent=0 // pred_check
    _
  $region7: #{yolo_forward.13} parent=0 // pred_check_branch
    %11 = sbr.rel (0) target = $region9
  $region8: #{yolo_forward.13} parent=0 // pred_region
    _
  $region9: #{yolo_forward.13} parent=0 // pred_fallthru
    _
  // Predicated region
  $region10: #{yolo_forward.13} parent=0 // pred_check
    _
  $region11: #{yolo_forward.13} parent=0 // pred_check_branch
    %13 = sbr.rel (0) target = $region13
  $region12: #{yolo_forward.13} parent=0 // pred_region
    _
  $region13: #{yolo_forward.13} parent=0 // pred_fallthru
    _
  %v15 = vld [vmem:[%s0] sm:$0xff]
  %v16 = vld [vmem:[%s0 + $0x8] sm:$0xf]
  %v17 = vld [vmem:[%s1] sm:$0xf]
  %v18 = vld [vmem:[%s1 + $0x4] sm:$0xf]
  %v19 = vld [vmem:[%s1 + $0x8] sm:$0xf]
  %v20 = vld [vmem:[%s1 + $0xc] sm:$0xf]
  %v21 = vld [vmem:[%s1 + $0x10] sm:$0xf]
  %v22 = vld [vmem:[%s1 + $0x14] sm:$0xf]
  %v23 = vld [vmem:[%s1 + $0x18] sm:$0xf]
  %v24 = vld [vmem:[%s1 + $0x1c] sm:$0xf]
  %v25 = vld [vmem:[%s1 + $0x20] sm:$0xf]
  %v26 = vld [vmem:[%s1 + $0x24] sm:$0xf]
  %v27 = vld [vmem:[%s1 + $0x28] sm:$0xf]
  %v28 = vld [vmem:[%s1 + $0x2c] sm:$0xf]
  %v29 = vld [vmem:[%s1 + $0x30] sm:$0xf]
  %v30 = vld [vmem:[%s1 + $0x34] sm:$0xf]
  %v31 = vld [vmem:[%s1 + $0x38] sm:$0xf]
  %v32 = vld [vmem:[%s1 + $0x3c] sm:$0xf]
  %v33 = vld [vmem:[%s1 + $0x40] sm:$0xf]
  %v34 = vld [vmem:[%s1 + $0x44] sm:$0xf]
  %v35 = vld [vmem:[%s1 + $0x48] sm:$0xf]
  %v36 = vld [vmem:[%s1 + $0x4c] sm:$0xf]
  %v37 = vld [vmem:[%s1 + $0x50] sm:$0xf]
  %v38 = vld [vmem:[%s1 + $0x54] sm:$0xf]
  %v39 = vld [vmem:[%s1 + $0x58] sm:$0xf]
  %v40 = vld [vmem:[%s1 + $0x5c] sm:$0xf]
  %v41 = vld [vmem:[%s1 + $0x60] sm:$0xf]
  %v42 = vld [vmem:[%s1 + $0x64] sm:$0xf]
  %v43 = vld [vmem:[%s1 + $0x68] sm:$0xf]
  %v44 = vld [vmem:[%s1 + $0x6c] sm:$0xf]
  %v45 = vld [vmem:[%s1 + $0x70] sm:$0xf]
  %v46 = vld [vmem:[%s1 + $0x74] sm:$0xf]
  %v47 = vld [vmem:[%s1 + $0x78] sm:$0xf]
  %v48 = vld [vmem:[%s1 + $0x7c] sm:$0xf]
  %v49 = vld [vmem:[%s1 + $0x80] sm:$0xf]
  %v50 = vld [vmem:[%s1 + $0x84] sm:$0xf]
  %v51 = vld [vmem:[%s1 + $0x88] sm:$0xf]
  %v52 = vld [vmem:[%s1 + $0x8c] sm:$0xf]
  %v53 = vld [vmem:[%s2] sm:$0x1]
  %v55 = vlaneseq
  %v56 = vshrl.u32 %v55, 7
  %v57 = vsub.s32 0, %v56
  %v58 = vrot.slane %v53, %v57
  %v62 = vunpack.c.l.b16 %v15
  %v63 = vunpack.c.h.b16 %v15
  %v64 = vunpack.c.l.b16 %v16
  %v65 = vpack.c.b16 %v62, %v62
  %v66 = vpack.c.b16 %v63, %v63
  %v67 = vpack.c.b16 %v64, %v64
  %v106 = vunpack.c.l.b16 %v17
  %v107 = vunpack.c.l.b16 %v18
  %v108 = vunpack.c.l.b16 %v19
  %v109 = vunpack.c.l.b16 %v20
  %v110 = vunpack.c.l.b16 %v21
  %v111 = vunpack.c.l.b16 %v22
  %v112 = vunpack.c.l.b16 %v23
  %v113 = vunpack.c.l.b16 %v24
  %v114 = vunpack.c.l.b16 %v25
  %v115 = vunpack.c.l.b16 %v26
  %v116 = vunpack.c.l.b16 %v27
  %v117 = vunpack.c.l.b16 %v28
  %v118 = vunpack.c.l.b16 %v29
  %v119 = vunpack.c.l.b16 %v30
  %v120 = vunpack.c.l.b16 %v31
  %v121 = vunpack.c.l.b16 %v32
  %v122 = vunpack.c.l.b16 %v33
  %v123 = vunpack.c.l.b16 %v34
  %v124 = vunpack.c.l.b16 %v35
  %v125 = vunpack.c.l.b16 %v36
  %v126 = vunpack.c.l.b16 %v37
  %v127 = vunpack.c.l.b16 %v38
  %v128 = vunpack.c.l.b16 %v39
  %v129 = vunpack.c.l.b16 %v40
  %v130 = vunpack.c.l.b16 %v41
  %v131 = vunpack.c.l.b16 %v42
  %v132 = vunpack.c.l.b16 %v43
  %v133 = vunpack.c.l.b16 %v44
  %v134 = vunpack.c.l.b16 %v45
  %v135 = vunpack.c.l.b16 %v46
  %v136 = vunpack.c.l.b16 %v47
  %v137 = vunpack.c.l.b16 %v48
  %v138 = vunpack.c.l.b16 %v49
  %v139 = vunpack.c.l.b16 %v50
  %v140 = vunpack.c.l.b16 %v51
  %v141 = vunpack.c.l.b16 %v52
  %v142 = vpack.c.b16 %v107, %v106
  %v143 = vpack.c.b16 %v109, %v108
  %v144 = vpack.c.b16 %v111, %v110
  %v145 = vpack.c.b16 %v113, %v112
  %v146 = vpack.c.b16 %v115, %v114
  %v147 = vpack.c.b16 %v117, %v116
  %v148 = vpack.c.b16 %v119, %v118
  %v149 = vpack.c.b16 %v121, %v120
  %v150 = vpack.c.b16 %v123, %v122
  %v151 = vpack.c.b16 %v125, %v124
  %v152 = vpack.c.b16 %v127, %v126
  %v153 = vpack.c.b16 %v129, %v128
  %v154 = vpack.c.b16 %v131, %v130
  %v155 = vpack.c.b16 %v133, %v132
  %v156 = vpack.c.b16 %v135, %v134
  %v157 = vpack.c.b16 %v137, %v136
  %v158 = vpack.c.b16 %v139, %v138
  %v159 = vpack.c.b16 %v141, %v140
  %vm178 = vcmask 261120
  %v180 = vsel %vm178, %v67, 0
  %182 = vmatprep.subr.bf16.mxu0 0
  %183 = vmatpush1.bf16.msra.mxu0 %v142
  %184 = vmatprep.subr.bf16.mxu0 0
  %185 = vmatpush1.bf16.msra.mxu0 %v143
  %186 = vmatprep.subr.bf16.mxu0 0
  %187 = vmatpush1.bf16.msra.mxu0 %v144
  %188 = vmatprep.subr.bf16.mxu0 0
  %189 = vmatpush1.bf16.msra.mxu0 %v145
  %190 = vmatprep.subr.bf16.mxu0 0
  %191 = vmatpush1.bf16.msra.mxu0 %v146
  %192 = vmatprep.subr.bf16.mxu0 0
  %193 = vmatpush1.bf16.msra.mxu0 %v147
  %194 = vmatprep.subr.bf16.mxu0 0
  %195 = vmatpush1.bf16.msra.mxu0 %v148
  %196 = vmatprep.subr.bf16.mxu0 0
  %197 = vmatpush1.bf16.msra.mxu0 %v149
  %198 = vmatprep.subr.bf16.mxu0 0
  %199 = vmatpush1.bf16.msra.mxu0 %v150
  %200 = vmatprep.subr.bf16.mxu0 0
  %201 = vmatpush1.bf16.msra.mxu0 %v151
  %202 = vmatprep.subr.bf16.mxu0 0
  %203 = vmatpush1.bf16.msra.mxu0 %v152
  %204 = vmatprep.subr.bf16.mxu0 0
  %205 = vmatpush1.bf16.msra.mxu0 %v153
  %206 = vmatprep.subr.bf16.mxu0 0
  %207 = vmatpush1.bf16.msra.mxu0 %v154
  %208 = vmatprep.subr.bf16.mxu0 0
  %209 = vmatpush1.bf16.msra.mxu0 %v155
  %210 = vmatprep.subr.bf16.mxu0 0
  %211 = vmatpush1.bf16.msra.mxu0 %v156
  %212 = vmatprep.subr.bf16.mxu0 0
  %213 = vmatpush1.bf16.msra.mxu0 %v157
  %214 = vmatprep.mubr.bf16.mxu0 %v66
  %215 = vmatmul.mubr.bf16.gmra.mrb[0].mxu0 %v65
  %v216 = vpop.f32.mrb[0].mxu0
  %v217 = vadd.f32 %v58, %v216
  %v218 = vpop.f32.mrb[0].mxu0
  %v219 = vpop.f32.mrb[0].mxu0
  %v220 = vpop.f32.mrb[0].mxu0
  %221 = vdwg.mxu0
  %222 = vmatprep.subr.bf16.mxu0 0
  %223 = vmatpush1.bf16.msra.mxu0 %v158
  %224 = vmatprep.subr.bf16.mxu0 0
  %225 = vmatpush1.bf16.msra.mxu0 %v159
  %226 = vmatprep.subr.bf16.mxu0 0
  %227 = vmatpush1.bf16.msra.mxu0 0
  %228 = vmatprep.subr.bf16.mxu0 0
  %229 = vmatpush1.bf16.msra.mxu0 0
  %230 = vmatprep.subr.bf16.mxu0 0
  %231 = vmatpush1.bf16.msra.mxu0 0
  %232 = vmatprep.subr.bf16.mxu0 0
  %233 = vmatpush1.bf16.msra.mxu0 0
  %234 = vmatprep.subr.bf16.mxu0 0
  %235 = vmatpush1.bf16.msra.mxu0 0
  %236 = vmatprep.subr.bf16.mxu0 0
  %237 = vmatpush1.bf16.msra.mxu0 0
  %238 = vmatprep.subr.bf16.mxu0 0
  %239 = vmatpush1.bf16.msra.mxu0 0
  %240 = vmatprep.subr.bf16.mxu0 0
  %241 = vmatpush1.bf16.msra.mxu0 0
  %242 = vmatprep.subr.bf16.mxu0 0
  %243 = vmatpush1.bf16.msra.mxu0 0
  %244 = vmatprep.subr.bf16.mxu0 0
  %245 = vmatpush1.bf16.msra.mxu0 0
  %246 = vmatprep.subr.bf16.mxu0 0
  %247 = vmatpush1.bf16.msra.mxu0 0
  %248 = vmatprep.subr.bf16.mxu0 0
  %249 = vmatpush1.bf16.msra.mxu0 0
  %250 = vmatprep.subr.bf16.mxu0 0
  %251 = vmatpush1.bf16.msra.mxu0 0
  %252 = vmatprep.subr.bf16.mxu0 0
  %253 = vmatpush1.bf16.msra.mxu0 0
  %254 = vmatprep.mubr.bf16.mxu0 0
  %255 = vmatmul.mubr.bf16.gmra.mrb[0].mxu0 %v180
  %v256 = vpop.f32.mrb[0].mxu0
  %v257 = vadd.f32 %v217, %v256
  %v258 = vpop.f32.mrb[0].mxu0
  %v259 = vpop.f32.mrb[0].mxu0
  %v260 = vpop.f32.mrb[0].mxu0
  %261 = vdwg.mxu0
  %v262 = vmax.f32 %v257, 0.0
  %v263 = vpack.c.bf16 %v262, %v262
  %vm264 = vcmask 519168
  %265 = vst.msk [vmem:[%s3] sm:$0xf] %vm264, %v263
  // Predicated region
  $region14: #{yolo_forward.13} parent=0 // pred_check
    _
  $region15: #{yolo_forward.13} parent=0 // pred_check_branch
    %267 = sbr.rel (0) target = $region17
  $region16: #{yolo_forward.13} parent=0 // pred_region
    _
  $region17: #{yolo_forward.13} parent=0 // pred_fallthru
    _
  // Predicated region
  $region18: #{yolo_forward.13} parent=0 // pred_check
    _
  $region19: #{yolo_forward.13} parent=0 // pred_check_branch
    %269 = sbr.rel (0) target = $region21
  $region20: #{yolo_forward.13} parent=0 // pred_region
    _
  $region21: #{yolo_forward.13} parent=0 // pred_fallthru
    _

// kernel: yolo_forward.14
$region0: #{yolo_forward.14}
  #allocation0 [shape = 'u32[]', space=smem, size = 0x4, offset = 0x4, fixed_abs, tag = 'smem constant byte address 0x4 - core index']
  #allocation1 [shape = 'u32[144,128]{1,0:T(1,128)}', space=vmem, size = 0x12000, scoped, tag = 'internal scratch']
  %s0 = inlined_call_operand.vmem [shape: bf16[8,576], index: 0, kind: input, shape index: {}]
  %s1 = inlined_call_operand.vmem [shape: bf16[576,128], index: 1, kind: input, shape index: {}]
  %s2 = inlined_call_operand.vmem [shape: f32[1,128], index: 2, kind: input, shape index: {}]
  %s3 = inlined_call_operand.vmem [shape: bf16[8,128], index: 3, kind: output, shape index: {}]
  %s4 = sld [smem:[#allocation0]]
  $region22: #{yolo_forward.14} parent=0
    _
  %s6 = ssub.s32 1, %s4
  %s7 = scalar_select 0, %s6, %s4
  // Predicated region
  $region2: #{yolo_forward.14} parent=0 // pred_check
    _
  $region3: #{yolo_forward.14} parent=0 // pred_check_branch
    %9 = sbr.rel (0) target = $region5
  $region4: #{yolo_forward.14} parent=0 // pred_region
    _
  $region5: #{yolo_forward.14} parent=0 // pred_fallthru
    _
  // Predicated region
  $region6: #{yolo_forward.14} parent=0 // pred_check
    _
  $region7: #{yolo_forward.14} parent=0 // pred_check_branch
    %11 = sbr.rel (0) target = $region9
  $region8: #{yolo_forward.14} parent=0 // pred_region
    _
  $region9: #{yolo_forward.14} parent=0 // pred_fallthru
    _
  // Predicated region
  $region10: #{yolo_forward.14} parent=0 // pred_check
    _
  $region11: #{yolo_forward.14} parent=0 // pred_check_branch
    %13 = sbr.rel (0) target = $region13
  $region12: #{yolo_forward.14} parent=0 // pred_region
    _
  $region13: #{yolo_forward.14} parent=0 // pred_fallthru
    _
  %v15 = vld [vmem:[%s0] sm:$0xff]
  %v16 = vld [vmem:[%s0 + $0x8] sm:$0xff]
  %v17 = vld [vmem:[%s0 + $0x10] sm:$0xf]
  %v18 = vld [vmem:[%s1] sm:$0xf]
  %v19 = vld [vmem:[%s1 + $0x4] sm:$0xf]
  %v20 = vld [vmem:[%s1 + $0x8] sm:$0xf]
  %v21 = vld [vmem:[%s1 + $0xc] sm:$0xf]
  %v22 = vld [vmem:[%s1 + $0x10] sm:$0xf]
  %v23 = vld [vmem:[%s1 + $0x14] sm:$0xf]
  %v24 = vld [vmem:[%s1 + $0x18] sm:$0xf]
  %v25 = vld [vmem:[%s1 + $0x1c] sm:$0xf]
  %v26 = vld [vmem:[%s1 + $0x20] sm:$0xf]
  %v27 = vld [vmem:[%s1 + $0x24] sm:$0xf]
  %v28 = vld [vmem:[%s1 + $0x28] sm:$0xf]
  %v29 = vld [vmem:[%s1 + $0x2c] sm:$0xf]
  %v30 = vld [vmem:[%s1 + $0x30] sm:$0xf]
  %v31 = vld [vmem:[%s1 + $0x34] sm:$0xf]
  %v32 = vld [vmem:[%s1 + $0x38] sm:$0xf]
  %v33 = vld [vmem:[%s1 + $0x3c] sm:$0xf]
  %v34 = vld [vmem:[%s1 + $0x40] sm:$0xf]
  %v35 = vld [vmem:[%s1 + $0x44] sm:$0xf]
  %v36 = vld [vmem:[%s1 + $0x48] sm:$0xf]
  %v37 = vld [vmem:[%s1 + $0x4c] sm:$0xf]
  %v38 = vld [vmem:[%s1 + $0x50] sm:$0xf]
  %v39 = vld [vmem:[%s1 + $0x54] sm:$0xf]
  %v40 = vld [vmem:[%s1 + $0x58] sm:$0xf]
  %v41 = vld [vmem:[%s1 + $0x5c] sm:$0xf]
  %v42 = vld [vmem:[%s1 + $0x60] sm:$0xf]
  %v43 = vld [vmem:[%s1 + $0x64] sm:$0xf]
  %v44 = vld [vmem:[%s1 + $0x68] sm:$0xf]
  %v45 = vld [vmem:[%s1 + $0x6c] sm:$0xf]
  %v46 = vld [vmem:[%s1 + $0x70] sm:$0xf]
  %v47 = vld [vmem:[%s1 + $0x74] sm:$0xf]
  %v48 = vld [vmem:[%s1 + $0x78] sm:$0xf]
  %v49 = vld [vmem:[%s1 + $0x7c] sm:$0xf]
  %v50 = vld [vmem:[%s1 + $0x80] sm:$0xf]
  %v51 = vld [vmem:[%s1 + $0x84] sm:$0xf]
  %v52 = vld [vmem:[%s1 + $0x88] sm:$0xf]
  %v53 = vld [vmem:[%s1 + $0x8c] sm:$0xf]
  %v54 = vld [vmem:[%s1 + $0x90] sm:$0xf]
  %v55 = vld [vmem:[%s1 + $0x94] sm:$0xf]
  %v56 = vld [vmem:[%s1 + $0x98] sm:$0xf]
  %v57 = vld [vmem:[%s1 + $0x9c] sm:$0xf]
  %v58 = vld [vmem:[%s1 + $0xa0] sm:$0xf]
  %v59 = vld [vmem:[%s1 + $0xa4] sm:$0xf]
  %v60 = vld [vmem:[%s1 + $0xa8] sm:$0xf]
  %v61 = vld [vmem:[%s1 + $0xac] sm:$0xf]
  %v62 = vld [vmem:[%s1 + $0xb0] sm:$0xf]
  %v63 = vld [vmem:[%s1 + $0xb4] sm:$0xf]
  %v64 = vld [vmem:[%s1 + $0xb8] sm:$0xf]
  %v65 = vld [vmem:[%s1 + $0xbc] sm:$0xf]
  %v66 = vld [vmem:[%s1 + $0xc0] sm:$0xf]
  %v67 = vld [vmem:[%s1 + $0xc4] sm:$0xf]
  %v68 = vld [vmem:[%s1 + $0xc8] sm:$0xf]
  %v69 = vld [vmem:[%s1 + $0xcc] sm:$0xf]
  %v70 = vld [vmem:[%s1 + $0xd0] sm:$0xf]
  %v71 = vld [vmem:[%s1 + $0xd4] sm:$0xf]
  %v72 = vld [vmem:[%s1 + $0xd8] sm:$0xf]
  %v73 = vld [vmem:[%s1 + $0xdc] sm:$0xf]
  %v74 = vld [vmem:[%s1 + $0xe0] sm:$0xf]
  %v75 = vld [vmem:[%s1 + $0xe4] sm:$0xf]
  %v76 = vld [vmem:[%s1 + $0xe8] sm:$0xf]
  %v77 = vld [vmem:[%s1 + $0xec] sm:$0xf]
  %v78 = vld [vmem:[%s1 + $0xf0] sm:$0xf]
  %v79 = vld [vmem:[%s1 + $0xf4] sm:$0xf]
  %v80 = vld [vmem:[%s1 + $0xf8] sm:$0xf]
  %v81 = vld [vmem:[%s1 + $0xfc] sm:$0xf]
  %v82 = vld [vmem:[%s1 + $0x100] sm:$0xf]
  %v83 = vld [vmem:[%s1 + $0x104] sm:$0xf]
  %v84 = vld [vmem:[%s1 + $0x108] sm:$0xf]
  %v85 = vld [vmem:[%s1 + $0x10c] sm:$0xf]
  %v86 = vld [vmem:[%s1 + $0x110] sm:$0xf]
  %v87 = vld [vmem:[%s1 + $0x114] sm:$0xf]
  %v88 = vld [vmem:[%s1 + $0x118] sm:$0xf]
  %v89 = vld [vmem:[%s1 + $0x11c] sm:$0xf]
  %v90 = vld [vmem:[%s2] sm:$0x1]
  %v92 = vlaneseq
  %v93 = vshrl.u32 %v92, 7
  %v94 = vsub.s32 0, %v93
  %v95 = vrot.slane %v90, %v94
  %v100 = vunpack.c.l.b16 %v15
  %v101 = vunpack.c.h.b16 %v15
  %v102 = vunpack.c.l.b16 %v16
  %v103 = vunpack.c.h.b16 %v16
  %v104 = vunpack.c.l.b16 %v17
  %v105 = vpack.c.b16 %v100, %v100
  %v106 = vpack.c.b16 %v101, %v101
  %v107 = vpack.c.b16 %v102, %v102
  %v108 = vpack.c.b16 %v103, %v103
  %v109 = vpack.c.b16 %v104, %v104
  %v186 = vunpack.c.l.b16 %v18
  %v187 = vunpack.c.l.b16 %v19
  %v188 = vunpack.c.l.b16 %v20
  %v189 = vunpack.c.l.b16 %v21
  %v190 = vunpack.c.l.b16 %v22
  %v191 = vunpack.c.l.b16 %v23
  %v192 = vunpack.c.l.b16 %v24
  %v193 = vunpack.c.l.b16 %v25
  %v194 = vunpack.c.l.b16 %v26
  %v195 = vunpack.c.l.b16 %v27
  %v196 = vunpack.c.l.b16 %v28
  %v197 = vunpack.c.l.b16 %v29
  %v198 = vunpack.c.l.b16 %v30
  %v199 = vunpack.c.l.b16 %v31
  %v200 = vunpack.c.l.b16 %v32
  %v201 = vunpack.c.l.b16 %v33
  %v202 = vunpack.c.l.b16 %v34
  %v203 = vunpack.c.l.b16 %v35
  %v204 = vunpack.c.l.b16 %v36
  %v205 = vunpack.c.l.b16 %v37
  %v206 = vunpack.c.l.b16 %v38
  %v207 = vunpack.c.l.b16 %v39
  %v208 = vunpack.c.l.b16 %v40
  %v209 = vunpack.c.l.b16 %v41
  %v210 = vunpack.c.l.b16 %v42
  %v211 = vunpack.c.l.b16 %v43
  %v212 = vunpack.c.l.b16 %v44
  %v213 = vunpack.c.l.b16 %v45
  %v214 = vunpack.c.l.b16 %v46
  %v215 = vunpack.c.l.b16 %v47
  %v216 = vunpack.c.l.b16 %v48
  %v217 = vunpack.c.l.b16 %v49
  %v218 = vunpack.c.l.b16 %v50
  %v219 = vunpack.c.l.b16 %v51
  %v220 = vunpack.c.l.b16 %v52
  %v221 = vunpack.c.l.b16 %v53
  %v222 = vunpack.c.l.b16 %v54
  %v223 = vunpack.c.l.b16 %v55
  %v224 = vunpack.c.l.b16 %v56
  %v225 = vunpack.c.l.b16 %v57
  %v226 = vunpack.c.l.b16 %v58
  %v227 = vunpack.c.l.b16 %v59
  %v228 = vunpack.c.l.b16 %v60
  %v229 = vunpack.c.l.b16 %v61
  %v230 = vunpack.c.l.b16 %v62
  %v231 = vunpack.c.l.b16 %v63
  %v232 = vunpack.c.l.b16 %v64
  %v233 = vunpack.c.l.b16 %v65
  %v234 = vunpack.c.l.b16 %v66
  %v235 = vunpack.c.l.b16 %v67
  %v236 = vunpack.c.l.b16 %v68
  %v237 = vunpack.c.l.b16 %v69
  %v238 = vunpack.c.l.b16 %v70
  %v239 = vunpack.c.l.b16 %v71
  %v240 = vunpack.c.l.b16 %v72
  %v241 = vunpack.c.l.b16 %v73
  %v242 = vunpack.c.l.b16 %v74
  %v243 = vunpack.c.l.b16 %v75
  %v244 = vunpack.c.l.b16 %v76
  %v245 = vunpack.c.l.b16 %v77
  %v246 = vunpack.c.l.b16 %v78
  %v247 = vunpack.c.l.b16 %v79
  %v248 = vunpack.c.l.b16 %v80
  %v249 = vunpack.c.l.b16 %v81
  %v250 = vunpack.c.l.b16 %v82
  %v251 = vunpack.c.l.b16 %v83
  %v252 = vunpack.c.l.b16 %v84
  %v253 = vunpack.c.l.b16 %v85
  %v254 = vunpack.c.l.b16 %v86
  %v255 = vunpack.c.l.b16 %v87
  %v256 = vunpack.c.l.b16 %v88
  %v257 = vunpack.c.l.b16 %v89
  %v258 = vpack.c.b16 %v187, %v186
  %v259 = vpack.c.b16 %v189, %v188
  %v260 = vpack.c.b16 %v191, %v190
  %v261 = vpack.c.b16 %v193, %v192
  %v262 = vpack.c.b16 %v195, %v194
  %v263 = vpack.c.b16 %v197, %v196
  %v264 = vpack.c.b16 %v199, %v198
  %v265 = vpack.c.b16 %v201, %v200
  %v266 = vpack.c.b16 %v203, %v202
  %v267 = vpack.c.b16 %v205, %v204
  %v268 = vpack.c.b16 %v207, %v206
  %v269 = vpack.c.b16 %v209, %v208
  %v270 = vpack.c.b16 %v211, %v210
  %v271 = vpack.c.b16 %v213, %v212
  %v272 = vpack.c.b16 %v215, %v214
  %v273 = vpack.c.b16 %v217, %v216
  %v274 = vpack.c.b16 %v219, %v218
  %v275 = vpack.c.b16 %v221, %v220
  %v276 = vpack.c.b16 %v223, %v222
  %v277 = vpack.c.b16 %v225, %v224
  %v278 = vpack.c.b16 %v227, %v226
  %v279 = vpack.c.b16 %v229, %v228
  %v280 = vpack.c.b16 %v231, %v230
  %v281 = vpack.c.b16 %v233, %v232
  %v282 = vpack.c.b16 %v235, %v234
  %v283 = vpack.c.b16 %v237, %v236
  %v284 = vpack.c.b16 %v239, %v238
  %v285 = vpack.c.b16 %v241, %v240
  %v286 = vpack.c.b16 %v243, %v242
  %v287 = vpack.c.b16 %v245, %v244
  %v288 = vpack.c.b16 %v247, %v246
  %v289 = vpack.c.b16 %v249, %v248
  %v290 = vpack.c.b16 %v251, %v250
  %v291 = vpack.c.b16 %v253, %v252
  %v292 = vpack.c.b16 %v255, %v254
  %v293 = vpack.c.b16 %v257, %v256
  %vm330 = vcmask 523264
  %v332 = vsel %vm330, %v109, 0
  %334 = vmatprep.subr.bf16.mxu0 0
  %335 = vmatpush1.bf16.msra.mxu0 %v258
  %336 = vmatprep.subr.bf16.mxu0 0
  %337 = vmatpush1.bf16.msra.mxu0 %v259
  %338 = vmatprep.subr.bf16.mxu0 0
  %339 = vmatpush1.bf16.msra.mxu0 %v260
  %340 = vmatprep.subr.bf16.mxu0 0
  %341 = vmatpush1.bf16.msra.mxu0 %v261
  %342 = vmatprep.subr.bf16.mxu0 0
  %343 = vmatpush1.bf16.msra.mxu0 %v262
  %344 = vmatprep.subr.bf16.mxu0 0
  %345 = vmatpush1.bf16.msra.mxu0 %v263
  %346 = vmatprep.subr.bf16.mxu0 0
  %347 = vmatpush1.bf16.msra.mxu0 %v264
  %348 = vmatprep.subr.bf16.mxu0 0
  %349 = vmatpush1.bf16.msra.mxu0 %v265
  %350 = vmatprep.subr.bf16.mxu0 0
  %351 = vmatpush1.bf16.msra.mxu0 %v266
  %352 = vmatprep.subr.bf16.mxu0 0
  %353 = vmatpush1.bf16.msra.mxu0 %v267
  %354 = vmatprep.subr.bf16.mxu0 0
  %355 = vmatpush1.bf16.msra.mxu0 %v268
  %356 = vmatprep.subr.bf16.mxu0 0
  %357 = vmatpush1.bf16.msra.mxu0 %v269
  %358 = vmatprep.subr.bf16.mxu0 0
  %359 = vmatpush1.bf16.msra.mxu0 %v270
  %360 = vmatprep.subr.bf16.mxu0 0
  %361 = vmatpush1.bf16.msra.mxu0 %v271
  %362 = vmatprep.subr.bf16.mxu0 0
  %363 = vmatpush1.bf16.msra.mxu0 %v272
  %364 = vmatprep.subr.bf16.mxu0 0
  %365 = vmatpush1.bf16.msra.mxu0 %v273
  %366 = vmatprep.mubr.bf16.mxu0 %v106
  %367 = vmatmul.mubr.bf16.gmra.mrb[0].mxu0 %v105
  %v368 = vpop.f32.mrb[0].mxu0
  %v369 = vadd.f32 %v95, %v368
  %v370 = vpop.f32.mrb[0].mxu0
  %v371 = vpop.f32.mrb[0].mxu0
  %v372 = vpop.f32.mrb[0].mxu0
  %373 = vdwg.mxu0
  %374 = vmatprep.subr.bf16.mxu0 0
  %375 = vmatpush1.bf16.msra.mxu0 %v274
  %376 = vmatprep.subr.bf16.mxu0 0
  %377 = vmatpush1.bf16.msra.mxu0 %v275
  %378 = vmatprep.subr.bf16.mxu0 0
  %379 = vmatpush1.bf16.msra.mxu0 %v276
  %380 = vmatprep.subr.bf16.mxu0 0
  %381 = vmatpush1.bf16.msra.mxu0 %v277
  %382 = vmatprep.subr.bf16.mxu0 0
  %383 = vmatpush1.bf16.msra.mxu0 %v278
  %384 = vmatprep.subr.bf16.mxu0 0
  %385 = vmatpush1.bf16.msra.mxu0 %v279
  %386 = vmatprep.subr.bf16.mxu0 0
  %387 = vmatpush1.bf16.msra.mxu0 %v280
  %388 = vmatprep.subr.bf16.mxu0 0
  %389 = vmatpush1.bf16.msra.mxu0 %v281
  %390 = vmatprep.subr.bf16.mxu0 0
  %391 = vmatpush1.bf16.msra.mxu0 %v282
  %392 = vmatprep.subr.bf16.mxu0 0
  %393 = vmatpush1.bf16.msra.mxu0 %v283
  %394 = vmatprep.subr.bf16.mxu0 0
  %395 = vmatpush1.bf16.msra.mxu0 %v284
  %396 = vmatprep.subr.bf16.mxu0 0
  %397 = vmatpush1.bf16.msra.mxu0 %v285
  %398 = vmatprep.subr.bf16.mxu0 0
  %399 = vmatpush1.bf16.msra.mxu0 %v286
  %400 = vmatprep.subr.bf16.mxu0 0
  %401 = vmatpush1.bf16.msra.mxu0 %v287
  %402 = vmatprep.subr.bf16.mxu0 0
  %403 = vmatpush1.bf16.msra.mxu0 %v288
  %404 = vmatprep.subr.bf16.mxu0 0
  %405 = vmatpush1.bf16.msra.mxu0 %v289
  %406 = vmatprep.mubr.bf16.mxu0 %v108
  %407 = vmatmul.mubr.bf16.gmra.mrb[0].mxu0 %v107
  %v408 = vpop.f32.mrb[0].mxu0
  %v409 = vadd.f32 %v369, %v408
  %v410 = vpop.f32.mrb[0].mxu0
  %v411 = vpop.f32.mrb[0].mxu0
  %v412 = vpop.f32.mrb[0].mxu0
  %413 = vdwg.mxu0
  %414 = vmatprep.subr.bf16.mxu0 0
  %415 = vmatpush1.bf16.msra.mxu0 %v290
  %416 = vmatprep.subr.bf16.mxu0 0
  %417 = vmatpush1.bf16.msra.mxu0 %v291
  %418 = vmatprep.subr.bf16.mxu0 0
  %419 = vmatpush1.bf16.msra.mxu0 %v292
  %420 = vmatprep.subr.bf16.mxu0 0
  %421 = vmatpush1.bf16.msra.mxu0 %v293
  %422 = vmatprep.subr.bf16.mxu0 0
  %423 = vmatpush1.bf16.msra.mxu0 0
  %424 = vmatprep.subr.bf16.mxu0 0
  %425 = vmatpush1.bf16.msra.mxu0 0
  %426 = vmatprep.subr.bf16.mxu0 0
  %427 = vmatpush1.bf16.msra.mxu0 0
  %428 = vmatprep.subr.bf16.mxu0 0
  %429 = vmatpush1.bf16.msra.mxu0 0
  %430 = vmatprep.subr.bf16.mxu0 0
  %431 = vmatpush1.bf16.msra.mxu0 0
  %432 = vmatprep.subr.bf16.mxu0 0
  %433 = vmatpush1.bf16.msra.mxu0 0
  %434 = vmatprep.subr.bf16.mxu0 0
  %435 = vmatpush1.bf16.msra.mxu0 0
  %436 = vmatprep.subr.bf16.mxu0 0
  %437 = vmatpush1.bf16.msra.mxu0 0
  %438 = vmatprep.subr.bf16.mxu0 0
  %439 = vmatpush1.bf16.msra.mxu0 0
  %440 = vmatprep.subr.bf16.mxu0 0
  %441 = vmatpush1.bf16.msra.mxu0 0
  %442 = vmatprep.subr.bf16.mxu0 0
  %443 = vmatpush1.bf16.msra.mxu0 0
  %444 = vmatprep.subr.bf16.mxu0 0
  %445 = vmatpush1.bf16.msra.mxu0 0
  %446 = vmatprep.mubr.bf16.mxu0 0
  %447 = vmatmul.mubr.bf16.gmra.mrb[0].mxu0 %v332
  %v448 = vpop.f32.mrb[0].mxu0
  %v449 = vadd.f32 %v409, %v448
  %v450 = vpop.f32.mrb[0].mxu0
  %v451 = vpop.f32.mrb[0].mxu0
  %v452 = vpop.f32.mrb[0].mxu0
  %453 = vdwg.mxu0
  %v454 = vmax.f32 %v449, 0.0
  %v455 = vpack.c.bf16 %v454, %v454
  %456 = vst [vmem:[%s3] sm:$0xf] %v455
  // Predicated region
  $region14: #{yolo_forward.14} parent=0 // pred_check
    _
  $region15: #{yolo_forward.14} parent=0 // pred_check_branch
    %458 = sbr.rel (0) target = $region17
  $region16: #{yolo_forward.14} parent=0 // pred_region
    _
  $region17: #{yolo_forward.14} parent=0 // pred_fallthru
    _
  // Predicated region
  $region18: #{yolo_forward.14} parent=0 // pred_check
    _
  $region19: #{yolo_forward.14} parent=0 // pred_check_branch
    %460 = sbr.rel (0) target = $region21
  $region20: #{yolo_forward.14} parent=0 // pred_region
    _
  $region21: #{yolo_forward.14} parent=0 // pred_fallthru
    _

// kernel: yolo_forward.15
$region0: #{yolo_forward.15}
  #allocation0 [shape = 'u32[]', space=smem, size = 0x4, offset = 0x4, fixed_abs, tag = 'smem constant byte address 0x4 - core index']
  #allocation1 [shape = 'u32[144,128]{1,0:T(1,128)}', space=vmem, size = 0x12000, scoped, tag = 'internal scratch']
  %s0 = inlined_call_operand.vmem [shape: bf16[8,128], index: 0, kind: input, shape index: {}]
  %s1 = inlined_call_operand.vmem [shape: bf16[128,256], index: 1, kind: input, shape index: {}]
  %s2 = inlined_call_operand.vmem [shape: f32[1,256], index: 2, kind: input, shape index: {}]
  %s3 = inlined_call_operand.vmem [shape: bf16[8,256], index: 3, kind: output, shape index: {}]
  %s4 = sld [smem:[#allocation0]]
  $region22: #{yolo_forward.15} parent=0
    _
  %s6 = ssub.s32 1, %s4
  %s7 = scalar_select 0, %s6, %s4
  // Predicated region
  $region2: #{yolo_forward.15} parent=0 // pred_check
    _
  $region3: #{yolo_forward.15} parent=0 // pred_check_branch
    %9 = sbr.rel (0) target = $region5
  $region4: #{yolo_forward.15} parent=0 // pred_region
    _
  $region5: #{yolo_forward.15} parent=0 // pred_fallthru
    _
  // Predicated region
  $region6: #{yolo_forward.15} parent=0 // pred_check
    _
  $region7: #{yolo_forward.15} parent=0 // pred_check_branch
    %11 = sbr.rel (0) target = $region9
  $region8: #{yolo_forward.15} parent=0 // pred_region
    _
  $region9: #{yolo_forward.15} parent=0 // pred_fallthru
    _
  // Predicated region
  $region10: #{yolo_forward.15} parent=0 // pred_check
    _
  $region11: #{yolo_forward.15} parent=0 // pred_check_branch
    %13 = sbr.rel (0) target = $region13
  $region12: #{yolo_forward.15} parent=0 // pred_region
    _
  $region13: #{yolo_forward.15} parent=0 // pred_fallthru
    _
  %v15 = vld [vmem:[%s0] sm:$0xf]
  %v16 = vld [vmem:[%s1] sm:$0xff]
  %v17 = vld [vmem:[%s1 + $0x8] sm:$0xff]
  %v18 = vld [vmem:[%s1 + $0x10] sm:$0xff]
  %v19 = vld [vmem:[%s1 + $0x18] sm:$0xff]
  %v20 = vld [vmem:[%s1 + $0x20] sm:$0xff]
  %v21 = vld [vmem:[%s1 + $0x28] sm:$0xff]
  %v22 = vld [vmem:[%s1 + $0x30] sm:$0xff]
  %v23 = vld [vmem:[%s1 + $0x38] sm:$0xff]
  %v24 = vld [vmem:[%s1 + $0x40] sm:$0xff]
  %v25 = vld [vmem:[%s1 + $0x48] sm:$0xff]
  %v26 = vld [vmem:[%s1 + $0x50] sm:$0xff]
  %v27 = vld [vmem:[%s1 + $0x58] sm:$0xff]
  %v28 = vld [vmem:[%s1 + $0x60] sm:$0xff]
  %v29 = vld [vmem:[%s1 + $0x68] sm:$0xff]
  %v30 = vld [vmem:[%s1 + $0x70] sm:$0xff]
  %v31 = vld [vmem:[%s1 + $0x78] sm:$0xff]
  %v32 = vld [vmem:[%s2] sm:$0x3]
  %v34 = vlaneseq
  %v35 = vshrl.u32 %v34, 7
  %v36 = vsub.s32 0, %v35
  %v37 = vrot.slane %v32, %v36
  %v38 = vlaneseq
  %v39 = vshrl.u32 %v38, 7
  %v40 = vsub.s32 1, %v39
  %v41 = vrot.slane %v32, %v40
  %v60 = vunpack.c.l.b16 %v16
  %v61 = vunpack.c.h.b16 %v16
  %v62 = vunpack.c.l.b16 %v17
  %v63 = vunpack.c.h.b16 %v17
  %v64 = vunpack.c.l.b16 %v18
  %v65 = vunpack.c.h.b16 %v18
  %v66 = vunpack.c.l.b16 %v19
  %v67 = vunpack.c.h.b16 %v19
  %v68 = vunpack.c.l.b16 %v20
  %v69 = vunpack.c.h.b16 %v20
  %v70 = vunpack.c.l.b16 %v21
  %v71 = vunpack.c.h.b16 %v21
  %v72 = vunpack.c.l.b16 %v22
  %v73 = vunpack.c.h.b16 %v22
  %v74 = vunpack.c.l.b16 %v23
  %v75 = vunpack.c.h.b16 %v23
  %v76 = vunpack.c.l.b16 %v24
  %v77 = vunpack.c.h.b16 %v24
  %v78 = vunpack.c.l.b16 %v25
  %v79 = vunpack.c.h.b16 %v25
  %v80 = vunpack.c.l.b16 %v26
  %v81 = vunpack.c.h.b16 %v26
  %v82 = vunpack.c.l.b16 %v27
  %v83 = vunpack.c.h.b16 %v27
  %v84 = vunpack.c.l.b16 %v28
  %v85 = vunpack.c.h.b16 %v28
  %v86 = vunpack.c.l.b16 %v29
  %v87 = vunpack.c.h.b16 %v29
  %v88 = vunpack.c.l.b16 %v30
  %v89 = vunpack.c.h.b16 %v30
  %v90 = vunpack.c.l.b16 %v31
  %v91 = vunpack.c.h.b16 %v31
  %v92 = vpack.c.b16 %v62, %v60
  %v93 = vpack.c.b16 %v63, %v61
  %v94 = vpack.c.b16 %v66, %v64
  %v95 = vpack.c.b16 %v67, %v65
  %v96 = vpack.c.b16 %v70, %v68
  %v97 = vpack.c.b16 %v71, %v69
  %v98 = vpack.c.b16 %v74, %v72
  %v99 = vpack.c.b16 %v75, %v73
  %v100 = vpack.c.b16 %v78, %v76
  %v101 = vpack.c.b16 %v79, %v77
  %v102 = vpack.c.b16 %v82, %v80
  %v103 = vpack.c.b16 %v83, %v81
  %v104 = vpack.c.b16 %v86, %v84
  %v105 = vpack.c.b16 %v87, %v85
  %v106 = vpack.c.b16 %v90, %v88
  %v107 = vpack.c.b16 %v91, %v89
  %124 = vmatprep.subr.bf16.mxu0 %v93
  %125 = vmatpush1.bf16.msra.mxu0 %v92
  %126 = vmatprep.subr.bf16.mxu0 %v95
  %127 = vmatpush1.bf16.msra.mxu0 %v94
  %128 = vmatprep.subr.bf16.mxu0 %v97
  %129 = vmatpush1.bf16.msra.mxu0 %v96
  %130 = vmatprep.subr.bf16.mxu0 %v99
  %131 = vmatpush1.bf16.msra.mxu0 %v98
  %132 = vmatprep.subr.bf16.mxu0 %v101
  %133 = vmatpush1.bf16.msra.mxu0 %v100
  %134 = vmatprep.subr.bf16.mxu0 %v103
  %135 = vmatpush1.bf16.msra.mxu0 %v102
  %136 = vmatprep.subr.bf16.mxu0 %v105
  %137 = vmatpush1.bf16.msra.mxu0 %v104
  %138 = vmatprep.subr.bf16.mxu0 %v107
  %139 = vmatpush1.bf16.msra.mxu0 %v106
  %140 = vmatprep.subr.bf16.mxu0 0
  %141 = vmatpush1.bf16.msra.mxu0 0
  %142 = vmatprep.subr.bf16.mxu0 0
  %143 = vmatpush1.bf16.msra.mxu0 0
  %144 = vmatprep.subr.bf16.mxu0 0
  %145 = vmatpush1.bf16.msra.mxu0 0
  %146 = vmatprep.subr.bf16.mxu0 0
  %147 = vmatpush1.bf16.msra.mxu0 0
  %148 = vmatprep.subr.bf16.mxu0 0
  %149 = vmatpush1.bf16.msra.mxu0 0
  %150 = vmatprep.subr.bf16.mxu0 0
  %151 = vmatpush1.bf16.msra.mxu0 0
  %152 = vmatprep.subr.bf16.mxu0 0
  %153 = vmatpush1.bf16.msra.mxu0 0
  %154 = vmatprep.subr.bf16.mxu0 0
  %155 = vmatpush1.bf16.msra.mxu0 0
  %156 = vmatprep.mubr.bf16.mxu0 0
  %157 = vmatmul.mubr.bf16.gmra.mrb[0].mxu0 %v15
  %v158 = vpop.f32.mrb[0].mxu0
  %v159 = vadd.f32 %v37, %v158
  %v160 = vpop.f32.mrb[0].mxu0
  %v161 = vadd.f32 %v41, %v160
  %v162 = vpop.f32.mrb[0].mxu0
  %v163 = vpop.f32.mrb[0].mxu0
  %164 = vdwg.mxu0
  %v165 = vpack.c.bf16 %v159, %v159
  %v166 = vpack.c.bf16 %v161, %v161
  %v169 = vunpack.c.l.b16 %v165
  %v170 = vunpack.c.l.b16 %v166
  %v171 = vpack.c.b16 %v170, %v169
  %173 = vst [vmem:[%s3] sm:$0xff] %v171
  // Predicated region
  $region14: #{yolo_forward.15} parent=0 // pred_check
    _
  $region15: #{yolo_forward.15} parent=0 // pred_check_branch
    %175 = sbr.rel (0) target = $region17
  $region16: #{yolo_forward.15} parent=0 // pred_region
    _
  $region17: #{yolo_forward.15} parent=0 // pred_fallthru
    _
  // Predicated region
  $region18: #{yolo_forward.15} parent=0 // pred_check
    _
  $region19: #{yolo_forward.15} parent=0 // pred_check_branch
    %177 = sbr.rel (0) target = $region21
  $region20: #{yolo_forward.15} parent=0 // pred_region
    _
  $region21: #{yolo_forward.15} parent=0 // pred_fallthru
    _

// kernel: yolo_forward.18
$region0: #{yolo_forward.18}
  #allocation0 [shape = 'u32[]', space=smem, size = 0x4, offset = 0x4, fixed_abs, tag = 'smem constant byte address 0x4 - core index']
  #allocation1 [shape = 'u32[144,128]{1,0:T(1,128)}', space=vmem, size = 0x12000, scoped, tag = 'internal scratch']
  %s0 = inlined_call_operand.vmem [shape: bf16[8,256], index: 0, kind: input, shape index: {}]
  %s1 = inlined_call_operand.vmem [shape: bf16[256,64], index: 1, kind: input, shape index: {}]
  %s2 = inlined_call_operand.vmem [shape: f32[1,64], index: 2, kind: input, shape index: {}]
  %s3 = inlined_call_operand.vmem [shape: bf16[8,64], index: 3, kind: output, shape index: {}]
  %s4 = sld [smem:[#allocation0]]
  $region22: #{yolo_forward.18} parent=0
    _
  %s6 = ssub.s32 1, %s4
  %s7 = scalar_select 0, %s6, %s4
  // Predicated region
  $region2: #{yolo_forward.18} parent=0 // pred_check
    _
  $region3: #{yolo_forward.18} parent=0 // pred_check_branch
    %9 = sbr.rel (0) target = $region5
  $region4: #{yolo_forward.18} parent=0 // pred_region
    _
  $region5: #{yolo_forward.18} parent=0 // pred_fallthru
    _
  // Predicated region
  $region6: #{yolo_forward.18} parent=0 // pred_check
    _
  $region7: #{yolo_forward.18} parent=0 // pred_check_branch
    %11 = sbr.rel (0) target = $region9
  $region8: #{yolo_forward.18} parent=0 // pred_region
    _
  $region9: #{yolo_forward.18} parent=0 // pred_fallthru
    _
  // Predicated region
  $region10: #{yolo_forward.18} parent=0 // pred_check
    _
  $region11: #{yolo_forward.18} parent=0 // pred_check_branch
    %13 = sbr.rel (0) target = $region13
  $region12: #{yolo_forward.18} parent=0 // pred_region
    _
  $region13: #{yolo_forward.18} parent=0 // pred_fallthru
    _
  %v15 = vld [vmem:[%s0] sm:$0xff]
  %v16 = vld [vmem:[%s1] sm:$0xf]
  %v17 = vld [vmem:[%s1 + $0x4] sm:$0xf]
  %v18 = vld [vmem:[%s1 + $0x8] sm:$0xf]
  %v19 = vld [vmem:[%s1 + $0xc] sm:$0xf]
  %v20 = vld [vmem:[%s1 + $0x10] sm:$0xf]
  %v21 = vld [vmem:[%s1 + $0x14] sm:$0xf]
  %v22 = vld [vmem:[%s1 + $0x18] sm:$0xf]
  %v23 = vld [vmem:[%s1 + $0x1c] sm:$0xf]
  %v24 = vld [vmem:[%s1 + $0x20] sm:$0xf]
  %v25 = vld [vmem:[%s1 + $0x24] sm:$0xf]
  %v26 = vld [vmem:[%s1 + $0x28] sm:$0xf]
  %v27 = vld [vmem:[%s1 + $0x2c] sm:$0xf]
  %v28 = vld [vmem:[%s1 + $0x30] sm:$0xf]
  %v29 = vld [vmem:[%s1 + $0x34] sm:$0xf]
  %v30 = vld [vmem:[%s1 + $0x38] sm:$0xf]
  %v31 = vld [vmem:[%s1 + $0x3c] sm:$0xf]
  %v32 = vld [vmem:[%s1 + $0x40] sm:$0xf]
  %v33 = vld [vmem:[%s1 + $0x44] sm:$0xf]
  %v34 = vld [vmem:[%s1 + $0x48] sm:$0xf]
  %v35 = vld [vmem:[%s1 + $0x4c] sm:$0xf]
  %v36 = vld [vmem:[%s1 + $0x50] sm:$0xf]
  %v37 = vld [vmem:[%s1 + $0x54] sm:$0xf]
  %v38 = vld [vmem:[%s1 + $0x58] sm:$0xf]
  %v39 = vld [vmem:[%s1 + $0x5c] sm:$0xf]
  %v40 = vld [vmem:[%s1 + $0x60] sm:$0xf]
  %v41 = vld [vmem:[%s1 + $0x64] sm:$0xf]
  %v42 = vld [vmem:[%s1 + $0x68] sm:$0xf]
  %v43 = vld [vmem:[%s1 + $0x6c] sm:$0xf]
  %v44 = vld [vmem:[%s1 + $0x70] sm:$0xf]
  %v45 = vld [vmem:[%s1 + $0x74] sm:$0xf]
  %v46 = vld [vmem:[%s1 + $0x78] sm:$0xf]
  %v47 = vld [vmem:[%s1 + $0x7c] sm:$0xf]
  %v48 = vld [vmem:[%s2] sm:$0x1]
  %v50 = vlaneseq
  %v51 = vshrl.u32 %v50, 7
  %v52 = vsub.s32 0, %v51
  %v53 = vrot.slane %v48, %v52
  %v56 = vunpack.c.l.b16 %v15
  %v57 = vunpack.c.h.b16 %v15
  %v58 = vpack.c.b16 %v56, %v56
  %v59 = vpack.c.b16 %v57, %v57
  %v94 = vunpack.c.l.b16 %v16
  %v95 = vunpack.c.l.b16 %v17
  %v96 = vunpack.c.l.b16 %v18
  %v97 = vunpack.c.l.b16 %v19
  %v98 = vunpack.c.l.b16 %v20
  %v99 = vunpack.c.l.b16 %v21
  %v100 = vunpack.c.l.b16 %v22
  %v101 = vunpack.c.l.b16 %v23
  %v102 = vunpack.c.l.b16 %v24
  %v103 = vunpack.c.l.b16 %v25
  %v104 = vunpack.c.l.b16 %v26
  %v105 = vunpack.c.l.b16 %v27
  %v106 = vunpack.c.l.b16 %v28
  %v107 = vunpack.c.l.b16 %v29
  %v108 = vunpack.c.l.b16 %v30
  %v109 = vunpack.c.l.b16 %v31
  %v110 = vunpack.c.l.b16 %v32
  %v111 = vunpack.c.l.b16 %v33
  %v112 = vunpack.c.l.b16 %v34
  %v113 = vunpack.c.l.b16 %v35
  %v114 = vunpack.c.l.b16 %v36
  %v115 = vunpack.c.l.b16 %v37
  %v116 = vunpack.c.l.b16 %v38
  %v117 = vunpack.c.l.b16 %v39
  %v118 = vunpack.c.l.b16 %v40
  %v119 = vunpack.c.l.b16 %v41
  %v120 = vunpack.c.l.b16 %v42
  %v121 = vunpack.c.l.b16 %v43
  %v122 = vunpack.c.l.b16 %v44
  %v123 = vunpack.c.l.b16 %v45
  %v124 = vunpack.c.l.b16 %v46
  %v125 = vunpack.c.l.b16 %v47
  %v126 = vpack.c.b16 %v95, %v94
  %v127 = vpack.c.b16 %v97, %v96
  %v128 = vpack.c.b16 %v99, %v98
  %v129 = vpack.c.b16 %v101, %v100
  %v130 = vpack.c.b16 %v103, %v102
  %v131 = vpack.c.b16 %v105, %v104
  %v132 = vpack.c.b16 %v107, %v106
  %v133 = vpack.c.b16 %v109, %v108
  %v134 = vpack.c.b16 %v111, %v110
  %v135 = vpack.c.b16 %v113, %v112
  %v136 = vpack.c.b16 %v115, %v114
  %v137 = vpack.c.b16 %v117, %v116
  %v138 = vpack.c.b16 %v119, %v118
  %v139 = vpack.c.b16 %v121, %v120
  %v140 = vpack.c.b16 %v123, %v122
  %v141 = vpack.c.b16 %v125, %v124
  %158 = vmatprep.subr.bf16.mxu0 0
  %159 = vmatpush1.bf16.msra.mxu0 %v126
  %160 = vmatprep.subr.bf16.mxu0 0
  %161 = vmatpush1.bf16.msra.mxu0 %v127
  %162 = vmatprep.subr.bf16.mxu0 0
  %163 = vmatpush1.bf16.msra.mxu0 %v128
  %164 = vmatprep.subr.bf16.mxu0 0
  %165 = vmatpush1.bf16.msra.mxu0 %v129
  %166 = vmatprep.subr.bf16.mxu0 0
  %167 = vmatpush1.bf16.msra.mxu0 %v130
  %168 = vmatprep.subr.bf16.mxu0 0
  %169 = vmatpush1.bf16.msra.mxu0 %v131
  %170 = vmatprep.subr.bf16.mxu0 0
  %171 = vmatpush1.bf16.msra.mxu0 %v132
  %172 = vmatprep.subr.bf16.mxu0 0
  %173 = vmatpush1.bf16.msra.mxu0 %v133
  %174 = vmatprep.subr.bf16.mxu0 0
  %175 = vmatpush1.bf16.msra.mxu0 %v134
  %176 = vmatprep.subr.bf16.mxu0 0
  %177 = vmatpush1.bf16.msra.mxu0 %v135
  %178 = vmatprep.subr.bf16.mxu0 0
  %179 = vmatpush1.bf16.msra.mxu0 %v136
  %180 = vmatprep.subr.bf16.mxu0 0
  %181 = vmatpush1.bf16.msra.mxu0 %v137
  %182 = vmatprep.subr.bf16.mxu0 0
  %183 = vmatpush1.bf16.msra.mxu0 %v138
  %184 = vmatprep.subr.bf16.mxu0 0
  %185 = vmatpush1.bf16.msra.mxu0 %v139
  %186 = vmatprep.subr.bf16.mxu0 0
  %187 = vmatpush1.bf16.msra.mxu0 %v140
  %188 = vmatprep.subr.bf16.mxu0 0
  %189 = vmatpush1.bf16.msra.mxu0 %v141
  %190 = vmatprep.mubr.bf16.mxu0 %v59
  %191 = vmatmul.mubr.bf16.gmra.mrb[0].mxu0 %v58
  %v192 = vpop.f32.mrb[0].mxu0
  %v193 = vadd.f32 %v53, %v192
  %v194 = vpop.f32.mrb[0].mxu0
  %v195 = vpop.f32.mrb[0].mxu0
  %v196 = vpop.f32.mrb[0].mxu0
  %197 = vdwg.mxu0
  %v198 = vpack.c.bf16 %v193, %v193
  %vm199 = vcmask 519168
  %200 = vst.msk [vmem:[%s3] sm:$0xf] %vm199, %v198
  // Predicated region
  $region14: #{yolo_forward.18} parent=0 // pred_check
    _
  $region15: #{yolo_forward.18} parent=0 // pred_check_branch
    %202 = sbr.rel (0) target = $region17
  $region16: #{yolo_forward.18} parent=0 // pred_region
    _
  $region17: #{yolo_forward.18} parent=0 // pred_fallthru
    _
  // Predicated region
  $region18: #{yolo_forward.18} parent=0 // pred_check
    _
  $region19: #{yolo_forward.18} parent=0 // pred_check_branch
    %204 = sbr.rel (0) target = $region21
  $region20: #{yolo_forward.18} parent=0 // pred_region
    _
  $region21: #{yolo_forward.18} parent=0 // pred_fallthru
    _

// kernel: yolo_forward.19
$region0: #{yolo_forward.19}
  #allocation0 [shape = 'u32[]', space=smem, size = 0x4, offset = 0x4, fixed_abs, tag = 'smem constant byte address 0x4 - core index']
  #allocation1 [shape = 'u32[144,128]{1,0:T(1,128)}', space=vmem, size = 0x12000, scoped, tag = 'internal scratch']
  %s0 = inlined_call_operand.vmem [shape: bf16[8,256], index: 0, kind: input, shape index: {}]
  %s1 = inlined_call_operand.vmem [shape: bf16[256,10], index: 1, kind: input, shape index: {}]
  %s2 = inlined_call_operand.vmem [shape: f32[1,10], index: 2, kind: input, shape index: {}]
  %s3 = inlined_call_operand.vmem [shape: bf16[8,10], index: 3, kind: output, shape index: {}]
  %s4 = sld [smem:[#allocation0]]
  $region22: #{yolo_forward.19} parent=0
    _
  %s6 = ssub.s32 1, %s4
  %s7 = scalar_select 0, %s6, %s4
  // Predicated region
  $region2: #{yolo_forward.19} parent=0 // pred_check
    _
  $region3: #{yolo_forward.19} parent=0 // pred_check_branch
    %9 = sbr.rel (0) target = $region5
  $region4: #{yolo_forward.19} parent=0 // pred_region
    _
  $region5: #{yolo_forward.19} parent=0 // pred_fallthru
    _
  // Predicated region
  $region6: #{yolo_forward.19} parent=0 // pred_check
    _
  $region7: #{yolo_forward.19} parent=0 // pred_check_branch
    %11 = sbr.rel (0) target = $region9
  $region8: #{yolo_forward.19} parent=0 // pred_region
    _
  $region9: #{yolo_forward.19} parent=0 // pred_fallthru
    _
  // Predicated region
  $region10: #{yolo_forward.19} parent=0 // pred_check
    _
  $region11: #{yolo_forward.19} parent=0 // pred_check_branch
    %13 = sbr.rel (0) target = $region13
  $region12: #{yolo_forward.19} parent=0 // pred_region
    _
  $region13: #{yolo_forward.19} parent=0 // pred_fallthru
    _
  %v15 = vld [vmem:[%s0] sm:$0xff]
  %v16 = vld [vmem:[%s1] sm:$0xf]
  %v17 = vld [vmem:[%s1 + $0x4] sm:$0xf]
  %v18 = vld [vmem:[%s1 + $0x8] sm:$0xf]
  %v19 = vld [vmem:[%s1 + $0xc] sm:$0xf]
  %v20 = vld [vmem:[%s1 + $0x10] sm:$0xf]
  %v21 = vld [vmem:[%s1 + $0x14] sm:$0xf]
  %v22 = vld [vmem:[%s1 + $0x18] sm:$0xf]
  %v23 = vld [vmem:[%s1 + $0x1c] sm:$0xf]
  %v24 = vld [vmem:[%s1 + $0x20] sm:$0xf]
  %v25 = vld [vmem:[%s1 + $0x24] sm:$0xf]
  %v26 = vld [vmem:[%s1 + $0x28] sm:$0xf]
  %v27 = vld [vmem:[%s1 + $0x2c] sm:$0xf]
  %v28 = vld [vmem:[%s1 + $0x30] sm:$0xf]
  %v29 = vld [vmem:[%s1 + $0x34] sm:$0xf]
  %v30 = vld [vmem:[%s1 + $0x38] sm:$0xf]
  %v31 = vld [vmem:[%s1 + $0x3c] sm:$0xf]
  %v32 = vld [vmem:[%s1 + $0x40] sm:$0xf]
  %v33 = vld [vmem:[%s1 + $0x44] sm:$0xf]
  %v34 = vld [vmem:[%s1 + $0x48] sm:$0xf]
  %v35 = vld [vmem:[%s1 + $0x4c] sm:$0xf]
  %v36 = vld [vmem:[%s1 + $0x50] sm:$0xf]
  %v37 = vld [vmem:[%s1 + $0x54] sm:$0xf]
  %v38 = vld [vmem:[%s1 + $0x58] sm:$0xf]
  %v39 = vld [vmem:[%s1 + $0x5c] sm:$0xf]
  %v40 = vld [vmem:[%s1 + $0x60] sm:$0xf]
  %v41 = vld [vmem:[%s1 + $0x64] sm:$0xf]
  %v42 = vld [vmem:[%s1 + $0x68] sm:$0xf]
  %v43 = vld [vmem:[%s1 + $0x6c] sm:$0xf]
  %v44 = vld [vmem:[%s1 + $0x70] sm:$0xf]
  %v45 = vld [vmem:[%s1 + $0x74] sm:$0xf]
  %v46 = vld [vmem:[%s1 + $0x78] sm:$0xf]
  %v47 = vld [vmem:[%s1 + $0x7c] sm:$0xf]
  %v48 = vld [vmem:[%s2] sm:$0x1]
  %v50 = vlaneseq
  %v51 = vshrl.u32 %v50, 7
  %v52 = vsub.s32 0, %v51
  %v53 = vrot.slane %v48, %v52
  %v56 = vunpack.c.l.b16 %v15
  %v57 = vunpack.c.h.b16 %v15
  %v58 = vpack.c.b16 %v56, %v56
  %v59 = vpack.c.b16 %v57, %v57
  %v94 = vunpack.c.l.b16 %v16
  %v95 = vunpack.c.l.b16 %v17
  %v96 = vunpack.c.l.b16 %v18
  %v97 = vunpack.c.l.b16 %v19
  %v98 = vunpack.c.l.b16 %v20
  %v99 = vunpack.c.l.b16 %v21
  %v100 = vunpack.c.l.b16 %v22
  %v101 = vunpack.c.l.b16 %v23
  %v102 = vunpack.c.l.b16 %v24
  %v103 = vunpack.c.l.b16 %v25
  %v104 = vunpack.c.l.b16 %v26
  %v105 = vunpack.c.l.b16 %v27
  %v106 = vunpack.c.l.b16 %v28
  %v107 = vunpack.c.l.b16 %v29
  %v108 = vunpack.c.l.b16 %v30
  %v109 = vunpack.c.l.b16 %v31
  %v110 = vunpack.c.l.b16 %v32
  %v111 = vunpack.c.l.b16 %v33
  %v112 = vunpack.c.l.b16 %v34
  %v113 = vunpack.c.l.b16 %v35
  %v114 = vunpack.c.l.b16 %v36
  %v115 = vunpack.c.l.b16 %v37
  %v116 = vunpack.c.l.b16 %v38
  %v117 = vunpack.c.l.b16 %v39
  %v118 = vunpack.c.l.b16 %v40
  %v119 = vunpack.c.l.b16 %v41
  %v120 = vunpack.c.l.b16 %v42
  %v121 = vunpack.c.l.b16 %v43
  %v122 = vunpack.c.l.b16 %v44
  %v123 = vunpack.c.l.b16 %v45
  %v124 = vunpack.c.l.b16 %v46
  %v125 = vunpack.c.l.b16 %v47
  %v126 = vpack.c.b16 %v95, %v94
  %v127 = vpack.c.b16 %v97, %v96
  %v128 = vpack.c.b16 %v99, %v98
  %v129 = vpack.c.b16 %v101, %v100
  %v130 = vpack.c.b16 %v103, %v102
  %v131 = vpack.c.b16 %v105, %v104
  %v132 = vpack.c.b16 %v107, %v106
  %v133 = vpack.c.b16 %v109, %v108
  %v134 = vpack.c.b16 %v111, %v110
  %v135 = vpack.c.b16 %v113, %v112
  %v136 = vpack.c.b16 %v115, %v114
  %v137 = vpack.c.b16 %v117, %v116
  %v138 = vpack.c.b16 %v119, %v118
  %v139 = vpack.c.b16 %v121, %v120
  %v140 = vpack.c.b16 %v123, %v122
  %v141 = vpack.c.b16 %v125, %v124
  %158 = vmatprep.subr.bf16.mxu0 0
  %159 = vmatpush1.bf16.msra.mxu0 %v126
  %160 = vmatprep.subr.bf16.mxu0 0
  %161 = vmatpush1.bf16.msra.mxu0 %v127
  %162 = vmatprep.subr.bf16.mxu0 0
  %163 = vmatpush1.bf16.msra.mxu0 %v128
  %164 = vmatprep.subr.bf16.mxu0 0
  %165 = vmatpush1.bf16.msra.mxu0 %v129
  %166 = vmatprep.subr.bf16.mxu0 0
  %167 = vmatpush1.bf16.msra.mxu0 %v130
  %168 = vmatprep.subr.bf16.mxu0 0
  %169 = vmatpush1.bf16.msra.mxu0 %v131
  %170 = vmatprep.subr.bf16.mxu0 0
  %171 = vmatpush1.bf16.msra.mxu0 %v132
  %172 = vmatprep.subr.bf16.mxu0 0
  %173 = vmatpush1.bf16.msra.mxu0 %v133
  %174 = vmatprep.subr.bf16.mxu0 0
  %175 = vmatpush1.bf16.msra.mxu0 %v134
  %176 = vmatprep.subr.bf16.mxu0 0
  %177 = vmatpush1.bf16.msra.mxu0 %v135
  %178 = vmatprep.subr.bf16.mxu0 0
  %179 = vmatpush1.bf16.msra.mxu0 %v136
  %180 = vmatprep.subr.bf16.mxu0 0
  %181 = vmatpush1.bf16.msra.mxu0 %v137
  %182 = vmatprep.subr.bf16.mxu0 0
  %183 = vmatpush1.bf16.msra.mxu0 %v138
  %184 = vmatprep.subr.bf16.mxu0 0
  %185 = vmatpush1.bf16.msra.mxu0 %v139
  %186 = vmatprep.subr.bf16.mxu0 0
  %187 = vmatpush1.bf16.msra.mxu0 %v140
  %188 = vmatprep.subr.bf16.mxu0 0
  %189 = vmatpush1.bf16.msra.mxu0 %v141
  %190 = vmatprep.mubr.bf16.mxu0 %v59
  %191 = vmatmul.mubr.bf16.gmra.mrb[0].mxu0 %v58
  %v192 = vpop.f32.mrb[0].mxu0
  %v193 = vadd.f32 %v53, %v192
  %v194 = vpop.f32.mrb[0].mxu0
  %v195 = vpop.f32.mrb[0].mxu0
  %v196 = vpop.f32.mrb[0].mxu0
  %197 = vdwg.mxu0
  %v198 = vpack.c.bf16 %v193, %v193
  %vm199 = vcmask 76800
  %200 = vst.msk [vmem:[%s3] sm:$0xf] %vm199, %v198
  // Predicated region
  $region14: #{yolo_forward.19} parent=0 // pred_check
    _
  $region15: #{yolo_forward.19} parent=0 // pred_check_branch
    %202 = sbr.rel (0) target = $region17
  $region16: #{yolo_forward.19} parent=0 // pred_region
    _
  $region17: #{yolo_forward.19} parent=0 // pred_fallthru
    _
  // Predicated region
  $region18: #{yolo_forward.19} parent=0 // pred_check
    _
  $region19: #{yolo_forward.19} parent=0 // pred_check_branch
    %204 = sbr.rel (0) target = $region21
  $region20: #{yolo_forward.19} parent=0 // pred_region
    _
  $region21: #{yolo_forward.19} parent=0 // pred_fallthru
    _

// kernel: yolo_forward.17
$region0: #{yolo_forward.17}
  #allocation0 [shape = 'u32[]', space=smem, size = 0x4, offset = 0x4, fixed_abs, tag = 'smem constant byte address 0x4 - core index']
  #allocation1 [shape = 'u32[144,128]{1,0:T(1,128)}', space=vmem, size = 0x12000, scoped, tag = 'internal scratch']
  %s0 = inlined_call_operand.vmem [shape: bf16[8,2304], index: 0, kind: input, shape index: {}]
  %s1 = inlined_call_operand.vmem [shape: bf16[2304,256], index: 1, kind: input, shape index: {}]
  %s2 = inlined_call_operand.vmem [shape: f32[1,256], index: 2, kind: input, shape index: {}]
  %s3 = inlined_call_operand.vmem [shape: bf16[8,256], index: 3, kind: output, shape index: {}]
  %s4 = sld [smem:[#allocation0]]
  $region22: #{yolo_forward.17} parent=0
    _
  %s6 = ssub.s32 1, %s4
  %s7 = scalar_select 0, %s6, %s4
  // Predicated region
  $region2: #{yolo_forward.17} parent=0 // pred_check
    _
  $region3: #{yolo_forward.17} parent=0 // pred_check_branch
    %9 = sbr.rel (0) target = $region5
  $region4: #{yolo_forward.17} parent=0 // pred_region
    _
  $region5: #{yolo_forward.17} parent=0 // pred_fallthru
    _
  // Predicated region
  $region6: #{yolo_forward.17} parent=0 // pred_check
    _
  $region7: #{yolo_forward.17} parent=0 // pred_check_branch
    %11 = sbr.rel (0) target = $region9
  $region8: #{yolo_forward.17} parent=0 // pred_region
    _
  $region9: #{yolo_forward.17} parent=0 // pred_fallthru
    _
  // Predicated region
  $region10: #{yolo_forward.17} parent=0 // pred_check
    _
  $region11: #{yolo_forward.17} parent=0 // pred_check_branch
    %13 = sbr.rel (0) target = $region13
  $region12: #{yolo_forward.17} parent=0 // pred_region
    _
  $region13: #{yolo_forward.17} parent=0 // pred_fallthru
    _
  %v14 = vld [vmem:[%s0] sm:$0xff]
  %v15 = vld [vmem:[%s0 + $0x8] sm:$0xff]
  %v16 = vld [vmem:[%s0 + $0x10] sm:$0xff]
  %v17 = vld [vmem:[%s0 + $0x18] sm:$0xff]
  %v18 = vld [vmem:[%s0 + $0x20] sm:$0xff]
  %v19 = vld [vmem:[%s0 + $0x28] sm:$0xff]
  %v20 = vld [vmem:[%s0 + $0x30] sm:$0xff]
  %v21 = vld [vmem:[%s0 + $0x38] sm:$0xff]
  %v22 = vld [vmem:[%s0 + $0x40] sm:$0xff]
  %v23 = vld [vmem:[%s1] sm:$0xff]
  %v24 = vld [vmem:[%s1 + $0x8] sm:$0xff]
  %v25 = vld [vmem:[%s1 + $0x10] sm:$0xff]
  %v26 = vld [vmem:[%s1 + $0x18] sm:$0xff]
  %v27 = vld [vmem:[%s1 + $0x20] sm:$0xff]
  %v28 = vld [vmem:[%s1 + $0x28] sm:$0xff]
  %v29 = vld [vmem:[%s1 + $0x30] sm:$0xff]
  %v30 = vld [vmem:[%s1 + $0x38] sm:$0xff]
  %v31 = vld [vmem:[%s1 + $0x40] sm:$0xff]
  %v32 = vld [vmem:[%s1 + $0x48] sm:$0xff]
  %v33 = vld [vmem:[%s1 + $0x50] sm:$0xff]
  %v34 = vld [vmem:[%s1 + $0x58] sm:$0xff]
  %v35 = vld [vmem:[%s1 + $0x60] sm:$0xff]
  %v36 = vld [vmem:[%s1 + $0x68] sm:$0xff]
  %v37 = vld [vmem:[%s1 + $0x70] sm:$0xff]
  %v38 = vld [vmem:[%s1 + $0x78] sm:$0xff]
  %v39 = vld [vmem:[%s1 + $0x80] sm:$0xff]
  %v40 = vld [vmem:[%s1 + $0x88] sm:$0xff]
  %v41 = vld [vmem:[%s1 + $0x90] sm:$0xff]
  %v42 = vld [vmem:[%s1 + $0x98] sm:$0xff]
  %v43 = vld [vmem:[%s1 + $0xa0] sm:$0xff]
  %v44 = vld [vmem:[%s1 + $0xa8] sm:$0xff]
  %v45 = vld [vmem:[%s1 + $0xb0] sm:$0xff]
  %v46 = vld [vmem:[%s1 + $0xb8] sm:$0xff]
  %v47 = vld [vmem:[%s1 + $0xc0] sm:$0xff]
  %v48 = vld [vmem:[%s1 + $0xc8] sm:$0xff]
  %v49 = vld [vmem:[%s1 + $0xd0] sm:$0xff]
  %v50 = vld [vmem:[%s1 + $0xd8] sm:$0xff]
  %v51 = vld [vmem:[%s1 + $0xe0] sm:$0xff]
  %v52 = vld [vmem:[%s1 + $0xe8] sm:$0xff]
  %v53 = vld [vmem:[%s1 + $0xf0] sm:$0xff]
  %v54 = vld [vmem:[%s1 + $0xf8] sm:$0xff]
  %v55 = vld [vmem:[%s1 + $0x100] sm:$0xff]
  %v56 = vld [vmem:[%s1 + $0x108] sm:$0xff]
  %v57 = vld [vmem:[%s1 + $0x110] sm:$0xff]
  %v58 = vld [vmem:[%s1 + $0x118] sm:$0xff]
  %v59 = vld [vmem:[%s1 + $0x120] sm:$0xff]
  %v60 = vld [vmem:[%s1 + $0x128] sm:$0xff]
  %v61 = vld [vmem:[%s1 + $0x130] sm:$0xff]
  %v62 = vld [vmem:[%s1 + $0x138] sm:$0xff]
  %v63 = vld [vmem:[%s1 + $0x140] sm:$0xff]
  %v64 = vld [vmem:[%s1 + $0x148] sm:$0xff]
  %v65 = vld [vmem:[%s1 + $0x150] sm:$0xff]
  %v66 = vld [vmem:[%s1 + $0x158] sm:$0xff]
  %v67 = vld [vmem:[%s1 + $0x160] sm:$0xff]
  %v68 = vld [vmem:[%s1 + $0x168] sm:$0xff]
  %v69 = vld [vmem:[%s1 + $0x170] sm:$0xff]
  %v70 = vld [vmem:[%s1 + $0x178] sm:$0xff]
  %v71 = vld [vmem:[%s1 + $0x180] sm:$0xff]
  %v72 = vld [vmem:[%s1 + $0x188] sm:$0xff]
  %v73 = vld [vmem:[%s1 + $0x190] sm:$0xff]
  %v74 = vld [vmem:[%s1 + $0x198] sm:$0xff]
  %v75 = vld [vmem:[%s1 + $0x1a0] sm:$0xff]
  %v76 = vld [vmem:[%s1 + $0x1a8] sm:$0xff]
  %v77 = vld [vmem:[%s1 + $0x1b0] sm:$0xff]
  %v78 = vld [vmem:[%s1 + $0x1b8] sm:$0xff]
  %v79 = vld [vmem:[%s1 + $0x1c0] sm:$0xff]
  %v80 = vld [vmem:[%s1 + $0x1c8] sm:$0xff]
  %v81 = vld [vmem:[%s1 + $0x1d0] sm:$0xff]
  %v82 = vld [vmem:[%s1 + $0x1d8] sm:$0xff]
  %v83 = vld [vmem:[%s1 + $0x1e0] sm:$0xff]
  %v84 = vld [vmem:[%s1 + $0x1e8] sm:$0xff]
  %v85 = vld [vmem:[%s1 + $0x1f0] sm:$0xff]
  %v86 = vld [vmem:[%s1 + $0x1f8] sm:$0xff]
  %v87 = vld [vmem:[%s1 + $0x200] sm:$0xff]
  %v88 = vld [vmem:[%s1 + $0x208] sm:$0xff]
  %v89 = vld [vmem:[%s1 + $0x210] sm:$0xff]
  %v90 = vld [vmem:[%s1 + $0x218] sm:$0xff]
  %v91 = vld [vmem:[%s1 + $0x220] sm:$0xff]
  %v92 = vld [vmem:[%s1 + $0x228] sm:$0xff]
  %v93 = vld [vmem:[%s1 + $0x230] sm:$0xff]
  %v94 = vld [vmem:[%s1 + $0x238] sm:$0xff]
  %v95 = vld [vmem:[%s1 + $0x240] sm:$0xff]
  %v96 = vld [vmem:[%s1 + $0x248] sm:$0xff]
  %v97 = vld [vmem:[%s1 + $0x250] sm:$0xff]
  %v98 = vld [vmem:[%s1 + $0x258] sm:$0xff]
  %v99 = vld [vmem:[%s1 + $0x260] sm:$0xff]
  %v100 = vld [vmem:[%s1 + $0x268] sm:$0xff]
  %v101 = vld [vmem:[%s1 + $0x270] sm:$0xff]
  %v102 = vld [vmem:[%s1 + $0x278] sm:$0xff]
  %v103 = vld [vmem:[%s1 + $0x280] sm:$0xff]
  %v104 = vld [vmem:[%s1 + $0x288] sm:$0xff]
  %v105 = vld [vmem:[%s1 + $0x290] sm:$0xff]
  %v106 = vld [vmem:[%s1 + $0x298] sm:$0xff]
  %v107 = vld [vmem:[%s1 + $0x2a0] sm:$0xff]
  %v108 = vld [vmem:[%s1 + $0x2a8] sm:$0xff]
  %v109 = vld [vmem:[%s1 + $0x2b0] sm:$0xff]
  %v110 = vld [vmem:[%s1 + $0x2b8] sm:$0xff]
  %v111 = vld [vmem:[%s1 + $0x2c0] sm:$0xff]
  %v112 = vld [vmem:[%s1 + $0x2c8] sm:$0xff]
  %v113 = vld [vmem:[%s1 + $0x2d0] sm:$0xff]
  %v114 = vld [vmem:[%s1 + $0x2d8] sm:$0xff]
  %v115 = vld [vmem:[%s1 + $0x2e0] sm:$0xff]
  %v116 = vld [vmem:[%s1 + $0x2e8] sm:$0xff]
  %v117 = vld [vmem:[%s1 + $0x2f0] sm:$0xff]
  %v118 = vld [vmem:[%s1 + $0x2f8] sm:$0xff]
  %v119 = vld [vmem:[%s1 + $0x300] sm:$0xff]
  %v120 = vld [vmem:[%s1 + $0x308] sm:$0xff]
  %v121 = vld [vmem:[%s1 + $0x310] sm:$0xff]
  %v122 = vld [vmem:[%s1 + $0x318] sm:$0xff]
  %v123 = vld [vmem:[%s1 + $0x320] sm:$0xff]
  %v124 = vld [vmem:[%s1 + $0x328] sm:$0xff]
  %v125 = vld [vmem:[%s1 + $0x330] sm:$0xff]
  %v126 = vld [vmem:[%s1 + $0x338] sm:$0xff]
  %v127 = vld [vmem:[%s1 + $0x340] sm:$0xff]
  %v128 = vld [vmem:[%s1 + $0x348] sm:$0xff]
  %v129 = vld [vmem:[%s1 + $0x350] sm:$0xff]
  %v130 = vld [vmem:[%s1 + $0x358] sm:$0xff]
  %v131 = vld [vmem:[%s1 + $0x360] sm:$0xff]
  %v132 = vld [vmem:[%s1 + $0x368] sm:$0xff]
  %v133 = vld [vmem:[%s1 + $0x370] sm:$0xff]
  %v134 = vld [vmem:[%s1 + $0x378] sm:$0xff]
  %v135 = vld [vmem:[%s1 + $0x380] sm:$0xff]
  %v136 = vld [vmem:[%s1 + $0x388] sm:$0xff]
  %v137 = vld [vmem:[%s1 + $0x390] sm:$0xff]
  %v138 = vld [vmem:[%s1 + $0x398] sm:$0xff]
  %v139 = vld [vmem:[%s1 + $0x3a0] sm:$0xff]
  %v140 = vld [vmem:[%s1 + $0x3a8] sm:$0xff]
  %v141 = vld [vmem:[%s1 + $0x3b0] sm:$0xff]
  %v142 = vld [vmem:[%s1 + $0x3b8] sm:$0xff]
  %v143 = vld [vmem:[%s1 + $0x3c0] sm:$0xff]
  %v144 = vld [vmem:[%s1 + $0x3c8] sm:$0xff]
  %v145 = vld [vmem:[%s1 + $0x3d0] sm:$0xff]
  %v146 = vld [vmem:[%s1 + $0x3d8] sm:$0xff]
  %v147 = vld [vmem:[%s1 + $0x3e0] sm:$0xff]
  %v148 = vld [vmem:[%s1 + $0x3e8] sm:$0xff]
  %v149 = vld [vmem:[%s1 + $0x3f0] sm:$0xff]
  %v150 = vld [vmem:[%s1 + $0x3f8] sm:$0xff]
  %v151 = vld [vmem:[%s1 + $0x400] sm:$0xff]
  %v152 = vld [vmem:[%s1 + $0x408] sm:$0xff]
  %v153 = vld [vmem:[%s1 + $0x410] sm:$0xff]
  %v154 = vld [vmem:[%s1 + $0x418] sm:$0xff]
  %v155 = vld [vmem:[%s1 + $0x420] sm:$0xff]
  %v156 = vld [vmem:[%s1 + $0x428] sm:$0xff]
  %v157 = vld [vmem:[%s1 + $0x430] sm:$0xff]
  %v158 = vld [vmem:[%s1 + $0x438] sm:$0xff]
  %v159 = vld [vmem:[%s1 + $0x440] sm:$0xff]
  %v160 = vld [vmem:[%s1 + $0x448] sm:$0xff]
  %v161 = vld [vmem:[%s1 + $0x450] sm:$0xff]
  %v162 = vld [vmem:[%s1 + $0x458] sm:$0xff]
  %v163 = vld [vmem:[%s1 + $0x460] sm:$0xff]
  %v164 = vld [vmem:[%s1 + $0x468] sm:$0xff]
  %v165 = vld [vmem:[%s1 + $0x470] sm:$0xff]
  %v166 = vld [vmem:[%s1 + $0x478] sm:$0xff]
  %v167 = vld [vmem:[%s1 + $0x480] sm:$0xff]
  %v168 = vld [vmem:[%s1 + $0x488] sm:$0xff]
  %v169 = vld [vmem:[%s1 + $0x490] sm:$0xff]
  %v170 = vld [vmem:[%s1 + $0x498] sm:$0xff]
  %v171 = vld [vmem:[%s1 + $0x4a0] sm:$0xff]
  %v172 = vld [vmem:[%s1 + $0x4a8] sm:$0xff]
  %v173 = vld [vmem:[%s1 + $0x4b0] sm:$0xff]
  %v174 = vld [vmem:[%s1 + $0x4b8] sm:$0xff]
  %v175 = vld [vmem:[%s1 + $0x4c0] sm:$0xff]
  %v176 = vld [vmem:[%s1 + $0x4c8] sm:$0xff]
  %v177 = vld [vmem:[%s1 + $0x4d0] sm:$0xff]
  %v178 = vld [vmem:[%s1 + $0x4d8] sm:$0xff]
  %v179 = vld [vmem:[%s1 + $0x4e0] sm:$0xff]
  %v180 = vld [vmem:[%s1 + $0x4e8] sm:$0xff]
  %v181 = vld [vmem:[%s1 + $0x4f0] sm:$0xff]
  %v182 = vld [vmem:[%s1 + $0x4f8] sm:$0xff]
  %v183 = vld [vmem:[%s1 + $0x500] sm:$0xff]
  %v184 = vld [vmem:[%s1 + $0x508] sm:$0xff]
  %v185 = vld [vmem:[%s1 + $0x510] sm:$0xff]
  %v186 = vld [vmem:[%s1 + $0x518] sm:$0xff]
  %v187 = vld [vmem:[%s1 + $0x520] sm:$0xff]
  %v188 = vld [vmem:[%s1 + $0x528] sm:$0xff]
  %v189 = vld [vmem:[%s1 + $0x530] sm:$0xff]
  %v190 = vld [vmem:[%s1 + $0x538] sm:$0xff]
  %v191 = vld [vmem:[%s1 + $0x540] sm:$0xff]
  %v192 = vld [vmem:[%s1 + $0x548] sm:$0xff]
  %v193 = vld [vmem:[%s1 + $0x550] sm:$0xff]
  %v194 = vld [vmem:[%s1 + $0x558] sm:$0xff]
  %v195 = vld [vmem:[%s1 + $0x560] sm:$0xff]
  %v196 = vld [vmem:[%s1 + $0x568] sm:$0xff]
  %v197 = vld [vmem:[%s1 + $0x570] sm:$0xff]
  %v198 = vld [vmem:[%s1 + $0x578] sm:$0xff]
  %v199 = vld [vmem:[%s1 + $0x580] sm:$0xff]
  %v200 = vld [vmem:[%s1 + $0x588] sm:$0xff]
  %v201 = vld [vmem:[%s1 + $0x590] sm:$0xff]
  %v202 = vld [vmem:[%s1 + $0x598] sm:$0xff]
  %v203 = vld [vmem:[%s1 + $0x5a0] sm:$0xff]
  %v204 = vld [vmem:[%s1 + $0x5a8] sm:$0xff]
  %v205 = vld [vmem:[%s1 + $0x5b0] sm:$0xff]
  %v206 = vld [vmem:[%s1 + $0x5b8] sm:$0xff]
  %v207 = vld [vmem:[%s1 + $0x5c0] sm:$0xff]
  %v208 = vld [vmem:[%s1 + $0x5c8] sm:$0xff]
  %v209 = vld [vmem:[%s1 + $0x5d0] sm:$0xff]
  %v210 = vld [vmem:[%s1 + $0x5d8] sm:$0xff]
  %v211 = vld [vmem:[%s1 + $0x5e0] sm:$0xff]
  %v212 = vld [vmem:[%s1 + $0x5e8] sm:$0xff]
  %v213 = vld [vmem:[%s1 + $0x5f0] sm:$0xff]
  %v214 = vld [vmem:[%s1 + $0x5f8] sm:$0xff]
  %v215 = vld [vmem:[%s1 + $0x600] sm:$0xff]
  %v216 = vld [vmem:[%s1 + $0x608] sm:$0xff]
  %v217 = vld [vmem:[%s1 + $0x610] sm:$0xff]
  %v218 = vld [vmem:[%s1 + $0x618] sm:$0xff]
  %v219 = vld [vmem:[%s1 + $0x620] sm:$0xff]
  %v220 = vld [vmem:[%s1 + $0x628] sm:$0xff]
  %v221 = vld [vmem:[%s1 + $0x630] sm:$0xff]
  %v222 = vld [vmem:[%s1 + $0x638] sm:$0xff]
  %v223 = vld [vmem:[%s1 + $0x640] sm:$0xff]
  %v224 = vld [vmem:[%s1 + $0x648] sm:$0xff]
  %v225 = vld [vmem:[%s1 + $0x650] sm:$0xff]
  %v226 = vld [vmem:[%s1 + $0x658] sm:$0xff]
  %v227 = vld [vmem:[%s1 + $0x660] sm:$0xff]
  %v228 = vld [vmem:[%s1 + $0x668] sm:$0xff]
  %v229 = vld [vmem:[%s1 + $0x670] sm:$0xff]
  %v230 = vld [vmem:[%s1 + $0x678] sm:$0xff]
  %v231 = vld [vmem:[%s1 + $0x680] sm:$0xff]
  %v232 = vld [vmem:[%s1 + $0x688] sm:$0xff]
  %v233 = vld [vmem:[%s1 + $0x690] sm:$0xff]
  %v234 = vld [vmem:[%s1 + $0x698] sm:$0xff]
  %v235 = vld [vmem:[%s1 + $0x6a0] sm:$0xff]
  %v236 = vld [vmem:[%s1 + $0x6a8] sm:$0xff]
  %v237 = vld [vmem:[%s1 + $0x6b0] sm:$0xff]
  %v238 = vld [vmem:[%s1 + $0x6b8] sm:$0xff]
  %v239 = vld [vmem:[%s1 + $0x6c0] sm:$0xff]
  %v240 = vld [vmem:[%s1 + $0x6c8] sm:$0xff]
  %v241 = vld [vmem:[%s1 + $0x6d0] sm:$0xff]
  %v242 = vld [vmem:[%s1 + $0x6d8] sm:$0xff]
  %v243 = vld [vmem:[%s1 + $0x6e0] sm:$0xff]
  %v244 = vld [vmem:[%s1 + $0x6e8] sm:$0xff]
  %v245 = vld [vmem:[%s1 + $0x6f0] sm:$0xff]
  %v246 = vld [vmem:[%s1 + $0x6f8] sm:$0xff]
  %v247 = vld [vmem:[%s1 + $0x700] sm:$0xff]
  %v248 = vld [vmem:[%s1 + $0x708] sm:$0xff]
  %v249 = vld [vmem:[%s1 + $0x710] sm:$0xff]
  %v250 = vld [vmem:[%s1 + $0x718] sm:$0xff]
  %v251 = vld [vmem:[%s1 + $0x720] sm:$0xff]
  %v252 = vld [vmem:[%s1 + $0x728] sm:$0xff]
  %v253 = vld [vmem:[%s1 + $0x730] sm:$0xff]
  %v254 = vld [vmem:[%s1 + $0x738] sm:$0xff]
  %v255 = vld [vmem:[%s1 + $0x740] sm:$0xff]
  %v256 = vld [vmem:[%s1 + $0x748] sm:$0xff]
  %v257 = vld [vmem:[%s1 + $0x750] sm:$0xff]
  %v258 = vld [vmem:[%s1 + $0x758] sm:$0xff]
  %v259 = vld [vmem:[%s1 + $0x760] sm:$0xff]
  %v260 = vld [vmem:[%s1 + $0x768] sm:$0xff]
  %v261 = vld [vmem:[%s1 + $0x770] sm:$0xff]
  %v262 = vld [vmem:[%s1 + $0x778] sm:$0xff]
  %v263 = vld [vmem:[%s1 + $0x780] sm:$0xff]
  %v264 = vld [vmem:[%s1 + $0x788] sm:$0xff]
  %v265 = vld [vmem:[%s1 + $0x790] sm:$0xff]
  %v266 = vld [vmem:[%s1 + $0x798] sm:$0xff]
  %v267 = vld [vmem:[%s1 + $0x7a0] sm:$0xff]
  %v268 = vld [vmem:[%s1 + $0x7a8] sm:$0xff]
  %v269 = vld [vmem:[%s1 + $0x7b0] sm:$0xff]
  %v270 = vld [vmem:[%s1 + $0x7b8] sm:$0xff]
  %v271 = vld [vmem:[%s1 + $0x7c0] sm:$0xff]
  %v272 = vld [vmem:[%s1 + $0x7c8] sm:$0xff]
  %v273 = vld [vmem:[%s1 + $0x7d0] sm:$0xff]
  %v274 = vld [vmem:[%s1 + $0x7d8] sm:$0xff]
  %v275 = vld [vmem:[%s1 + $0x7e0] sm:$0xff]
  %v276 = vld [vmem:[%s1 + $0x7e8] sm:$0xff]
  %v277 = vld [vmem:[%s1 + $0x7f0] sm:$0xff]
  %v278 = vld [vmem:[%s1 + $0x7f8] sm:$0xff]
  %v279 = vld [vmem:[%s1 + $0x800] sm:$0xff]
  %v280 = vld [vmem:[%s1 + $0x808] sm:$0xff]
  %v281 = vld [vmem:[%s1 + $0x810] sm:$0xff]
  %v282 = vld [vmem:[%s1 + $0x818] sm:$0xff]
  %v283 = vld [vmem:[%s1 + $0x820] sm:$0xff]
  %v284 = vld [vmem:[%s1 + $0x828] sm:$0xff]
  %v285 = vld [vmem:[%s1 + $0x830] sm:$0xff]
  %v286 = vld [vmem:[%s1 + $0x838] sm:$0xff]
  %v287 = vld [vmem:[%s1 + $0x840] sm:$0xff]
  %v288 = vld [vmem:[%s1 + $0x848] sm:$0xff]
  %v289 = vld [vmem:[%s1 + $0x850] sm:$0xff]
  %v290 = vld [vmem:[%s1 + $0x858] sm:$0xff]
  %v291 = vld [vmem:[%s1 + $0x860] sm:$0xff]
  %v292 = vld [vmem:[%s1 + $0x868] sm:$0xff]
  %v293 = vld [vmem:[%s1 + $0x870] sm:$0xff]
  %v294 = vld [vmem:[%s1 + $0x878] sm:$0xff]
  %v295 = vld [vmem:[%s1 + $0x880] sm:$0xff]
  %v296 = vld [vmem:[%s1 + $0x888] sm:$0xff]
  %v297 = vld [vmem:[%s1 + $0x890] sm:$0xff]
  %v298 = vld [vmem:[%s1 + $0x898] sm:$0xff]
  %v299 = vld [vmem:[%s1 + $0x8a0] sm:$0xff]
  %v300 = vld [vmem:[%s1 + $0x8a8] sm:$0xff]
  %v301 = vld [vmem:[%s1 + $0x8b0] sm:$0xff]
  %v302 = vld [vmem:[%s1 + $0x8b8] sm:$0xff]
  %v303 = vld [vmem:[%s1 + $0x8c0] sm:$0xff]
  %v304 = vld [vmem:[%s1 + $0x8c8] sm:$0xff]
  %v305 = vld [vmem:[%s1 + $0x8d0] sm:$0xff]
  %v306 = vld [vmem:[%s1 + $0x8d8] sm:$0xff]
  %v307 = vld [vmem:[%s1 + $0x8e0] sm:$0xff]
  %v308 = vld [vmem:[%s1 + $0x8e8] sm:$0xff]
  %v309 = vld [vmem:[%s1 + $0x8f0] sm:$0xff]
  %v310 = vld [vmem:[%s1 + $0x8f8] sm:$0xff]
  %v311 = vld [vmem:[%s2] sm:$0x3]
  %v313 = vlaneseq
  %v314 = vshrl.u32 %v313, 7
  %v315 = vsub.s32 0, %v314
  %v316 = vrot.slane %v311, %v315
  %v317 = vlaneseq
  %v318 = vshrl.u32 %v317, 7
  %v319 = vsub.s32 1, %v318
  %v320 = vrot.slane %v311, %v319
  %v332 = vunpack.c.l.b16 %v14
  %v333 = vunpack.c.h.b16 %v14
  %v334 = vunpack.c.l.b16 %v15
  %v335 = vunpack.c.h.b16 %v15
  %v336 = vunpack.c.l.b16 %v16
  %v337 = vunpack.c.h.b16 %v16
  %v338 = vunpack.c.l.b16 %v17
  %v339 = vunpack.c.h.b16 %v17
  %v340 = vunpack.c.l.b16 %v18
  %v341 = vunpack.c.h.b16 %v18
  %v342 = vunpack.c.l.b16 %v19
  %v343 = vunpack.c.h.b16 %v19
  %v344 = vunpack.c.l.b16 %v20
  %v345 = vunpack.c.h.b16 %v20
  %v346 = vunpack.c.l.b16 %v21
  %v347 = vunpack.c.h.b16 %v21
  %v348 = vunpack.c.l.b16 %v22
  %v349 = vunpack.c.h.b16 %v22
  %v350 = vpack.c.b16 %v332, %v332
  %v351 = vpack.c.b16 %v333, %v333
  %v352 = vpack.c.b16 %v334, %v334
  %v353 = vpack.c.b16 %v335, %v335
  %v354 = vpack.c.b16 %v336, %v336
  %v355 = vpack.c.b16 %v337, %v337
  %v356 = vpack.c.b16 %v338, %v338
  %v357 = vpack.c.b16 %v339, %v339
  %v358 = vpack.c.b16 %v340, %v340
  %v359 = vpack.c.b16 %v341, %v341
  %v360 = vpack.c.b16 %v342, %v342
  %v361 = vpack.c.b16 %v343, %v343
  %v362 = vpack.c.b16 %v344, %v344
  %v363 = vpack.c.b16 %v345, %v345
  %v364 = vpack.c.b16 %v346, %v346
  %v365 = vpack.c.b16 %v347, %v347
  %v366 = vpack.c.b16 %v348, %v348
  %v367 = vpack.c.b16 %v349, %v349
  %v674 = vunpack.c.l.b16 %v23
  %v675 = vunpack.c.h.b16 %v23
  %v676 = vunpack.c.l.b16 %v24
  %v677 = vunpack.c.h.b16 %v24
  %v678 = vunpack.c.l.b16 %v25
  %v679 = vunpack.c.h.b16 %v25
  %v680 = vunpack.c.l.b16 %v26
  %v681 = vunpack.c.h.b16 %v26
  %v682 = vunpack.c.l.b16 %v27
  %v683 = vunpack.c.h.b16 %v27
  %v684 = vunpack.c.l.b16 %v28
  %v685 = vunpack.c.h.b16 %v28
  %v686 = vunpack.c.l.b16 %v29
  %v687 = vunpack.c.h.b16 %v29
  %v688 = vunpack.c.l.b16 %v30
  %v689 = vunpack.c.h.b16 %v30
  %v690 = vunpack.c.l.b16 %v31
  %v691 = vunpack.c.h.b16 %v31
  %v692 = vunpack.c.l.b16 %v32
  %v693 = vunpack.c.h.b16 %v32
  %v694 = vunpack.c.l.b16 %v33
  %v695 = vunpack.c.h.b16 %v33
  %v696 = vunpack.c.l.b16 %v34
  %v697 = vunpack.c.h.b16 %v34
  %v698 = vunpack.c.l.b16 %v35
  %v699 = vunpack.c.h.b16 %v35
  %v700 = vunpack.c.l.b16 %v36
  %v701 = vunpack.c.h.b16 %v36
  %v702 = vunpack.c.l.b16 %v37
  %v703 = vunpack.c.h.b16 %v37
  %v704 = vunpack.c.l.b16 %v38
  %v705 = vunpack.c.h.b16 %v38
  %v706 = vunpack.c.l.b16 %v39
  %v707 = vunpack.c.h.b16 %v39
  %v708 = vunpack.c.l.b16 %v40
  %v709 = vunpack.c.h.b16 %v40
  %v710 = vunpack.c.l.b16 %v41
  %v711 = vunpack.c.h.b16 %v41
  %v712 = vunpack.c.l.b16 %v42
  %v713 = vunpack.c.h.b16 %v42
  %v714 = vunpack.c.l.b16 %v43
  %v715 = vunpack.c.h.b16 %v43
  %v716 = vunpack.c.l.b16 %v44
  %v717 = vunpack.c.h.b16 %v44
  %v718 = vunpack.c.l.b16 %v45
  %v719 = vunpack.c.h.b16 %v45
  %v720 = vunpack.c.l.b16 %v46
  %v721 = vunpack.c.h.b16 %v46
  %v722 = vunpack.c.l.b16 %v47
  %v723 = vunpack.c.h.b16 %v47
  %v724 = vunpack.c.l.b16 %v48
  %v725 = vunpack.c.h.b16 %v48
  %v726 = vunpack.c.l.b16 %v49
  %v727 = vunpack.c.h.b16 %v49
  %v728 = vunpack.c.l.b16 %v50
  %v729 = vunpack.c.h.b16 %v50
  %v730 = vunpack.c.l.b16 %v51
  %v731 = vunpack.c.h.b16 %v51
  %v732 = vunpack.c.l.b16 %v52
  %v733 = vunpack.c.h.b16 %v52
  %v734 = vunpack.c.l.b16 %v53
  %v735 = vunpack.c.h.b16 %v53
  %v736 = vunpack.c.l.b16 %v54
  %v737 = vunpack.c.h.b16 %v54
  %v738 = vunpack.c.l.b16 %v55
  %v739 = vunpack.c.h.b16 %v55
  %v740 = vunpack.c.l.b16 %v56
  %v741 = vunpack.c.h.b16 %v56
  %v742 = vunpack.c.l.b16 %v57
  %v743 = vunpack.c.h.b16 %v57
  %v744 = vunpack.c.l.b16 %v58
  %v745 = vunpack.c.h.b16 %v58
  %v746 = vunpack.c.l.b16 %v59
  %v747 = vunpack.c.h.b16 %v59
  %v748 = vunpack.c.l.b16 %v60
  %v749 = vunpack.c.h.b16 %v60
  %v750 = vunpack.c.l.b16 %v61
  %v751 = vunpack.c.h.b16 %v61
  %v752 = vunpack.c.l.b16 %v62
  %v753 = vunpack.c.h.b16 %v62
  %v754 = vunpack.c.l.b16 %v63
  %v755 = vunpack.c.h.b16 %v63
  %v756 = vunpack.c.l.b16 %v64
  %v757 = vunpack.c.h.b16 %v64
  %v758 = vunpack.c.l.b16 %v65
  %v759 = vunpack.c.h.b16 %v65
  %v760 = vunpack.c.l.b16 %v66
  %v761 = vunpack.c.h.b16 %v66
  %v762 = vunpack.c.l.b16 %v67
  %v763 = vunpack.c.h.b16 %v67
  %v764 = vunpack.c.l.b16 %v68
  %v765 = vunpack.c.h.b16 %v68
  %v766 = vunpack.c.l.b16 %v69
  %v767 = vunpack.c.h.b16 %v69
  %v768 = vunpack.c.l.b16 %v70
  %v769 = vunpack.c.h.b16 %v70
  %v770 = vunpack.c.l.b16 %v71
  %v771 = vunpack.c.h.b16 %v71
  %v772 = vunpack.c.l.b16 %v72
  %v773 = vunpack.c.h.b16 %v72
  %v774 = vunpack.c.l.b16 %v73
  %v775 = vunpack.c.h.b16 %v73
  %v776 = vunpack.c.l.b16 %v74
  %v777 = vunpack.c.h.b16 %v74
  %v778 = vunpack.c.l.b16 %v75
  %v779 = vunpack.c.h.b16 %v75
  %v780 = vunpack.c.l.b16 %v76
  %v781 = vunpack.c.h.b16 %v76
  %v782 = vunpack.c.l.b16 %v77
  %v783 = vunpack.c.h.b16 %v77
  %v784 = vunpack.c.l.b16 %v78
  %v785 = vunpack.c.h.b16 %v78
  %v786 = vunpack.c.l.b16 %v79
  %v787 = vunpack.c.h.b16 %v79
  %v788 = vunpack.c.l.b16 %v80
  %v789 = vunpack.c.h.b16 %v80
  %v790 = vunpack.c.l.b16 %v81
  %v791 = vunpack.c.h.b16 %v81
  %v792 = vunpack.c.l.b16 %v82
  %v793 = vunpack.c.h.b16 %v82
  %v794 = vunpack.c.l.b16 %v83
  %v795 = vunpack.c.h.b16 %v83
  %v796 = vunpack.c.l.b16 %v84
  %v797 = vunpack.c.h.b16 %v84
  %v798 = vunpack.c.l.b16 %v85
  %v799 = vunpack.c.h.b16 %v85
  %v800 = vunpack.c.l.b16 %v86
  %v801 = vunpack.c.h.b16 %v86
  %v802 = vunpack.c.l.b16 %v87
  %v803 = vunpack.c.h.b16 %v87
  %v804 = vunpack.c.l.b16 %v88
  %v805 = vunpack.c.h.b16 %v88
  %v806 = vunpack.c.l.b16 %v89
  %v807 = vunpack.c.h.b16 %v89
  %v808 = vunpack.c.l.b16 %v90
  %v809 = vunpack.c.h.b16 %v90
  %v810 = vunpack.c.l.b16 %v91
  %v811 = vunpack.c.h.b16 %v91
  %v812 = vunpack.c.l.b16 %v92
  %v813 = vunpack.c.h.b16 %v92
  %v814 = vunpack.c.l.b16 %v93
  %v815 = vunpack.c.h.b16 %v93
  %v816 = vunpack.c.l.b16 %v94
  %v817 = vunpack.c.h.b16 %v94
  %v818 = vunpack.c.l.b16 %v95
  %v819 = vunpack.c.h.b16 %v95
  %v820 = vunpack.c.l.b16 %v96
  %v821 = vunpack.c.h.b16 %v96
  %v822 = vunpack.c.l.b16 %v97
  %v823 = vunpack.c.h.b16 %v97
  %v824 = vunpack.c.l.b16 %v98
  %v825 = vunpack.c.h.b16 %v98
  %v826 = vunpack.c.l.b16 %v99
  %v827 = vunpack.c.h.b16 %v99
  %v828 = vunpack.c.l.b16 %v100
  %v829 = vunpack.c.h.b16 %v100
  %v830 = vunpack.c.l.b16 %v101
  %v831 = vunpack.c.h.b16 %v101
  %v832 = vunpack.c.l.b16 %v102
  %v833 = vunpack.c.h.b16 %v102
  %v834 = vunpack.c.l.b16 %v103
  %v835 = vunpack.c.h.b16 %v103
  %v836 = vunpack.c.l.b16 %v104
  %v837 = vunpack.c.h.b16 %v104
  %v838 = vunpack.c.l.b16 %v105
  %v839 = vunpack.c.h.b16 %v105
  %v840 = vunpack.c.l.b16 %v106
  %v841 = vunpack.c.h.b16 %v106
  %v842 = vunpack.c.l.b16 %v107
  %v843 = vunpack.c.h.b16 %v107
  %v844 = vunpack.c.l.b16 %v108
  %v845 = vunpack.c.h.b16 %v108
  %v846 = vunpack.c.l.b16 %v109
  %v847 = vunpack.c.h.b16 %v109
  %v848 = vunpack.c.l.b16 %v110
  %v849 = vunpack.c.h.b16 %v110
  %v850 = vunpack.c.l.b16 %v111
  %v851 = vunpack.c.h.b16 %v111
  %v852 = vunpack.c.l.b16 %v112
  %v853 = vunpack.c.h.b16 %v112
  %v854 = vunpack.c.l.b16 %v113
  %v855 = vunpack.c.h.b16 %v113
  %v856 = vunpack.c.l.b16 %v114
  %v857 = vunpack.c.h.b16 %v114
  %v858 = vunpack.c.l.b16 %v115
  %v859 = vunpack.c.h.b16 %v115
  %v860 = vunpack.c.l.b16 %v116
  %v861 = vunpack.c.h.b16 %v116
  %v862 = vunpack.c.l.b16 %v117
  %v863 = vunpack.c.h.b16 %v117
  %v864 = vunpack.c.l.b16 %v118
  %v865 = vunpack.c.h.b16 %v118
  %v866 = vunpack.c.l.b16 %v119
  %v867 = vunpack.c.h.b16 %v119
  %v868 = vunpack.c.l.b16 %v120
  %v869 = vunpack.c.h.b16 %v120
  %v870 = vunpack.c.l.b16 %v121
  %v871 = vunpack.c.h.b16 %v121
  %v872 = vunpack.c.l.b16 %v122
  %v873 = vunpack.c.h.b16 %v122
  %v874 = vunpack.c.l.b16 %v123
  %v875 = vunpack.c.h.b16 %v123
  %v876 = vunpack.c.l.b16 %v124
  %v877 = vunpack.c.h.b16 %v124
  %v878 = vunpack.c.l.b16 %v125
  %v879 = vunpack.c.h.b16 %v125
  %v880 = vunpack.c.l.b16 %v126
  %v881 = vunpack.c.h.b16 %v126
  %v882 = vunpack.c.l.b16 %v127
  %v883 = vunpack.c.h.b16 %v127
  %v884 = vunpack.c.l.b16 %v128
  %v885 = vunpack.c.h.b16 %v128
  %v886 = vunpack.c.l.b16 %v129
  %v887 = vunpack.c.h.b16 %v129
  %v888 = vunpack.c.l.b16 %v130
  %v889 = vunpack.c.h.b16 %v130
  %v890 = vunpack.c.l.b16 %v131
  %v891 = vunpack.c.h.b16 %v131
  %v892 = vunpack.c.l.b16 %v132
  %v893 = vunpack.c.h.b16 %v132
  %v894 = vunpack.c.l.b16 %v133
  %v895 = vunpack.c.h.b16 %v133
  %v896 = vunpack.c.l.b16 %v134
  %v897 = vunpack.c.h.b16 %v134
  %v898 = vunpack.c.l.b16 %v135
  %v899 = vunpack.c.h.b16 %v135
  %v900 = vunpack.c.l.b16 %v136
  %v901 = vunpack.c.h.b16 %v136
  %v902 = vunpack.c.l.b16 %v137
  %v903 = vunpack.c.h.b16 %v137
  %v904 = vunpack.c.l.b16 %v138
  %v905 = vunpack.c.h.b16 %v138
  %v906 = vunpack.c.l.b16 %v139
  %v907 = vunpack.c.h.b16 %v139
  %v908 = vunpack.c.l.b16 %v140
  %v909 = vunpack.c.h.b16 %v140
  %v910 = vunpack.c.l.b16 %v141
  %v911 = vunpack.c.h.b16 %v141
  %v912 = vunpack.c.l.b16 %v142
  %v913 = vunpack.c.h.b16 %v142
  %v914 = vunpack.c.l.b16 %v143
  %v915 = vunpack.c.h.b16 %v143
  %v916 = vunpack.c.l.b16 %v144
  %v917 = vunpack.c.h.b16 %v144
  %v918 = vunpack.c.l.b16 %v145
  %v919 = vunpack.c.h.b16 %v145
  %v920 = vunpack.c.l.b16 %v146
  %v921 = vunpack.c.h.b16 %v146
  %v922 = vunpack.c.l.b16 %v147
  %v923 = vunpack.c.h.b16 %v147
  %v924 = vunpack.c.l.b16 %v148
  %v925 = vunpack.c.h.b16 %v148
  %v926 = vunpack.c.l.b16 %v149
  %v927 = vunpack.c.h.b16 %v149
  %v928 = vunpack.c.l.b16 %v150
  %v929 = vunpack.c.h.b16 %v150
  %v930 = vunpack.c.l.b16 %v151
  %v931 = vunpack.c.h.b16 %v151
  %v932 = vunpack.c.l.b16 %v152
  %v933 = vunpack.c.h.b16 %v152
  %v934 = vunpack.c.l.b16 %v153
  %v935 = vunpack.c.h.b16 %v153
  %v936 = vunpack.c.l.b16 %v154
  %v937 = vunpack.c.h.b16 %v154
  %v938 = vunpack.c.l.b16 %v155
  %v939 = vunpack.c.h.b16 %v155
  %v940 = vunpack.c.l.b16 %v156
  %v941 = vunpack.c.h.b16 %v156
  %v942 = vunpack.c.l.b16 %v157
  %v943 = vunpack.c.h.b16 %v157
  %v944 = vunpack.c.l.b16 %v158
  %v945 = vunpack.c.h.b16 %v158
  %v946 = vunpack.c.l.b16 %v159
  %v947 = vunpack.c.h.b16 %v159
  %v948 = vunpack.c.l.b16 %v160
  %v949 = vunpack.c.h.b16 %v160
  %v950 = vunpack.c.l.b16 %v161
  %v951 = vunpack.c.h.b16 %v161
  %v952 = vunpack.c.l.b16 %v162
  %v953 = vunpack.c.h.b16 %v162
  %v954 = vunpack.c.l.b16 %v163
  %v955 = vunpack.c.h.b16 %v163
  %v956 = vunpack.c.l.b16 %v164
  %v957 = vunpack.c.h.b16 %v164
  %v958 = vunpack.c.l.b16 %v165
  %v959 = vunpack.c.h.b16 %v165
  %v960 = vunpack.c.l.b16 %v166
  %v961 = vunpack.c.h.b16 %v166
  %v962 = vunpack.c.l.b16 %v167
  %v963 = vunpack.c.h.b16 %v167
  %v964 = vunpack.c.l.b16 %v168
  %v965 = vunpack.c.h.b16 %v168
  %v966 = vunpack.c.l.b16 %v169
  %v967 = vunpack.c.h.b16 %v169
  %v968 = vunpack.c.l.b16 %v170
  %v969 = vunpack.c.h.b16 %v170
  %v970 = vunpack.c.l.b16 %v171
  %v971 = vunpack.c.h.b16 %v171
  %v972 = vunpack.c.l.b16 %v172
  %v973 = vunpack.c.h.b16 %v172
  %v974 = vunpack.c.l.b16 %v173
  %v975 = vunpack.c.h.b16 %v173
  %v976 = vunpack.c.l.b16 %v174
  %v977 = vunpack.c.h.b16 %v174
  %v978 = vunpack.c.l.b16 %v175
  %v979 = vunpack.c.h.b16 %v175
  %v980 = vunpack.c.l.b16 %v176
  %v981 = vunpack.c.h.b16 %v176
  %v982 = vunpack.c.l.b16 %v177
  %v983 = vunpack.c.h.b16 %v177
  %v984 = vunpack.c.l.b16 %v178
  %v985 = vunpack.c.h.b16 %v178
  %v986 = vunpack.c.l.b16 %v179
  %v987 = vunpack.c.h.b16 %v179
  %v988 = vunpack.c.l.b16 %v180
  %v989 = vunpack.c.h.b16 %v180
  %v990 = vunpack.c.l.b16 %v181
  %v991 = vunpack.c.h.b16 %v181
  %v992 = vunpack.c.l.b16 %v182
  %v993 = vunpack.c.h.b16 %v182
  %v994 = vunpack.c.l.b16 %v183
  %v995 = vunpack.c.h.b16 %v183
  %v996 = vunpack.c.l.b16 %v184
  %v997 = vunpack.c.h.b16 %v184
  %v998 = vunpack.c.l.b16 %v185
  %v999 = vunpack.c.h.b16 %v185
  %v1000 = vunpack.c.l.b16 %v186
  %v1001 = vunpack.c.h.b16 %v186
  %v1002 = vunpack.c.l.b16 %v187
  %v1003 = vunpack.c.h.b16 %v187
  %v1004 = vunpack.c.l.b16 %v188
  %v1005 = vunpack.c.h.b16 %v188
  %v1006 = vunpack.c.l.b16 %v189
  %v1007 = vunpack.c.h.b16 %v189
  %v1008 = vunpack.c.l.b16 %v190
  %v1009 = vunpack.c.h.b16 %v190
  %v1010 = vunpack.c.l.b16 %v191
  %v1011 = vunpack.c.h.b16 %v191
  %v1012 = vunpack.c.l.b16 %v192
  %v1013 = vunpack.c.h.b16 %v192
  %v1014 = vunpack.c.l.b16 %v193
  %v1015 = vunpack.c.h.b16 %v193
  %v1016 = vunpack.c.l.b16 %v194
  %v1017 = vunpack.c.h.b16 %v194
  %v1018 = vunpack.c.l.b16 %v195
  %v1019 = vunpack.c.h.b16 %v195
  %v1020 = vunpack.c.l.b16 %v196
  %v1021 = vunpack.c.h.b16 %v196
  %v1022 = vunpack.c.l.b16 %v197
  %v1023 = vunpack.c.h.b16 %v197
  %v1024 = vunpack.c.l.b16 %v198
  %v1025 = vunpack.c.h.b16 %v198
  %v1026 = vunpack.c.l.b16 %v199
  %v1027 = vunpack.c.h.b16 %v199
  %v1028 = vunpack.c.l.b16 %v200
  %v1029 = vunpack.c.h.b16 %v200
  %v1030 = vunpack.c.l.b16 %v201
  %v1031 = vunpack.c.h.b16 %v201
  %v1032 = vunpack.c.l.b16 %v202
  %v1033 = vunpack.c.h.b16 %v202
  %v1034 = vunpack.c.l.b16 %v203
  %v1035 = vunpack.c.h.b16 %v203
  %v1036 = vunpack.c.l.b16 %v204
  %v1037 = vunpack.c.h.b16 %v204
  %v1038 = vunpack.c.l.b16 %v205
  %v1039 = vunpack.c.h.b16 %v205
  %v1040 = vunpack.c.l.b16 %v206
  %v1041 = vunpack.c.h.b16 %v206
  %v1042 = vunpack.c.l.b16 %v207
  %v1043 = vunpack.c.h.b16 %v207
  %v1044 = vunpack.c.l.b16 %v208
  %v1045 = vunpack.c.h.b16 %v208
  %v1046 = vunpack.c.l.b16 %v209
  %v1047 = vunpack.c.h.b16 %v209
  %v1048 = vunpack.c.l.b16 %v210
  %v1049 = vunpack.c.h.b16 %v210
  %v1050 = vunpack.c.l.b16 %v211
  %v1051 = vunpack.c.h.b16 %v211
  %v1052 = vunpack.c.l.b16 %v212
  %v1053 = vunpack.c.h.b16 %v212
  %v1054 = vunpack.c.l.b16 %v213
  %v1055 = vunpack.c.h.b16 %v213
  %v1056 = vunpack.c.l.b16 %v214
  %v1057 = vunpack.c.h.b16 %v214
  %v1058 = vunpack.c.l.b16 %v215
  %v1059 = vunpack.c.h.b16 %v215
  %v1060 = vunpack.c.l.b16 %v216
  %v1061 = vunpack.c.h.b16 %v216
  %v1062 = vunpack.c.l.b16 %v217
  %v1063 = vunpack.c.h.b16 %v217
  %v1064 = vunpack.c.l.b16 %v218
  %v1065 = vunpack.c.h.b16 %v218
  %v1066 = vunpack.c.l.b16 %v219
  %v1067 = vunpack.c.h.b16 %v219
  %v1068 = vunpack.c.l.b16 %v220
  %v1069 = vunpack.c.h.b16 %v220
  %v1070 = vunpack.c.l.b16 %v221
  %v1071 = vunpack.c.h.b16 %v221
  %v1072 = vunpack.c.l.b16 %v222
  %v1073 = vunpack.c.h.b16 %v222
  %v1074 = vunpack.c.l.b16 %v223
  %v1075 = vunpack.c.h.b16 %v223
  %v1076 = vunpack.c.l.b16 %v224
  %v1077 = vunpack.c.h.b16 %v224
  %v1078 = vunpack.c.l.b16 %v225
  %v1079 = vunpack.c.h.b16 %v225
  %v1080 = vunpack.c.l.b16 %v226
  %v1081 = vunpack.c.h.b16 %v226
  %v1082 = vunpack.c.l.b16 %v227
  %v1083 = vunpack.c.h.b16 %v227
  %v1084 = vunpack.c.l.b16 %v228
  %v1085 = vunpack.c.h.b16 %v228
  %v1086 = vunpack.c.l.b16 %v229
  %v1087 = vunpack.c.h.b16 %v229
  %v1088 = vunpack.c.l.b16 %v230
  %v1089 = vunpack.c.h.b16 %v230
  %v1090 = vunpack.c.l.b16 %v231
  %v1091 = vunpack.c.h.b16 %v231
  %v1092 = vunpack.c.l.b16 %v232
  %v1093 = vunpack.c.h.b16 %v232
  %v1094 = vunpack.c.l.b16 %v233
  %v1095 = vunpack.c.h.b16 %v233
  %v1096 = vunpack.c.l.b16 %v234
  %v1097 = vunpack.c.h.b16 %v234
  %v1098 = vunpack.c.l.b16 %v235
  %v1099 = vunpack.c.h.b16 %v235
  %v1100 = vunpack.c.l.b16 %v236
  %v1101 = vunpack.c.h.b16 %v236
  %v1102 = vunpack.c.l.b16 %v237
  %v1103 = vunpack.c.h.b16 %v237
  %v1104 = vunpack.c.l.b16 %v238
  %v1105 = vunpack.c.h.b16 %v238
  %v1106 = vunpack.c.l.b16 %v239
  %v1107 = vunpack.c.h.b16 %v239
  %v1108 = vunpack.c.l.b16 %v240
  %v1109 = vunpack.c.h.b16 %v240
  %v1110 = vunpack.c.l.b16 %v241
  %v1111 = vunpack.c.h.b16 %v241
  %v1112 = vunpack.c.l.b16 %v242
  %v1113 = vunpack.c.h.b16 %v242
  %v1114 = vunpack.c.l.b16 %v243
  %v1115 = vunpack.c.h.b16 %v243
  %v1116 = vunpack.c.l.b16 %v244
  %v1117 = vunpack.c.h.b16 %v244
  %v1118 = vunpack.c.l.b16 %v245
  %v1119 = vunpack.c.h.b16 %v245
  %v1120 = vunpack.c.l.b16 %v246
  %v1121 = vunpack.c.h.b16 %v246
  %v1122 = vunpack.c.l.b16 %v247
  %v1123 = vunpack.c.h.b16 %v247
  %v1124 = vunpack.c.l.b16 %v248
  %v1125 = vunpack.c.h.b16 %v248
  %v1126 = vunpack.c.l.b16 %v249
  %v1127 = vunpack.c.h.b16 %v249
  %v1128 = vunpack.c.l.b16 %v250
  %v1129 = vunpack.c.h.b16 %v250
  %v1130 = vunpack.c.l.b16 %v251
  %v1131 = vunpack.c.h.b16 %v251
  %v1132 = vunpack.c.l.b16 %v252
  %v1133 = vunpack.c.h.b16 %v252
  %v1134 = vunpack.c.l.b16 %v253
  %v1135 = vunpack.c.h.b16 %v253
  %v1136 = vunpack.c.l.b16 %v254
  %v1137 = vunpack.c.h.b16 %v254
  %v1138 = vunpack.c.l.b16 %v255
  %v1139 = vunpack.c.h.b16 %v255
  %v1140 = vunpack.c.l.b16 %v256
  %v1141 = vunpack.c.h.b16 %v256
  %v1142 = vunpack.c.l.b16 %v257
  %v1143 = vunpack.c.h.b16 %v257
  %v1144 = vunpack.c.l.b16 %v258
  %v1145 = vunpack.c.h.b16 %v258
  %v1146 = vunpack.c.l.b16 %v259
  %v1147 = vunpack.c.h.b16 %v259
  %v1148 = vunpack.c.l.b16 %v260
  %v1149 = vunpack.c.h.b16 %v260
  %v1150 = vunpack.c.l.b16 %v261
  %v1151 = vunpack.c.h.b16 %v261
  %v1152 = vunpack.c.l.b16 %v262
  %v1153 = vunpack.c.h.b16 %v262
  %v1154 = vunpack.c.l.b16 %v263
  %v1155 = vunpack.c.h.b16 %v263
  %v1156 = vunpack.c.l.b16 %v264
  %v1157 = vunpack.c.h.b16 %v264
  %v1158 = vunpack.c.l.b16 %v265
  %v1159 = vunpack.c.h.b16 %v265
  %v1160 = vunpack.c.l.b16 %v266
  %v1161 = vunpack.c.h.b16 %v266
  %v1162 = vunpack.c.l.b16 %v267
  %v1163 = vunpack.c.h.b16 %v267
  %v1164 = vunpack.c.l.b16 %v268
  %v1165 = vunpack.c.h.b16 %v268
  %v1166 = vunpack.c.l.b16 %v269
  %v1167 = vunpack.c.h.b16 %v269
  %v1168 = vunpack.c.l.b16 %v270
  %v1169 = vunpack.c.h.b16 %v270
  %v1170 = vunpack.c.l.b16 %v271
  %v1171 = vunpack.c.h.b16 %v271
  %v1172 = vunpack.c.l.b16 %v272
  %v1173 = vunpack.c.h.b16 %v272
  %v1174 = vunpack.c.l.b16 %v273
  %v1175 = vunpack.c.h.b16 %v273
  %v1176 = vunpack.c.l.b16 %v274
  %v1177 = vunpack.c.h.b16 %v274
  %v1178 = vunpack.c.l.b16 %v275
  %v1179 = vunpack.c.h.b16 %v275
  %v1180 = vunpack.c.l.b16 %v276
  %v1181 = vunpack.c.h.b16 %v276
  %v1182 = vunpack.c.l.b16 %v277
  %v1183 = vunpack.c.h.b16 %v277
  %v1184 = vunpack.c.l.b16 %v278
  %v1185 = vunpack.c.h.b16 %v278
  %v1186 = vunpack.c.l.b16 %v279
  %v1187 = vunpack.c.h.b16 %v279
  %v1188 = vunpack.c.l.b16 %v280
  %v1189 = vunpack.c.h.b16 %v280
  %v1190 = vunpack.c.l.b16 %v281
  %v1191 = vunpack.c.h.b16 %v281
  %v1192 = vunpack.c.l.b16 %v282
  %v1193 = vunpack.c.h.b16 %v282
  %v1194 = vunpack.c.l.b16 %v283
  %v1195 = vunpack.c.h.b16 %v283
  %v1196 = vunpack.c.l.b16 %v284
  %v1197 = vunpack.c.h.b16 %v284
  %v1198 = vunpack.c.l.b16 %v285
  %v1199 = vunpack.c.h.b16 %v285
  %v1200 = vunpack.c.l.b16 %v286
  %v1201 = vunpack.c.h.b16 %v286
  %v1202 = vunpack.c.l.b16 %v287
  %v1203 = vunpack.c.h.b16 %v287
  %v1204 = vunpack.c.l.b16 %v288
  %v1205 = vunpack.c.h.b16 %v288
  %v1206 = vunpack.c.l.b16 %v289
  %v1207 = vunpack.c.h.b16 %v289
  %v1208 = vunpack.c.l.b16 %v290
  %v1209 = vunpack.c.h.b16 %v290
  %v1210 = vunpack.c.l.b16 %v291
  %v1211 = vunpack.c.h.b16 %v291
  %v1212 = vunpack.c.l.b16 %v292
  %v1213 = vunpack.c.h.b16 %v292
  %v1214 = vunpack.c.l.b16 %v293
  %v1215 = vunpack.c.h.b16 %v293
  %v1216 = vunpack.c.l.b16 %v294
  %v1217 = vunpack.c.h.b16 %v294
  %v1218 = vunpack.c.l.b16 %v295
  %v1219 = vunpack.c.h.b16 %v295
  %v1220 = vunpack.c.l.b16 %v296
  %v1221 = vunpack.c.h.b16 %v296
  %v1222 = vunpack.c.l.b16 %v297
  %v1223 = vunpack.c.h.b16 %v297
  %v1224 = vunpack.c.l.b16 %v298
  %v1225 = vunpack.c.h.b16 %v298
  %v1226 = vunpack.c.l.b16 %v299
  %v1227 = vunpack.c.h.b16 %v299
  %v1228 = vunpack.c.l.b16 %v300
  %v1229 = vunpack.c.h.b16 %v300
  %v1230 = vunpack.c.l.b16 %v301
  %v1231 = vunpack.c.h.b16 %v301
  %v1232 = vunpack.c.l.b16 %v302
  %v1233 = vunpack.c.h.b16 %v302
  %v1234 = vunpack.c.l.b16 %v303
  %v1235 = vunpack.c.h.b16 %v303
  %v1236 = vunpack.c.l.b16 %v304
  %v1237 = vunpack.c.h.b16 %v304
  %v1238 = vunpack.c.l.b16 %v305
  %v1239 = vunpack.c.h.b16 %v305
  %v1240 = vunpack.c.l.b16 %v306
  %v1241 = vunpack.c.h.b16 %v306
  %v1242 = vunpack.c.l.b16 %v307
  %v1243 = vunpack.c.h.b16 %v307
  %v1244 = vunpack.c.l.b16 %v308
  %v1245 = vunpack.c.h.b16 %v308
  %v1246 = vunpack.c.l.b16 %v309
  %v1247 = vunpack.c.h.b16 %v309
  %v1248 = vunpack.c.l.b16 %v310
  %v1249 = vunpack.c.h.b16 %v310
  %v1250 = vpack.c.b16 %v676, %v674
  %v1251 = vpack.c.b16 %v677, %v675
  %v1252 = vpack.c.b16 %v680, %v678
  %v1253 = vpack.c.b16 %v681, %v679
  %v1254 = vpack.c.b16 %v684, %v682
  %v1255 = vpack.c.b16 %v685, %v683
  %v1256 = vpack.c.b16 %v688, %v686
  %v1257 = vpack.c.b16 %v689, %v687
  %v1258 = vpack.c.b16 %v692, %v690
  %v1259 = vpack.c.b16 %v693, %v691
  %v1260 = vpack.c.b16 %v696, %v694
  %v1261 = vpack.c.b16 %v697, %v695
  %v1262 = vpack.c.b16 %v700, %v698
  %v1263 = vpack.c.b16 %v701, %v699
  %v1264 = vpack.c.b16 %v704, %v702
  %v1265 = vpack.c.b16 %v705, %v703
  %v1266 = vpack.c.b16 %v708, %v706
  %v1267 = vpack.c.b16 %v709, %v707
  %v1268 = vpack.c.b16 %v712, %v710
  %v1269 = vpack.c.b16 %v713, %v711
  %v1270 = vpack.c.b16 %v716, %v714
  %v1271 = vpack.c.b16 %v717, %v715
  %v1272 = vpack.c.b16 %v720, %v718
  %v1273 = vpack.c.b16 %v721, %v719
  %v1274 = vpack.c.b16 %v724, %v722
  %v1275 = vpack.c.b16 %v725, %v723
  %v1276 = vpack.c.b16 %v728, %v726
  %v1277 = vpack.c.b16 %v729, %v727
  %v1278 = vpack.c.b16 %v732, %v730
  %v1279 = vpack.c.b16 %v733, %v731
  %v1280 = vpack.c.b16 %v736, %v734
  %v1281 = vpack.c.b16 %v737, %v735
  %v1282 = vpack.c.b16 %v740, %v738
  %v1283 = vpack.c.b16 %v741, %v739
  %v1284 = vpack.c.b16 %v744, %v742
  %v1285 = vpack.c.b16 %v745, %v743
  %v1286 = vpack.c.b16 %v748, %v746
  %v1287 = vpack.c.b16 %v749, %v747
  %v1288 = vpack.c.b16 %v752, %v750
  %v1289 = vpack.c.b16 %v753, %v751
  %v1290 = vpack.c.b16 %v756, %v754
  %v1291 = vpack.c.b16 %v757, %v755
  %v1292 = vpack.c.b16 %v760, %v758
  %v1293 = vpack.c.b16 %v761, %v759
  %v1294 = vpack.c.b16 %v764, %v762
  %v1295 = vpack.c.b16 %v765, %v763
  %v1296 = vpack.c.b16 %v768, %v766
  %v1297 = vpack.c.b16 %v769, %v767
  %v1298 = vpack.c.b16 %v772, %v770
  %v1299 = vpack.c.b16 %v773, %v771
  %v1300 = vpack.c.b16 %v776, %v774
  %v1301 = vpack.c.b16 %v777, %v775
  %v1302 = vpack.c.b16 %v780, %v778
  %v1303 = vpack.c.b16 %v781, %v779
  %v1304 = vpack.c.b16 %v784, %v782
  %v1305 = vpack.c.b16 %v785, %v783
  %v1306 = vpack.c.b16 %v788, %v786
  %v1307 = vpack.c.b16 %v789, %v787
  %v1308 = vpack.c.b16 %v792, %v790
  %v1309 = vpack.c.b16 %v793, %v791
  %v1310 = vpack.c.b16 %v796, %v794
  %v1311 = vpack.c.b16 %v797, %v795
  %v1312 = vpack.c.b16 %v800, %v798
  %v1313 = vpack.c.b16 %v801, %v799
  %v1314 = vpack.c.b16 %v804, %v802
  %v1315 = vpack.c.b16 %v805, %v803
  %v1316 = vpack.c.b16 %v808, %v806
  %v1317 = vpack.c.b16 %v809, %v807
  %v1318 = vpack.c.b16 %v812, %v810
  %v1319 = vpack.c.b16 %v813, %v811
  %v1320 = vpack.c.b16 %v816, %v814
  %v1321 = vpack.c.b16 %v817, %v815
  %v1322 = vpack.c.b16 %v820, %v818
  %v1323 = vpack.c.b16 %v821, %v819
  %v1324 = vpack.c.b16 %v824, %v822
  %v1325 = vpack.c.b16 %v825, %v823
  %v1326 = vpack.c.b16 %v828, %v826
  %v1327 = vpack.c.b16 %v829, %v827
  %v1328 = vpack.c.b16 %v832, %v830
  %v1329 = vpack.c.b16 %v833, %v831
  %v1330 = vpack.c.b16 %v836, %v834
  %v1331 = vpack.c.b16 %v837, %v835
  %v1332 = vpack.c.b16 %v840, %v838
  %v1333 = vpack.c.b16 %v841, %v839
  %v1334 = vpack.c.b16 %v844, %v842
  %v1335 = vpack.c.b16 %v845, %v843
  %v1336 = vpack.c.b16 %v848, %v846
  %v1337 = vpack.c.b16 %v849, %v847
  %v1338 = vpack.c.b16 %v852, %v850
  %v1339 = vpack.c.b16 %v853, %v851
  %v1340 = vpack.c.b16 %v856, %v854
  %v1341 = vpack.c.b16 %v857, %v855
  %v1342 = vpack.c.b16 %v860, %v858
  %v1343 = vpack.c.b16 %v861, %v859
  %v1344 = vpack.c.b16 %v864, %v862
  %v1345 = vpack.c.b16 %v865, %v863
  %v1346 = vpack.c.b16 %v868, %v866
  %v1347 = vpack.c.b16 %v869, %v867
  %v1348 = vpack.c.b16 %v872, %v870
  %v1349 = vpack.c.b16 %v873, %v871
  %v1350 = vpack.c.b16 %v876, %v874
  %v1351 = vpack.c.b16 %v877, %v875
  %v1352 = vpack.c.b16 %v880, %v878
  %v1353 = vpack.c.b16 %v881, %v879
  %v1354 = vpack.c.b16 %v884, %v882
  %v1355 = vpack.c.b16 %v885, %v883
  %v1356 = vpack.c.b16 %v888, %v886
  %v1357 = vpack.c.b16 %v889, %v887
  %v1358 = vpack.c.b16 %v892, %v890
  %v1359 = vpack.c.b16 %v893, %v891
  %v1360 = vpack.c.b16 %v896, %v894
  %v1361 = vpack.c.b16 %v897, %v895
  %v1362 = vpack.c.b16 %v900, %v898
  %v1363 = vpack.c.b16 %v901, %v899
  %v1364 = vpack.c.b16 %v904, %v902
  %v1365 = vpack.c.b16 %v905, %v903
  %v1366 = vpack.c.b16 %v908, %v906
  %v1367 = vpack.c.b16 %v909, %v907
  %v1368 = vpack.c.b16 %v912, %v910
  %v1369 = vpack.c.b16 %v913, %v911
  %v1370 = vpack.c.b16 %v916, %v914
  %v1371 = vpack.c.b16 %v917, %v915
  %v1372 = vpack.c.b16 %v920, %v918
  %v1373 = vpack.c.b16 %v921, %v919
  %v1374 = vpack.c.b16 %v924, %v922
  %v1375 = vpack.c.b16 %v925, %v923
  %v1376 = vpack.c.b16 %v928, %v926
  %v1377 = vpack.c.b16 %v929, %v927
  %v1378 = vpack.c.b16 %v932, %v930
  %v1379 = vpack.c.b16 %v933, %v931
  %v1380 = vpack.c.b16 %v936, %v934
  %v1381 = vpack.c.b16 %v937, %v935
  %v1382 = vpack.c.b16 %v940, %v938
  %v1383 = vpack.c.b16 %v941, %v939
  %v1384 = vpack.c.b16 %v944, %v942
  %v1385 = vpack.c.b16 %v945, %v943
  %v1386 = vpack.c.b16 %v948, %v946
  %v1387 = vpack.c.b16 %v949, %v947
  %v1388 = vpack.c.b16 %v952, %v950
  %v1389 = vpack.c.b16 %v953, %v951
  %v1390 = vpack.c.b16 %v956, %v954
  %v1391 = vpack.c.b16 %v957, %v955
  %v1392 = vpack.c.b16 %v960, %v958
  %v1393 = vpack.c.b16 %v961, %v959
  %v1394 = vpack.c.b16 %v964, %v962
  %v1395 = vpack.c.b16 %v965, %v963
  %v1396 = vpack.c.b16 %v968, %v966
  %v1397 = vpack.c.b16 %v969, %v967
  %v1398 = vpack.c.b16 %v972, %v970
  %v1399 = vpack.c.b16 %v973, %v971
  %v1400 = vpack.c.b16 %v976, %v974
  %v1401 = vpack.c.b16 %v977, %v975
  %v1402 = vpack.c.b16 %v980, %v978
  %v1403 = vpack.c.b16 %v981, %v979
  %v1404 = vpack.c.b16 %v984, %v982
  %v1405 = vpack.c.b16 %v985, %v983
  %v1406 = vpack.c.b16 %v988, %v986
  %v1407 = vpack.c.b16 %v989, %v987
  %v1408 = vpack.c.b16 %v992, %v990
  %v1409 = vpack.c.b16 %v993, %v991
  %v1410 = vpack.c.b16 %v996, %v994
  %v1411 = vpack.c.b16 %v997, %v995
  %v1412 = vpack.c.b16 %v1000, %v998
  %v1413 = vpack.c.b16 %v1001, %v999
  %v1414 = vpack.c.b16 %v1004, %v1002
  %v1415 = vpack.c.b16 %v1005, %v1003
  %v1416 = vpack.c.b16 %v1008, %v1006
  %v1417 = vpack.c.b16 %v1009, %v1007
  %v1418 = vpack.c.b16 %v1012, %v1010
  %v1419 = vpack.c.b16 %v1013, %v1011
  %v1420 = vpack.c.b16 %v1016, %v1014
  %v1421 = vpack.c.b16 %v1017, %v1015
  %v1422 = vpack.c.b16 %v1020, %v1018
  %v1423 = vpack.c.b16 %v1021, %v1019
  %v1424 = vpack.c.b16 %v1024, %v1022
  %v1425 = vpack.c.b16 %v1025, %v1023
  %v1426 = vpack.c.b16 %v1028, %v1026
  %v1427 = vpack.c.b16 %v1029, %v1027
  %v1428 = vpack.c.b16 %v1032, %v1030
  %v1429 = vpack.c.b16 %v1033, %v1031
  %v1430 = vpack.c.b16 %v1036, %v1034
  %v1431 = vpack.c.b16 %v1037, %v1035
  %v1432 = vpack.c.b16 %v1040, %v1038
  %v1433 = vpack.c.b16 %v1041, %v1039
  %v1434 = vpack.c.b16 %v1044, %v1042
  %v1435 = vpack.c.b16 %v1045, %v1043
  %v1436 = vpack.c.b16 %v1048, %v1046
  %v1437 = vpack.c.b16 %v1049, %v1047
  %v1438 = vpack.c.b16 %v1052, %v1050
  %v1439 = vpack.c.b16 %v1053, %v1051
  %v1440 = vpack.c.b16 %v1056, %v1054
  %v1441 = vpack.c.b16 %v1057, %v1055
  %v1442 = vpack.c.b16 %v1060, %v1058
  %v1443 = vpack.c.b16 %v1061, %v1059
  %v1444 = vpack.c.b16 %v1064, %v1062
  %v1445 = vpack.c.b16 %v1065, %v1063
  %v1446 = vpack.c.b16 %v1068, %v1066
  %v1447 = vpack.c.b16 %v1069, %v1067
  %v1448 = vpack.c.b16 %v1072, %v1070
  %v1449 = vpack.c.b16 %v1073, %v1071
  %v1450 = vpack.c.b16 %v1076, %v1074
  %v1451 = vpack.c.b16 %v1077, %v1075
  %v1452 = vpack.c.b16 %v1080, %v1078
  %v1453 = vpack.c.b16 %v1081, %v1079
  %v1454 = vpack.c.b16 %v1084, %v1082
  %v1455 = vpack.c.b16 %v1085, %v1083
  %v1456 = vpack.c.b16 %v1088, %v1086
  %v1457 = vpack.c.b16 %v1089, %v1087
  %v1458 = vpack.c.b16 %v1092, %v1090
  %v1459 = vpack.c.b16 %v1093, %v1091
  %v1460 = vpack.c.b16 %v1096, %v1094
  %v1461 = vpack.c.b16 %v1097, %v1095
  %v1462 = vpack.c.b16 %v1100, %v1098
  %v1463 = vpack.c.b16 %v1101, %v1099
  %v1464 = vpack.c.b16 %v1104, %v1102
  %v1465 = vpack.c.b16 %v1105, %v1103
  %v1466 = vpack.c.b16 %v1108, %v1106
  %v1467 = vpack.c.b16 %v1109, %v1107
  %v1468 = vpack.c.b16 %v1112, %v1110
  %v1469 = vpack.c.b16 %v1113, %v1111
  %v1470 = vpack.c.b16 %v1116, %v1114
  %v1471 = vpack.c.b16 %v1117, %v1115
  %v1472 = vpack.c.b16 %v1120, %v1118
  %v1473 = vpack.c.b16 %v1121, %v1119
  %v1474 = vpack.c.b16 %v1124, %v1122
  %v1475 = vpack.c.b16 %v1125, %v1123
  %v1476 = vpack.c.b16 %v1128, %v1126
  %v1477 = vpack.c.b16 %v1129, %v1127
  %v1478 = vpack.c.b16 %v1132, %v1130
  %v1479 = vpack.c.b16 %v1133, %v1131
  %v1480 = vpack.c.b16 %v1136, %v1134
  %v1481 = vpack.c.b16 %v1137, %v1135
  %v1482 = vpack.c.b16 %v1140, %v1138
  %v1483 = vpack.c.b16 %v1141, %v1139
  %v1484 = vpack.c.b16 %v1144, %v1142
  %v1485 = vpack.c.b16 %v1145, %v1143
  %v1486 = vpack.c.b16 %v1148, %v1146
  %v1487 = vpack.c.b16 %v1149, %v1147
  %v1488 = vpack.c.b16 %v1152, %v1150
  %v1489 = vpack.c.b16 %v1153, %v1151
  %v1490 = vpack.c.b16 %v1156, %v1154
  %v1491 = vpack.c.b16 %v1157, %v1155
  %v1492 = vpack.c.b16 %v1160, %v1158
  %v1493 = vpack.c.b16 %v1161, %v1159
  %v1494 = vpack.c.b16 %v1164, %v1162
  %v1495 = vpack.c.b16 %v1165, %v1163
  %v1496 = vpack.c.b16 %v1168, %v1166
  %v1497 = vpack.c.b16 %v1169, %v1167
  %v1498 = vpack.c.b16 %v1172, %v1170
  %v1499 = vpack.c.b16 %v1173, %v1171
  %v1500 = vpack.c.b16 %v1176, %v1174
  %v1501 = vpack.c.b16 %v1177, %v1175
  %v1502 = vpack.c.b16 %v1180, %v1178
  %v1503 = vpack.c.b16 %v1181, %v1179
  %v1504 = vpack.c.b16 %v1184, %v1182
  %v1505 = vpack.c.b16 %v1185, %v1183
  %v1506 = vpack.c.b16 %v1188, %v1186
  %v1507 = vpack.c.b16 %v1189, %v1187
  %v1508 = vpack.c.b16 %v1192, %v1190
  %v1509 = vpack.c.b16 %v1193, %v1191
  %v1510 = vpack.c.b16 %v1196, %v1194
  %v1511 = vpack.c.b16 %v1197, %v1195
  %v1512 = vpack.c.b16 %v1200, %v1198
  %v1513 = vpack.c.b16 %v1201, %v1199
  %v1514 = vpack.c.b16 %v1204, %v1202
  %v1515 = vpack.c.b16 %v1205, %v1203
  %v1516 = vpack.c.b16 %v1208, %v1206
  %v1517 = vpack.c.b16 %v1209, %v1207
  %v1518 = vpack.c.b16 %v1212, %v1210
  %v1519 = vpack.c.b16 %v1213, %v1211
  %v1520 = vpack.c.b16 %v1216, %v1214
  %v1521 = vpack.c.b16 %v1217, %v1215
  %v1522 = vpack.c.b16 %v1220, %v1218
  %v1523 = vpack.c.b16 %v1221, %v1219
  %v1524 = vpack.c.b16 %v1224, %v1222
  %v1525 = vpack.c.b16 %v1225, %v1223
  %v1526 = vpack.c.b16 %v1228, %v1226
  %v1527 = vpack.c.b16 %v1229, %v1227
  %v1528 = vpack.c.b16 %v1232, %v1230
  %v1529 = vpack.c.b16 %v1233, %v1231
  %v1530 = vpack.c.b16 %v1236, %v1234
  %v1531 = vpack.c.b16 %v1237, %v1235
  %v1532 = vpack.c.b16 %v1240, %v1238
  %v1533 = vpack.c.b16 %v1241, %v1239
  %v1534 = vpack.c.b16 %v1244, %v1242
  %v1535 = vpack.c.b16 %v1245, %v1243
  %v1536 = vpack.c.b16 %v1248, %v1246
  %v1537 = vpack.c.b16 %v1249, %v1247
  %1826 = vmatprep.subr.bf16.mxu0 %v1251
  %1827 = vmatpush1.bf16.msra.mxu0 %v1250
  %1828 = vmatprep.subr.bf16.mxu0 %v1253
  %1829 = vmatpush1.bf16.msra.mxu0 %v1252
  %1830 = vmatprep.subr.bf16.mxu0 %v1255
  %1831 = vmatpush1.bf16.msra.mxu0 %v1254
  %1832 = vmatprep.subr.bf16.mxu0 %v1257
  %1833 = vmatpush1.bf16.msra.mxu0 %v1256
  %1834 = vmatprep.subr.bf16.mxu0 %v1259
  %1835 = vmatpush1.bf16.msra.mxu0 %v1258
  %1836 = vmatprep.subr.bf16.mxu0 %v1261
  %1837 = vmatpush1.bf16.msra.mxu0 %v1260
  %1838 = vmatprep.subr.bf16.mxu0 %v1263
  %1839 = vmatpush1.bf16.msra.mxu0 %v1262
  %1840 = vmatprep.subr.bf16.mxu0 %v1265
  %1841 = vmatpush1.bf16.msra.mxu0 %v1264
  %1842 = vmatprep.subr.bf16.mxu0 %v1267
  %1843 = vmatpush1.bf16.msra.mxu0 %v1266
  %1844 = vmatprep.subr.bf16.mxu0 %v1269
  %1845 = vmatpush1.bf16.msra.mxu0 %v1268
  %1846 = vmatprep.subr.bf16.mxu0 %v1271
  %1847 = vmatpush1.bf16.msra.mxu0 %v1270
  %1848 = vmatprep.subr.bf16.mxu0 %v1273
  %1849 = vmatpush1.bf16.msra.mxu0 %v1272
  %1850 = vmatprep.subr.bf16.mxu0 %v1275
  %1851 = vmatpush1.bf16.msra.mxu0 %v1274
  %1852 = vmatprep.subr.bf16.mxu0 %v1277
  %1853 = vmatpush1.bf16.msra.mxu0 %v1276
  %1854 = vmatprep.subr.bf16.mxu0 %v1279
  %1855 = vmatpush1.bf16.msra.mxu0 %v1278
  %1856 = vmatprep.subr.bf16.mxu0 %v1281
  %1857 = vmatpush1.bf16.msra.mxu0 %v1280
  %1858 = vmatprep.mubr.bf16.mxu0 %v351
  %1859 = vmatmul.mubr.bf16.gmra.mrb[0].mxu0 %v350
  %v1860 = vpop.f32.mrb[0].mxu0
  %v1861 = vadd.f32 %v316, %v1860
  %v1862 = vpop.f32.mrb[0].mxu0
  %v1863 = vadd.f32 %v320, %v1862
  %v1864 = vpop.f32.mrb[0].mxu0
  %v1865 = vpop.f32.mrb[0].mxu0
  %1866 = vdwg.mxu0
  %1867 = vmatprep.subr.bf16.mxu0 %v1283
  %1868 = vmatpush1.bf16.msra.mxu0 %v1282
  %1869 = vmatprep.subr.bf16.mxu0 %v1285
  %1870 = vmatpush1.bf16.msra.mxu0 %v1284
  %1871 = vmatprep.subr.bf16.mxu0 %v1287
  %1872 = vmatpush1.bf16.msra.mxu0 %v1286
  %1873 = vmatprep.subr.bf16.mxu0 %v1289
  %1874 = vmatpush1.bf16.msra.mxu0 %v1288
  %1875 = vmatprep.subr.bf16.mxu0 %v1291
  %1876 = vmatpush1.bf16.msra.mxu0 %v1290
  %1877 = vmatprep.subr.bf16.mxu0 %v1293
  %1878 = vmatpush1.bf16.msra.mxu0 %v1292
  %1879 = vmatprep.subr.bf16.mxu0 %v1295
  %1880 = vmatpush1.bf16.msra.mxu0 %v1294
  %1881 = vmatprep.subr.bf16.mxu0 %v1297
  %1882 = vmatpush1.bf16.msra.mxu0 %v1296
  %1883 = vmatprep.subr.bf16.mxu0 %v1299
  %1884 = vmatpush1.bf16.msra.mxu0 %v1298
  %1885 = vmatprep.subr.bf16.mxu0 %v1301
  %1886 = vmatpush1.bf16.msra.mxu0 %v1300
  %1887 = vmatprep.subr.bf16.mxu0 %v1303
  %1888 = vmatpush1.bf16.msra.mxu0 %v1302
  %1889 = vmatprep.subr.bf16.mxu0 %v1305
  %1890 = vmatpush1.bf16.msra.mxu0 %v1304
  %1891 = vmatprep.subr.bf16.mxu0 %v1307
  %1892 = vmatpush1.bf16.msra.mxu0 %v1306
  %1893 = vmatprep.subr.bf16.mxu0 %v1309
  %1894 = vmatpush1.bf16.msra.mxu0 %v1308
  %1895 = vmatprep.subr.bf16.mxu0 %v1311
  %1896 = vmatpush1.bf16.msra.mxu0 %v1310
  %1897 = vmatprep.subr.bf16.mxu0 %v1313
  %1898 = vmatpush1.bf16.msra.mxu0 %v1312
  %1899 = vmatprep.mubr.bf16.mxu0 %v353
  %1900 = vmatmul.mubr.bf16.gmra.mrb[0].mxu0 %v352
  %v1901 = vpop.f32.mrb[0].mxu0
  %v1902 = vadd.f32 %v1861, %v1901
  %v1903 = vpop.f32.mrb[0].mxu0
  %v1904 = vadd.f32 %v1863, %v1903
  %v1905 = vpop.f32.mrb[0].mxu0
  %v1906 = vpop.f32.mrb[0].mxu0
  %1907 = vdwg.mxu0
  %1908 = vmatprep.subr.bf16.mxu0 %v1315
  %1909 = vmatpush1.bf16.msra.mxu0 %v1314
  %1910 = vmatprep.subr.bf16.mxu0 %v1317
  %1911 = vmatpush1.bf16.msra.mxu0 %v1316
  %1912 = vmatprep.subr.bf16.mxu0 %v1319
  %1913 = vmatpush1.bf16.msra.mxu0 %v1318
  %1914 = vmatprep.subr.bf16.mxu0 %v1321
  %1915 = vmatpush1.bf16.msra.mxu0 %v1320
  %1916 = vmatprep.subr.bf16.mxu0 %v1323
  %1917 = vmatpush1.bf16.msra.mxu0 %v1322
  %1918 = vmatprep.subr.bf16.mxu0 %v1325
  %1919 = vmatpush1.bf16.msra.mxu0 %v1324
  %1920 = vmatprep.subr.bf16.mxu0 %v1327
  %1921 = vmatpush1.bf16.msra.mxu0 %v1326
  %1922 = vmatprep.subr.bf16.mxu0 %v1329
  %1923 = vmatpush1.bf16.msra.mxu0 %v1328
  %1924 = vmatprep.subr.bf16.mxu0 %v1331
  %1925 = vmatpush1.bf16.msra.mxu0 %v1330
  %1926 = vmatprep.subr.bf16.mxu0 %v1333
  %1927 = vmatpush1.bf16.msra.mxu0 %v1332
  %1928 = vmatprep.subr.bf16.mxu0 %v1335
  %1929 = vmatpush1.bf16.msra.mxu0 %v1334
  %1930 = vmatprep.subr.bf16.mxu0 %v1337
  %1931 = vmatpush1.bf16.msra.mxu0 %v1336
  %1932 = vmatprep.subr.bf16.mxu0 %v1339
  %1933 = vmatpush1.bf16.msra.mxu0 %v1338
  %1934 = vmatprep.subr.bf16.mxu0 %v1341
  %1935 = vmatpush1.bf16.msra.mxu0 %v1340
  %1936 = vmatprep.subr.bf16.mxu0 %v1343
  %1937 = vmatpush1.bf16.msra.mxu0 %v1342
  %1938 = vmatprep.subr.bf16.mxu0 %v1345
  %1939 = vmatpush1.bf16.msra.mxu0 %v1344
  %1940 = vmatprep.mubr.bf16.mxu0 %v355
  %1941 = vmatmul.mubr.bf16.gmra.mrb[0].mxu0 %v354
  %v1942 = vpop.f32.mrb[0].mxu0
  %v1943 = vadd.f32 %v1902, %v1942
  %v1944 = vpop.f32.mrb[0].mxu0
  %v1945 = vadd.f32 %v1904, %v1944
  %v1946 = vpop.f32.mrb[0].mxu0
  %v1947 = vpop.f32.mrb[0].mxu0
  %1948 = vdwg.mxu0
  %1949 = vmatprep.subr.bf16.mxu0 %v1347
  %1950 = vmatpush1.bf16.msra.mxu0 %v1346
  %1951 = vmatprep.subr.bf16.mxu0 %v1349
  %1952 = vmatpush1.bf16.msra.mxu0 %v1348
  %1953 = vmatprep.subr.bf16.mxu0 %v1351
  %1954 = vmatpush1.bf16.msra.mxu0 %v1350
  %1955 = vmatprep.subr.bf16.mxu0 %v1353
  %1956 = vmatpush1.bf16.msra.mxu0 %v1352
  %1957 = vmatprep.subr.bf16.mxu0 %v1355
  %1958 = vmatpush1.bf16.msra.mxu0 %v1354
  %1959 = vmatprep.subr.bf16.mxu0 %v1357
  %1960 = vmatpush1.bf16.msra.mxu0 %v1356
  %1961 = vmatprep.subr.bf16.mxu0 %v1359
  %1962 = vmatpush1.bf16.msra.mxu0 %v1358
  %1963 = vmatprep.subr.bf16.mxu0 %v1361
  %1964 = vmatpush1.bf16.msra.mxu0 %v1360
  %1965 = vmatprep.subr.bf16.mxu0 %v1363
  %1966 = vmatpush1.bf16.msra.mxu0 %v1362
  %1967 = vmatprep.subr.bf16.mxu0 %v1365
  %1968 = vmatpush1.bf16.msra.mxu0 %v1364
  %1969 = vmatprep.subr.bf16.mxu0 %v1367
  %1970 = vmatpush1.bf16.msra.mxu0 %v1366
  %1971 = vmatprep.subr.bf16.mxu0 %v1369
  %1972 = vmatpush1.bf16.msra.mxu0 %v1368
  %1973 = vmatprep.subr.bf16.mxu0 %v1371
  %1974 = vmatpush1.bf16.msra.mxu0 %v1370
  %1975 = vmatprep.subr.bf16.mxu0 %v1373
  %1976 = vmatpush1.bf16.msra.mxu0 %v1372
  %1977 = vmatprep.subr.bf16.mxu0 %v1375
  %1978 = vmatpush1.bf16.msra.mxu0 %v1374
  %1979 = vmatprep.subr.bf16.mxu0 %v1377
  %1980 = vmatpush1.bf16.msra.mxu0 %v1376
  %1981 = vmatprep.mubr.bf16.mxu0 %v357
  %1982 = vmatmul.mubr.bf16.gmra.mrb[0].mxu0 %v356
  %v1983 = vpop.f32.mrb[0].mxu0
  %v1984 = vadd.f32 %v1943, %v1983
  %v1985 = vpop.f32.mrb[0].mxu0
  %v1986 = vadd.f32 %v1945, %v1985
  %v1987 = vpop.f32.mrb[0].mxu0
  %v1988 = vpop.f32.mrb[0].mxu0
  %1989 = vdwg.mxu0
  %1990 = vmatprep.subr.bf16.mxu0 %v1379
  %1991 = vmatpush1.bf16.msra.mxu0 %v1378
  %1992 = vmatprep.subr.bf16.mxu0 %v1381
  %1993 = vmatpush1.bf16.msra.mxu0 %v1380
  %1994 = vmatprep.subr.bf16.mxu0 %v1383
  %1995 = vmatpush1.bf16.msra.mxu0 %v1382
  %1996 = vmatprep.subr.bf16.mxu0 %v1385
  %1997 = vmatpush1.bf16.msra.mxu0 %v1384
  %1998 = vmatprep.subr.bf16.mxu0 %v1387
  %1999 = vmatpush1.bf16.msra.mxu0 %v1386
  %2000 = vmatprep.subr.bf16.mxu0 %v1389
  %2001 = vmatpush1.bf16.msra.mxu0 %v1388
  %2002 = vmatprep.subr.bf16.mxu0 %v1391
  %2003 = vmatpush1.bf16.msra.mxu0 %v1390
  %2004 = vmatprep.subr.bf16.mxu0 %v1393
  %2005 = vmatpush1.bf16.msra.mxu0 %v1392
  %2006 = vmatprep.subr.bf16.mxu0 %v1395
  %2007 = vmatpush1.bf16.msra.mxu0 %v1394
  %2008 = vmatprep.subr.bf16.mxu0 %v1397
  %2009 = vmatpush1.bf16.msra.mxu0 %v1396
  %2010 = vmatprep.subr.bf16.mxu0 %v1399
  %2011 = vmatpush1.bf16.msra.mxu0 %v1398
  %2012 = vmatprep.subr.bf16.mxu0 %v1401
  %2013 = vmatpush1.bf16.msra.mxu0 %v1400
  %2014 = vmatprep.subr.bf16.mxu0 %v1403
  %2015 = vmatpush1.bf16.msra.mxu0 %v1402
  %2016 = vmatprep.subr.bf16.mxu0 %v1405
  %2017 = vmatpush1.bf16.msra.mxu0 %v1404
  %2018 = vmatprep.subr.bf16.mxu0 %v1407
  %2019 = vmatpush1.bf16.msra.mxu0 %v1406
  %2020 = vmatprep.subr.bf16.mxu0 %v1409
  %2021 = vmatpush1.bf16.msra.mxu0 %v1408
  %2022 = vmatprep.mubr.bf16.mxu0 %v359
  %2023 = vmatmul.mubr.bf16.gmra.mrb[0].mxu0 %v358
  %v2024 = vpop.f32.mrb[0].mxu0
  %v2025 = vadd.f32 %v1984, %v2024
  %v2026 = vpop.f32.mrb[0].mxu0
  %v2027 = vadd.f32 %v1986, %v2026
  %v2028 = vpop.f32.mrb[0].mxu0
  %v2029 = vpop.f32.mrb[0].mxu0
  %2030 = vdwg.mxu0
  %2031 = vmatprep.subr.bf16.mxu0 %v1411
  %2032 = vmatpush1.bf16.msra.mxu0 %v1410
  %2033 = vmatprep.subr.bf16.mxu0 %v1413
  %2034 = vmatpush1.bf16.msra.mxu0 %v1412
  %2035 = vmatprep.subr.bf16.mxu0 %v1415
  %2036 = vmatpush1.bf16.msra.mxu0 %v1414
  %2037 = vmatprep.subr.bf16.mxu0 %v1417
  %2038 = vmatpush1.bf16.msra.mxu0 %v1416
  %2039 = vmatprep.subr.bf16.mxu0 %v1419
  %2040 = vmatpush1.bf16.msra.mxu0 %v1418
  %2041 = vmatprep.subr.bf16.mxu0 %v1421
  %2042 = vmatpush1.bf16.msra.mxu0 %v1420
  %2043 = vmatprep.subr.bf16.mxu0 %v1423
  %2044 = vmatpush1.bf16.msra.mxu0 %v1422
  %2045 = vmatprep.subr.bf16.mxu0 %v1425
  %2046 = vmatpush1.bf16.msra.mxu0 %v1424
  %2047 = vmatprep.subr.bf16.mxu0 %v1427
  %2048 = vmatpush1.bf16.msra.mxu0 %v1426
  %2049 = vmatprep.subr.bf16.mxu0 %v1429
  %2050 = vmatpush1.bf16.msra.mxu0 %v1428
  %2051 = vmatprep.subr.bf16.mxu0 %v1431
  %2052 = vmatpush1.bf16.msra.mxu0 %v1430
  %2053 = vmatprep.subr.bf16.mxu0 %v1433
  %2054 = vmatpush1.bf16.msra.mxu0 %v1432
  %2055 = vmatprep.subr.bf16.mxu0 %v1435
  %2056 = vmatpush1.bf16.msra.mxu0 %v1434
  %2057 = vmatprep.subr.bf16.mxu0 %v1437
  %2058 = vmatpush1.bf16.msra.mxu0 %v1436
  %2059 = vmatprep.subr.bf16.mxu0 %v1439
  %2060 = vmatpush1.bf16.msra.mxu0 %v1438
  %2061 = vmatprep.subr.bf16.mxu0 %v1441
  %2062 = vmatpush1.bf16.msra.mxu0 %v1440
  %2063 = vmatprep.mubr.bf16.mxu0 %v361
  %2064 = vmatmul.mubr.bf16.gmra.mrb[0].mxu0 %v360
  %v2065 = vpop.f32.mrb[0].mxu0
  %v2066 = vadd.f32 %v2025, %v2065
  %v2067 = vpop.f32.mrb[0].mxu0
  %v2068 = vadd.f32 %v2027, %v2067
  %v2069 = vpop.f32.mrb[0].mxu0
  %v2070 = vpop.f32.mrb[0].mxu0
  %2071 = vdwg.mxu0
  %2072 = vmatprep.subr.bf16.mxu0 %v1443
  %2073 = vmatpush1.bf16.msra.mxu0 %v1442
  %2074 = vmatprep.subr.bf16.mxu0 %v1445
  %2075 = vmatpush1.bf16.msra.mxu0 %v1444
  %2076 = vmatprep.subr.bf16.mxu0 %v1447
  %2077 = vmatpush1.bf16.msra.mxu0 %v1446
  %2078 = vmatprep.subr.bf16.mxu0 %v1449
  %2079 = vmatpush1.bf16.msra.mxu0 %v1448
  %2080 = vmatprep.subr.bf16.mxu0 %v1451
  %2081 = vmatpush1.bf16.msra.mxu0 %v1450
  %2082 = vmatprep.subr.bf16.mxu0 %v1453
  %2083 = vmatpush1.bf16.msra.mxu0 %v1452
  %2084 = vmatprep.subr.bf16.mxu0 %v1455
  %2085 = vmatpush1.bf16.msra.mxu0 %v1454
  %2086 = vmatprep.subr.bf16.mxu0 %v1457
  %2087 = vmatpush1.bf16.msra.mxu0 %v1456
  %2088 = vmatprep.subr.bf16.mxu0 %v1459
  %2089 = vmatpush1.bf16.msra.mxu0 %v1458
  %2090 = vmatprep.subr.bf16.mxu0 %v1461
  %2091 = vmatpush1.bf16.msra.mxu0 %v1460
  %2092 = vmatprep.subr.bf16.mxu0 %v1463
  %2093 = vmatpush1.bf16.msra.mxu0 %v1462
  %2094 = vmatprep.subr.bf16.mxu0 %v1465
  %2095 = vmatpush1.bf16.msra.mxu0 %v1464
  %2096 = vmatprep.subr.bf16.mxu0 %v1467
  %2097 = vmatpush1.bf16.msra.mxu0 %v1466
  %2098 = vmatprep.subr.bf16.mxu0 %v1469
  %2099 = vmatpush1.bf16.msra.mxu0 %v1468
  %2100 = vmatprep.subr.bf16.mxu0 %v1471
  %2101 = vmatpush1.bf16.msra.mxu0 %v1470
  %2102 = vmatprep.subr.bf16.mxu0 %v1473
  %2103 = vmatpush1.bf16.msra.mxu0 %v1472
  %2104 = vmatprep.mubr.bf16.mxu0 %v363
  %2105 = vmatmul.mubr.bf16.gmra.mrb[0].mxu0 %v362
  %v2106 = vpop.f32.mrb[0].mxu0
  %v2107 = vadd.f32 %v2066, %v2106
  %v2108 = vpop.f32.mrb[0].mxu0
  %v2109 = vadd.f32 %v2068, %v2108
  %v2110 = vpop.f32.mrb[0].mxu0
  %v2111 = vpop.f32.mrb[0].mxu0
  %2112 = vdwg.mxu0
  %2113 = vmatprep.subr.bf16.mxu0 %v1475
  %2114 = vmatpush1.bf16.msra.mxu0 %v1474
  %2115 = vmatprep.subr.bf16.mxu0 %v1477
  %2116 = vmatpush1.bf16.msra.mxu0 %v1476
  %2117 = vmatprep.subr.bf16.mxu0 %v1479
  %2118 = vmatpush1.bf16.msra.mxu0 %v1478
  %2119 = vmatprep.subr.bf16.mxu0 %v1481
  %2120 = vmatpush1.bf16.msra.mxu0 %v1480
  %2121 = vmatprep.subr.bf16.mxu0 %v1483
  %2122 = vmatpush1.bf16.msra.mxu0 %v1482
  %2123 = vmatprep.subr.bf16.mxu0 %v1485
  %2124 = vmatpush1.bf16.msra.mxu0 %v1484
  %2125 = vmatprep.subr.bf16.mxu0 %v1487
  %2126 = vmatpush1.bf16.msra.mxu0 %v1486
  %2127 = vmatprep.subr.bf16.mxu0 %v1489
  %2128 = vmatpush1.bf16.msra.mxu0 %v1488
  %2129 = vmatprep.subr.bf16.mxu0 %v1491
  %2130 = vmatpush1.bf16.msra.mxu0 %v1490
  %2131 = vmatprep.subr.bf16.mxu0 %v1493
  %2132 = vmatpush1.bf16.msra.mxu0 %v1492
  %2133 = vmatprep.subr.bf16.mxu0 %v1495
  %2134 = vmatpush1.bf16.msra.mxu0 %v1494
  %2135 = vmatprep.subr.bf16.mxu0 %v1497
  %2136 = vmatpush1.bf16.msra.mxu0 %v1496
  %2137 = vmatprep.subr.bf16.mxu0 %v1499
  %2138 = vmatpush1.bf16.msra.mxu0 %v1498
  %2139 = vmatprep.subr.bf16.mxu0 %v1501
  %2140 = vmatpush1.bf16.msra.mxu0 %v1500
  %2141 = vmatprep.subr.bf16.mxu0 %v1503
  %2142 = vmatpush1.bf16.msra.mxu0 %v1502
  %2143 = vmatprep.subr.bf16.mxu0 %v1505
  %2144 = vmatpush1.bf16.msra.mxu0 %v1504
  %2145 = vmatprep.mubr.bf16.mxu0 %v365
  %2146 = vmatmul.mubr.bf16.gmra.mrb[0].mxu0 %v364
  %v2147 = vpop.f32.mrb[0].mxu0
  %v2148 = vadd.f32 %v2107, %v2147
  %v2149 = vpop.f32.mrb[0].mxu0
  %v2150 = vadd.f32 %v2109, %v2149
  %v2151 = vpop.f32.mrb[0].mxu0
  %v2152 = vpop.f32.mrb[0].mxu0
  %2153 = vdwg.mxu0
  %2154 = vmatprep.subr.bf16.mxu0 %v1507
  %2155 = vmatpush1.bf16.msra.mxu0 %v1506
  %2156 = vmatprep.subr.bf16.mxu0 %v1509
  %2157 = vmatpush1.bf16.msra.mxu0 %v1508
  %2158 = vmatprep.subr.bf16.mxu0 %v1511
  %2159 = vmatpush1.bf16.msra.mxu0 %v1510
  %2160 = vmatprep.subr.bf16.mxu0 %v1513
  %2161 = vmatpush1.bf16.msra.mxu0 %v1512
  %2162 = vmatprep.subr.bf16.mxu0 %v1515
  %2163 = vmatpush1.bf16.msra.mxu0 %v1514
  %2164 = vmatprep.subr.bf16.mxu0 %v1517
  %2165 = vmatpush1.bf16.msra.mxu0 %v1516
  %2166 = vmatprep.subr.bf16.mxu0 %v1519
  %2167 = vmatpush1.bf16.msra.mxu0 %v1518
  %2168 = vmatprep.subr.bf16.mxu0 %v1521
  %2169 = vmatpush1.bf16.msra.mxu0 %v1520
  %2170 = vmatprep.subr.bf16.mxu0 %v1523
  %2171 = vmatpush1.bf16.msra.mxu0 %v1522
  %2172 = vmatprep.subr.bf16.mxu0 %v1525
  %2173 = vmatpush1.bf16.msra.mxu0 %v1524
  %2174 = vmatprep.subr.bf16.mxu0 %v1527
  %2175 = vmatpush1.bf16.msra.mxu0 %v1526
  %2176 = vmatprep.subr.bf16.mxu0 %v1529
  %2177 = vmatpush1.bf16.msra.mxu0 %v1528
  %2178 = vmatprep.subr.bf16.mxu0 %v1531
  %2179 = vmatpush1.bf16.msra.mxu0 %v1530
  %2180 = vmatprep.subr.bf16.mxu0 %v1533
  %2181 = vmatpush1.bf16.msra.mxu0 %v1532
  %2182 = vmatprep.subr.bf16.mxu0 %v1535
  %2183 = vmatpush1.bf16.msra.mxu0 %v1534
  %2184 = vmatprep.subr.bf16.mxu0 %v1537
  %2185 = vmatpush1.bf16.msra.mxu0 %v1536
  %2186 = vmatprep.mubr.bf16.mxu0 %v367
  %2187 = vmatmul.mubr.bf16.gmra.mrb[0].mxu0 %v366
  %v2188 = vpop.f32.mrb[0].mxu0
  %v2189 = vadd.f32 %v2148, %v2188
  %v2190 = vpop.f32.mrb[0].mxu0
  %v2191 = vadd.f32 %v2150, %v2190
  %v2192 = vpop.f32.mrb[0].mxu0
  %v2193 = vpop.f32.mrb[0].mxu0
  %2194 = vdwg.mxu0
  %v2195 = vmax.f32 %v2189, 0.0
  %v2196 = vmax.f32 %v2191, 0.0
  %v2197 = vpack.c.bf16 %v2195, %v2195
  %v2198 = vpack.c.bf16 %v2196, %v2196
  %v2201 = vunpack.c.l.b16 %v2197
  %v2202 = vunpack.c.l.b16 %v2198
  %v2203 = vpack.c.b16 %v2202, %v2201
  %2205 = vst [vmem:[%s3] sm:$0xff] %v2203
  // Predicated region
  $region14: #{yolo_forward.17} parent=0 // pred_check
    _
  $region15: #{yolo_forward.17} parent=0 // pred_check_branch
    %2207 = sbr.rel (0) target = $region17
  $region16: #{yolo_forward.17} parent=0 // pred_region
    _
  $region17: #{yolo_forward.17} parent=0 // pred_fallthru
    _
  // Predicated region
  $region18: #{yolo_forward.17} parent=0 // pred_check
    _
  $region19: #{yolo_forward.17} parent=0 // pred_check_branch
    %2209 = sbr.rel (0) target = $region21
  $region20: #{yolo_forward.17} parent=0 // pred_region
    _
  $region21: #{yolo_forward.17} parent=0 // pred_fallthru
    _

// kernel: yolo_forward.16
$region0: #{yolo_forward.16}
  #allocation0 [shape = 'u32[]', space=smem, size = 0x4, offset = 0x4, fixed_abs, tag = 'smem constant byte address 0x4 - core index']
  #allocation1 [shape = 'u32[144,128]{1,0:T(1,128)}', space=vmem, size = 0x12000, scoped, tag = 'internal scratch']
  %s0 = inlined_call_operand.vmem [shape: bf16[8,2304], index: 0, kind: input, shape index: {}]
  %s1 = inlined_call_operand.vmem [shape: bf16[2304,256], index: 1, kind: input, shape index: {}]
  %s2 = inlined_call_operand.vmem [shape: f32[1,256], index: 2, kind: input, shape index: {}]
  %s3 = inlined_call_operand.vmem [shape: bf16[8,256], index: 3, kind: output, shape index: {}]
  %s4 = sld [smem:[#allocation0]]
  $region22: #{yolo_forward.16} parent=0
    _
  %s6 = ssub.s32 1, %s4
  %s7 = scalar_select 0, %s6, %s4
  // Predicated region
  $region2: #{yolo_forward.16} parent=0 // pred_check
    _
  $region3: #{yolo_forward.16} parent=0 // pred_check_branch
    %9 = sbr.rel (0) target = $region5
  $region4: #{yolo_forward.16} parent=0 // pred_region
    _
  $region5: #{yolo_forward.16} parent=0 // pred_fallthru
    _
  // Predicated region
  $region6: #{yolo_forward.16} parent=0 // pred_check
    _
  $region7: #{yolo_forward.16} parent=0 // pred_check_branch
    %11 = sbr.rel (0) target = $region9
  $region8: #{yolo_forward.16} parent=0 // pred_region
    _
  $region9: #{yolo_forward.16} parent=0 // pred_fallthru
    _
  // Predicated region
  $region10: #{yolo_forward.16} parent=0 // pred_check
    _
  $region11: #{yolo_forward.16} parent=0 // pred_check_branch
    %13 = sbr.rel (0) target = $region13
  $region12: #{yolo_forward.16} parent=0 // pred_region
    _
  $region13: #{yolo_forward.16} parent=0 // pred_fallthru
    _
  %v14 = vld [vmem:[%s0] sm:$0xff]
  %v15 = vld [vmem:[%s0 + $0x8] sm:$0xff]
  %v16 = vld [vmem:[%s0 + $0x10] sm:$0xff]
  %v17 = vld [vmem:[%s0 + $0x18] sm:$0xff]
  %v18 = vld [vmem:[%s0 + $0x20] sm:$0xff]
  %v19 = vld [vmem:[%s0 + $0x28] sm:$0xff]
  %v20 = vld [vmem:[%s0 + $0x30] sm:$0xff]
  %v21 = vld [vmem:[%s0 + $0x38] sm:$0xff]
  %v22 = vld [vmem:[%s0 + $0x40] sm:$0xff]
  %v23 = vld [vmem:[%s1] sm:$0xff]
  %v24 = vld [vmem:[%s1 + $0x8] sm:$0xff]
  %v25 = vld [vmem:[%s1 + $0x10] sm:$0xff]
  %v26 = vld [vmem:[%s1 + $0x18] sm:$0xff]
  %v27 = vld [vmem:[%s1 + $0x20] sm:$0xff]
  %v28 = vld [vmem:[%s1 + $0x28] sm:$0xff]
  %v29 = vld [vmem:[%s1 + $0x30] sm:$0xff]
  %v30 = vld [vmem:[%s1 + $0x38] sm:$0xff]
  %v31 = vld [vmem:[%s1 + $0x40] sm:$0xff]
  %v32 = vld [vmem:[%s1 + $0x48] sm:$0xff]
  %v33 = vld [vmem:[%s1 + $0x50] sm:$0xff]
  %v34 = vld [vmem:[%s1 + $0x58] sm:$0xff]
  %v35 = vld [vmem:[%s1 + $0x60] sm:$0xff]
  %v36 = vld [vmem:[%s1 + $0x68] sm:$0xff]
  %v37 = vld [vmem:[%s1 + $0x70] sm:$0xff]
  %v38 = vld [vmem:[%s1 + $0x78] sm:$0xff]
  %v39 = vld [vmem:[%s1 + $0x80] sm:$0xff]
  %v40 = vld [vmem:[%s1 + $0x88] sm:$0xff]
  %v41 = vld [vmem:[%s1 + $0x90] sm:$0xff]
  %v42 = vld [vmem:[%s1 + $0x98] sm:$0xff]
  %v43 = vld [vmem:[%s1 + $0xa0] sm:$0xff]
  %v44 = vld [vmem:[%s1 + $0xa8] sm:$0xff]
  %v45 = vld [vmem:[%s1 + $0xb0] sm:$0xff]
  %v46 = vld [vmem:[%s1 + $0xb8] sm:$0xff]
  %v47 = vld [vmem:[%s1 + $0xc0] sm:$0xff]
  %v48 = vld [vmem:[%s1 + $0xc8] sm:$0xff]
  %v49 = vld [vmem:[%s1 + $0xd0] sm:$0xff]
  %v50 = vld [vmem:[%s1 + $0xd8] sm:$0xff]
  %v51 = vld [vmem:[%s1 + $0xe0] sm:$0xff]
  %v52 = vld [vmem:[%s1 + $0xe8] sm:$0xff]
  %v53 = vld [vmem:[%s1 + $0xf0] sm:$0xff]
  %v54 = vld [vmem:[%s1 + $0xf8] sm:$0xff]
  %v55 = vld [vmem:[%s1 + $0x100] sm:$0xff]
  %v56 = vld [vmem:[%s1 + $0x108] sm:$0xff]
  %v57 = vld [vmem:[%s1 + $0x110] sm:$0xff]
  %v58 = vld [vmem:[%s1 + $0x118] sm:$0xff]
  %v59 = vld [vmem:[%s1 + $0x120] sm:$0xff]
  %v60 = vld [vmem:[%s1 + $0x128] sm:$0xff]
  %v61 = vld [vmem:[%s1 + $0x130] sm:$0xff]
  %v62 = vld [vmem:[%s1 + $0x138] sm:$0xff]
  %v63 = vld [vmem:[%s1 + $0x140] sm:$0xff]
  %v64 = vld [vmem:[%s1 + $0x148] sm:$0xff]
  %v65 = vld [vmem:[%s1 + $0x150] sm:$0xff]
  %v66 = vld [vmem:[%s1 + $0x158] sm:$0xff]
  %v67 = vld [vmem:[%s1 + $0x160] sm:$0xff]
  %v68 = vld [vmem:[%s1 + $0x168] sm:$0xff]
  %v69 = vld [vmem:[%s1 + $0x170] sm:$0xff]
  %v70 = vld [vmem:[%s1 + $0x178] sm:$0xff]
  %v71 = vld [vmem:[%s1 + $0x180] sm:$0xff]
  %v72 = vld [vmem:[%s1 + $0x188] sm:$0xff]
  %v73 = vld [vmem:[%s1 + $0x190] sm:$0xff]
  %v74 = vld [vmem:[%s1 + $0x198] sm:$0xff]
  %v75 = vld [vmem:[%s1 + $0x1a0] sm:$0xff]
  %v76 = vld [vmem:[%s1 + $0x1a8] sm:$0xff]
  %v77 = vld [vmem:[%s1 + $0x1b0] sm:$0xff]
  %v78 = vld [vmem:[%s1 + $0x1b8] sm:$0xff]
  %v79 = vld [vmem:[%s1 + $0x1c0] sm:$0xff]
  %v80 = vld [vmem:[%s1 + $0x1c8] sm:$0xff]
  %v81 = vld [vmem:[%s1 + $0x1d0] sm:$0xff]
  %v82 = vld [vmem:[%s1 + $0x1d8] sm:$0xff]
  %v83 = vld [vmem:[%s1 + $0x1e0] sm:$0xff]
  %v84 = vld [vmem:[%s1 + $0x1e8] sm:$0xff]
  %v85 = vld [vmem:[%s1 + $0x1f0] sm:$0xff]
  %v86 = vld [vmem:[%s1 + $0x1f8] sm:$0xff]
  %v87 = vld [vmem:[%s1 + $0x200] sm:$0xff]
  %v88 = vld [vmem:[%s1 + $0x208] sm:$0xff]
  %v89 = vld [vmem:[%s1 + $0x210] sm:$0xff]
  %v90 = vld [vmem:[%s1 + $0x218] sm:$0xff]
  %v91 = vld [vmem:[%s1 + $0x220] sm:$0xff]
  %v92 = vld [vmem:[%s1 + $0x228] sm:$0xff]
  %v93 = vld [vmem:[%s1 + $0x230] sm:$0xff]
  %v94 = vld [vmem:[%s1 + $0x238] sm:$0xff]
  %v95 = vld [vmem:[%s1 + $0x240] sm:$0xff]
  %v96 = vld [vmem:[%s1 + $0x248] sm:$0xff]
  %v97 = vld [vmem:[%s1 + $0x250] sm:$0xff]
  %v98 = vld [vmem:[%s1 + $0x258] sm:$0xff]
  %v99 = vld [vmem:[%s1 + $0x260] sm:$0xff]
  %v100 = vld [vmem:[%s1 + $0x268] sm:$0xff]
  %v101 = vld [vmem:[%s1 + $0x270] sm:$0xff]
  %v102 = vld [vmem:[%s1 + $0x278] sm:$0xff]
  %v103 = vld [vmem:[%s1 + $0x280] sm:$0xff]
  %v104 = vld [vmem:[%s1 + $0x288] sm:$0xff]
  %v105 = vld [vmem:[%s1 + $0x290] sm:$0xff]
  %v106 = vld [vmem:[%s1 + $0x298] sm:$0xff]
  %v107 = vld [vmem:[%s1 + $0x2a0] sm:$0xff]
  %v108 = vld [vmem:[%s1 + $0x2a8] sm:$0xff]
  %v109 = vld [vmem:[%s1 + $0x2b0] sm:$0xff]
  %v110 = vld [vmem:[%s1 + $0x2b8] sm:$0xff]
  %v111 = vld [vmem:[%s1 + $0x2c0] sm:$0xff]
  %v112 = vld [vmem:[%s1 + $0x2c8] sm:$0xff]
  %v113 = vld [vmem:[%s1 + $0x2d0] sm:$0xff]
  %v114 = vld [vmem:[%s1 + $0x2d8] sm:$0xff]
  %v115 = vld [vmem:[%s1 + $0x2e0] sm:$0xff]
  %v116 = vld [vmem:[%s1 + $0x2e8] sm:$0xff]
  %v117 = vld [vmem:[%s1 + $0x2f0] sm:$0xff]
  %v118 = vld [vmem:[%s1 + $0x2f8] sm:$0xff]
  %v119 = vld [vmem:[%s1 + $0x300] sm:$0xff]
  %v120 = vld [vmem:[%s1 + $0x308] sm:$0xff]
  %v121 = vld [vmem:[%s1 + $0x310] sm:$0xff]
  %v122 = vld [vmem:[%s1 + $0x318] sm:$0xff]
  %v123 = vld [vmem:[%s1 + $0x320] sm:$0xff]
  %v124 = vld [vmem:[%s1 + $0x328] sm:$0xff]
  %v125 = vld [vmem:[%s1 + $0x330] sm:$0xff]
  %v126 = vld [vmem:[%s1 + $0x338] sm:$0xff]
  %v127 = vld [vmem:[%s1 + $0x340] sm:$0xff]
  %v128 = vld [vmem:[%s1 + $0x348] sm:$0xff]
  %v129 = vld [vmem:[%s1 + $0x350] sm:$0xff]
  %v130 = vld [vmem:[%s1 + $0x358] sm:$0xff]
  %v131 = vld [vmem:[%s1 + $0x360] sm:$0xff]
  %v132 = vld [vmem:[%s1 + $0x368] sm:$0xff]
  %v133 = vld [vmem:[%s1 + $0x370] sm:$0xff]
  %v134 = vld [vmem:[%s1 + $0x378] sm:$0xff]
  %v135 = vld [vmem:[%s1 + $0x380] sm:$0xff]
  %v136 = vld [vmem:[%s1 + $0x388] sm:$0xff]
  %v137 = vld [vmem:[%s1 + $0x390] sm:$0xff]
  %v138 = vld [vmem:[%s1 + $0x398] sm:$0xff]
  %v139 = vld [vmem:[%s1 + $0x3a0] sm:$0xff]
  %v140 = vld [vmem:[%s1 + $0x3a8] sm:$0xff]
  %v141 = vld [vmem:[%s1 + $0x3b0] sm:$0xff]
  %v142 = vld [vmem:[%s1 + $0x3b8] sm:$0xff]
  %v143 = vld [vmem:[%s1 + $0x3c0] sm:$0xff]
  %v144 = vld [vmem:[%s1 + $0x3c8] sm:$0xff]
  %v145 = vld [vmem:[%s1 + $0x3d0] sm:$0xff]
  %v146 = vld [vmem:[%s1 + $0x3d8] sm:$0xff]
  %v147 = vld [vmem:[%s1 + $0x3e0] sm:$0xff]
  %v148 = vld [vmem:[%s1 + $0x3e8] sm:$0xff]
  %v149 = vld [vmem:[%s1 + $0x3f0] sm:$0xff]
  %v150 = vld [vmem:[%s1 + $0x3f8] sm:$0xff]
  %v151 = vld [vmem:[%s1 + $0x400] sm:$0xff]
  %v152 = vld [vmem:[%s1 + $0x408] sm:$0xff]
  %v153 = vld [vmem:[%s1 + $0x410] sm:$0xff]
  %v154 = vld [vmem:[%s1 + $0x418] sm:$0xff]
  %v155 = vld [vmem:[%s1 + $0x420] sm:$0xff]
  %v156 = vld [vmem:[%s1 + $0x428] sm:$0xff]
  %v157 = vld [vmem:[%s1 + $0x430] sm:$0xff]
  %v158 = vld [vmem:[%s1 + $0x438] sm:$0xff]
  %v159 = vld [vmem:[%s1 + $0x440] sm:$0xff]
  %v160 = vld [vmem:[%s1 + $0x448] sm:$0xff]
  %v161 = vld [vmem:[%s1 + $0x450] sm:$0xff]
  %v162 = vld [vmem:[%s1 + $0x458] sm:$0xff]
  %v163 = vld [vmem:[%s1 + $0x460] sm:$0xff]
  %v164 = vld [vmem:[%s1 + $0x468] sm:$0xff]
  %v165 = vld [vmem:[%s1 + $0x470] sm:$0xff]
  %v166 = vld [vmem:[%s1 + $0x478] sm:$0xff]
  %v167 = vld [vmem:[%s1 + $0x480] sm:$0xff]
  %v168 = vld [vmem:[%s1 + $0x488] sm:$0xff]
  %v169 = vld [vmem:[%s1 + $0x490] sm:$0xff]
  %v170 = vld [vmem:[%s1 + $0x498] sm:$0xff]
  %v171 = vld [vmem:[%s1 + $0x4a0] sm:$0xff]
  %v172 = vld [vmem:[%s1 + $0x4a8] sm:$0xff]
  %v173 = vld [vmem:[%s1 + $0x4b0] sm:$0xff]
  %v174 = vld [vmem:[%s1 + $0x4b8] sm:$0xff]
  %v175 = vld [vmem:[%s1 + $0x4c0] sm:$0xff]
  %v176 = vld [vmem:[%s1 + $0x4c8] sm:$0xff]
  %v177 = vld [vmem:[%s1 + $0x4d0] sm:$0xff]
  %v178 = vld [vmem:[%s1 + $0x4d8] sm:$0xff]
  %v179 = vld [vmem:[%s1 + $0x4e0] sm:$0xff]
  %v180 = vld [vmem:[%s1 + $0x4e8] sm:$0xff]
  %v181 = vld [vmem:[%s1 + $0x4f0] sm:$0xff]
  %v182 = vld [vmem:[%s1 + $0x4f8] sm:$0xff]
  %v183 = vld [vmem:[%s1 + $0x500] sm:$0xff]
  %v184 = vld [vmem:[%s1 + $0x508] sm:$0xff]
  %v185 = vld [vmem:[%s1 + $0x510] sm:$0xff]
  %v186 = vld [vmem:[%s1 + $0x518] sm:$0xff]
  %v187 = vld [vmem:[%s1 + $0x520] sm:$0xff]
  %v188 = vld [vmem:[%s1 + $0x528] sm:$0xff]
  %v189 = vld [vmem:[%s1 + $0x530] sm:$0xff]
  %v190 = vld [vmem:[%s1 + $0x538] sm:$0xff]
  %v191 = vld [vmem:[%s1 + $0x540] sm:$0xff]
  %v192 = vld [vmem:[%s1 + $0x548] sm:$0xff]
  %v193 = vld [vmem:[%s1 + $0x550] sm:$0xff]
  %v194 = vld [vmem:[%s1 + $0x558] sm:$0xff]
  %v195 = vld [vmem:[%s1 + $0x560] sm:$0xff]
  %v196 = vld [vmem:[%s1 + $0x568] sm:$0xff]
  %v197 = vld [vmem:[%s1 + $0x570] sm:$0xff]
  %v198 = vld [vmem:[%s1 + $0x578] sm:$0xff]
  %v199 = vld [vmem:[%s1 + $0x580] sm:$0xff]
  %v200 = vld [vmem:[%s1 + $0x588] sm:$0xff]
  %v201 = vld [vmem:[%s1 + $0x590] sm:$0xff]
  %v202 = vld [vmem:[%s1 + $0x598] sm:$0xff]
  %v203 = vld [vmem:[%s1 + $0x5a0] sm:$0xff]
  %v204 = vld [vmem:[%s1 + $0x5a8] sm:$0xff]
  %v205 = vld [vmem:[%s1 + $0x5b0] sm:$0xff]
  %v206 = vld [vmem:[%s1 + $0x5b8] sm:$0xff]
  %v207 = vld [vmem:[%s1 + $0x5c0] sm:$0xff]
  %v208 = vld [vmem:[%s1 + $0x5c8] sm:$0xff]
  %v209 = vld [vmem:[%s1 + $0x5d0] sm:$0xff]
  %v210 = vld [vmem:[%s1 + $0x5d8] sm:$0xff]
  %v211 = vld [vmem:[%s1 + $0x5e0] sm:$0xff]
  %v212 = vld [vmem:[%s1 + $0x5e8] sm:$0xff]
  %v213 = vld [vmem:[%s1 + $0x5f0] sm:$0xff]
  %v214 = vld [vmem:[%s1 + $0x5f8] sm:$0xff]
  %v215 = vld [vmem:[%s1 + $0x600] sm:$0xff]
  %v216 = vld [vmem:[%s1 + $0x608] sm:$0xff]
  %v217 = vld [vmem:[%s1 + $0x610] sm:$0xff]
  %v218 = vld [vmem:[%s1 + $0x618] sm:$0xff]
  %v219 = vld [vmem:[%s1 + $0x620] sm:$0xff]
  %v220 = vld [vmem:[%s1 + $0x628] sm:$0xff]
  %v221 = vld [vmem:[%s1 + $0x630] sm:$0xff]
  %v222 = vld [vmem:[%s1 + $0x638] sm:$0xff]
  %v223 = vld [vmem:[%s1 + $0x640] sm:$0xff]
  %v224 = vld [vmem:[%s1 + $0x648] sm:$0xff]
  %v225 = vld [vmem:[%s1 + $0x650] sm:$0xff]
  %v226 = vld [vmem:[%s1 + $0x658] sm:$0xff]
  %v227 = vld [vmem:[%s1 + $0x660] sm:$0xff]
  %v228 = vld [vmem:[%s1 + $0x668] sm:$0xff]
  %v229 = vld [vmem:[%s1 + $0x670] sm:$0xff]
  %v230 = vld [vmem:[%s1 + $0x678] sm:$0xff]
  %v231 = vld [vmem:[%s1 + $0x680] sm:$0xff]
  %v232 = vld [vmem:[%s1 + $0x688] sm:$0xff]
  %v233 = vld [vmem:[%s1 + $0x690] sm:$0xff]
  %v234 = vld [vmem:[%s1 + $0x698] sm:$0xff]
  %v235 = vld [vmem:[%s1 + $0x6a0] sm:$0xff]
  %v236 = vld [vmem:[%s1 + $0x6a8] sm:$0xff]
  %v237 = vld [vmem:[%s1 + $0x6b0] sm:$0xff]
  %v238 = vld [vmem:[%s1 + $0x6b8] sm:$0xff]
  %v239 = vld [vmem:[%s1 + $0x6c0] sm:$0xff]
  %v240 = vld [vmem:[%s1 + $0x6c8] sm:$0xff]
  %v241 = vld [vmem:[%s1 + $0x6d0] sm:$0xff]
  %v242 = vld [vmem:[%s1 + $0x6d8] sm:$0xff]
  %v243 = vld [vmem:[%s1 + $0x6e0] sm:$0xff]
  %v244 = vld [vmem:[%s1 + $0x6e8] sm:$0xff]
  %v245 = vld [vmem:[%s1 + $0x6f0] sm:$0xff]
  %v246 = vld [vmem:[%s1 + $0x6f8] sm:$0xff]
  %v247 = vld [vmem:[%s1 + $0x700] sm:$0xff]
  %v248 = vld [vmem:[%s1 + $0x708] sm:$0xff]
  %v249 = vld [vmem:[%s1 + $0x710] sm:$0xff]
  %v250 = vld [vmem:[%s1 + $0x718] sm:$0xff]
  %v251 = vld [vmem:[%s1 + $0x720] sm:$0xff]
  %v252 = vld [vmem:[%s1 + $0x728] sm:$0xff]
  %v253 = vld [vmem:[%s1 + $0x730] sm:$0xff]
  %v254 = vld [vmem:[%s1 + $0x738] sm:$0xff]
  %v255 = vld [vmem:[%s1 + $0x740] sm:$0xff]
  %v256 = vld [vmem:[%s1 + $0x748] sm:$0xff]
  %v257 = vld [vmem:[%s1 + $0x750] sm:$0xff]
  %v258 = vld [vmem:[%s1 + $0x758] sm:$0xff]
  %v259 = vld [vmem:[%s1 + $0x760] sm:$0xff]
  %v260 = vld [vmem:[%s1 + $0x768] sm:$0xff]
  %v261 = vld [vmem:[%s1 + $0x770] sm:$0xff]
  %v262 = vld [vmem:[%s1 + $0x778] sm:$0xff]
  %v263 = vld [vmem:[%s1 + $0x780] sm:$0xff]
  %v264 = vld [vmem:[%s1 + $0x788] sm:$0xff]
  %v265 = vld [vmem:[%s1 + $0x790] sm:$0xff]
  %v266 = vld [vmem:[%s1 + $0x798] sm:$0xff]
  %v267 = vld [vmem:[%s1 + $0x7a0] sm:$0xff]
  %v268 = vld [vmem:[%s1 + $0x7a8] sm:$0xff]
  %v269 = vld [vmem:[%s1 + $0x7b0] sm:$0xff]
  %v270 = vld [vmem:[%s1 + $0x7b8] sm:$0xff]
  %v271 = vld [vmem:[%s1 + $0x7c0] sm:$0xff]
  %v272 = vld [vmem:[%s1 + $0x7c8] sm:$0xff]
  %v273 = vld [vmem:[%s1 + $0x7d0] sm:$0xff]
  %v274 = vld [vmem:[%s1 + $0x7d8] sm:$0xff]
  %v275 = vld [vmem:[%s1 + $0x7e0] sm:$0xff]
  %v276 = vld [vmem:[%s1 + $0x7e8] sm:$0xff]
  %v277 = vld [vmem:[%s1 + $0x7f0] sm:$0xff]
  %v278 = vld [vmem:[%s1 + $0x7f8] sm:$0xff]
  %v279 = vld [vmem:[%s1 + $0x800] sm:$0xff]
  %v280 = vld [vmem:[%s1 + $0x808] sm:$0xff]
  %v281 = vld [vmem:[%s1 + $0x810] sm:$0xff]
  %v282 = vld [vmem:[%s1 + $0x818] sm:$0xff]
  %v283 = vld [vmem:[%s1 + $0x820] sm:$0xff]
  %v284 = vld [vmem:[%s1 + $0x828] sm:$0xff]
  %v285 = vld [vmem:[%s1 + $0x830] sm:$0xff]
  %v286 = vld [vmem:[%s1 + $0x838] sm:$0xff]
  %v287 = vld [vmem:[%s1 + $0x840] sm:$0xff]
  %v288 = vld [vmem:[%s1 + $0x848] sm:$0xff]
  %v289 = vld [vmem:[%s1 + $0x850] sm:$0xff]
  %v290 = vld [vmem:[%s1 + $0x858] sm:$0xff]
  %v291 = vld [vmem:[%s1 + $0x860] sm:$0xff]
  %v292 = vld [vmem:[%s1 + $0x868] sm:$0xff]
  %v293 = vld [vmem:[%s1 + $0x870] sm:$0xff]
  %v294 = vld [vmem:[%s1 + $0x878] sm:$0xff]
  %v295 = vld [vmem:[%s1 + $0x880] sm:$0xff]
  %v296 = vld [vmem:[%s1 + $0x888] sm:$0xff]
  %v297 = vld [vmem:[%s1 + $0x890] sm:$0xff]
  %v298 = vld [vmem:[%s1 + $0x898] sm:$0xff]
  %v299 = vld [vmem:[%s1 + $0x8a0] sm:$0xff]
  %v300 = vld [vmem:[%s1 + $0x8a8] sm:$0xff]
  %v301 = vld [vmem:[%s1 + $0x8b0] sm:$0xff]
  %v302 = vld [vmem:[%s1 + $0x8b8] sm:$0xff]
  %v303 = vld [vmem:[%s1 + $0x8c0] sm:$0xff]
  %v304 = vld [vmem:[%s1 + $0x8c8] sm:$0xff]
  %v305 = vld [vmem:[%s1 + $0x8d0] sm:$0xff]
  %v306 = vld [vmem:[%s1 + $0x8d8] sm:$0xff]
  %v307 = vld [vmem:[%s1 + $0x8e0] sm:$0xff]
  %v308 = vld [vmem:[%s1 + $0x8e8] sm:$0xff]
  %v309 = vld [vmem:[%s1 + $0x8f0] sm:$0xff]
  %v310 = vld [vmem:[%s1 + $0x8f8] sm:$0xff]
  %v311 = vld [vmem:[%s2] sm:$0x3]
  %v313 = vlaneseq
  %v314 = vshrl.u32 %v313, 7
  %v315 = vsub.s32 0, %v314
  %v316 = vrot.slane %v311, %v315
  %v317 = vlaneseq
  %v318 = vshrl.u32 %v317, 7
  %v319 = vsub.s32 1, %v318
  %v320 = vrot.slane %v311, %v319
  %v332 = vunpack.c.l.b16 %v14
  %v333 = vunpack.c.h.b16 %v14
  %v334 = vunpack.c.l.b16 %v15
  %v335 = vunpack.c.h.b16 %v15
  %v336 = vunpack.c.l.b16 %v16
  %v337 = vunpack.c.h.b16 %v16
  %v338 = vunpack.c.l.b16 %v17
  %v339 = vunpack.c.h.b16 %v17
  %v340 = vunpack.c.l.b16 %v18
  %v341 = vunpack.c.h.b16 %v18
  %v342 = vunpack.c.l.b16 %v19
  %v343 = vunpack.c.h.b16 %v19
  %v344 = vunpack.c.l.b16 %v20
  %v345 = vunpack.c.h.b16 %v20
  %v346 = vunpack.c.l.b16 %v21
  %v347 = vunpack.c.h.b16 %v21
  %v348 = vunpack.c.l.b16 %v22
  %v349 = vunpack.c.h.b16 %v22
  %v350 = vpack.c.b16 %v332, %v332
  %v351 = vpack.c.b16 %v333, %v333
  %v352 = vpack.c.b16 %v334, %v334
  %v353 = vpack.c.b16 %v335, %v335
  %v354 = vpack.c.b16 %v336, %v336
  %v355 = vpack.c.b16 %v337, %v337
  %v356 = vpack.c.b16 %v338, %v338
  %v357 = vpack.c.b16 %v339, %v339
  %v358 = vpack.c.b16 %v340, %v340
  %v359 = vpack.c.b16 %v341, %v341
  %v360 = vpack.c.b16 %v342, %v342
  %v361 = vpack.c.b16 %v343, %v343
  %v362 = vpack.c.b16 %v344, %v344
  %v363 = vpack.c.b16 %v345, %v345
  %v364 = vpack.c.b16 %v346, %v346
  %v365 = vpack.c.b16 %v347, %v347
  %v366 = vpack.c.b16 %v348, %v348
  %v367 = vpack.c.b16 %v349, %v349
  %v674 = vunpack.c.l.b16 %v23
  %v675 = vunpack.c.h.b16 %v23
  %v676 = vunpack.c.l.b16 %v24
  %v677 = vunpack.c.h.b16 %v24
  %v678 = vunpack.c.l.b16 %v25
  %v679 = vunpack.c.h.b16 %v25
  %v680 = vunpack.c.l.b16 %v26
  %v681 = vunpack.c.h.b16 %v26
  %v682 = vunpack.c.l.b16 %v27
  %v683 = vunpack.c.h.b16 %v27
  %v684 = vunpack.c.l.b16 %v28
  %v685 = vunpack.c.h.b16 %v28
  %v686 = vunpack.c.l.b16 %v29
  %v687 = vunpack.c.h.b16 %v29
  %v688 = vunpack.c.l.b16 %v30
  %v689 = vunpack.c.h.b16 %v30
  %v690 = vunpack.c.l.b16 %v31
  %v691 = vunpack.c.h.b16 %v31
  %v692 = vunpack.c.l.b16 %v32
  %v693 = vunpack.c.h.b16 %v32
  %v694 = vunpack.c.l.b16 %v33
  %v695 = vunpack.c.h.b16 %v33
  %v696 = vunpack.c.l.b16 %v34
  %v697 = vunpack.c.h.b16 %v34
  %v698 = vunpack.c.l.b16 %v35
  %v699 = vunpack.c.h.b16 %v35
  %v700 = vunpack.c.l.b16 %v36
  %v701 = vunpack.c.h.b16 %v36
  %v702 = vunpack.c.l.b16 %v37
  %v703 = vunpack.c.h.b16 %v37
  %v704 = vunpack.c.l.b16 %v38
  %v705 = vunpack.c.h.b16 %v38
  %v706 = vunpack.c.l.b16 %v39
  %v707 = vunpack.c.h.b16 %v39
  %v708 = vunpack.c.l.b16 %v40
  %v709 = vunpack.c.h.b16 %v40
  %v710 = vunpack.c.l.b16 %v41
  %v711 = vunpack.c.h.b16 %v41
  %v712 = vunpack.c.l.b16 %v42
  %v713 = vunpack.c.h.b16 %v42
  %v714 = vunpack.c.l.b16 %v43
  %v715 = vunpack.c.h.b16 %v43
  %v716 = vunpack.c.l.b16 %v44
  %v717 = vunpack.c.h.b16 %v44
  %v718 = vunpack.c.l.b16 %v45
  %v719 = vunpack.c.h.b16 %v45
  %v720 = vunpack.c.l.b16 %v46
  %v721 = vunpack.c.h.b16 %v46
  %v722 = vunpack.c.l.b16 %v47
  %v723 = vunpack.c.h.b16 %v47
  %v724 = vunpack.c.l.b16 %v48
  %v725 = vunpack.c.h.b16 %v48
  %v726 = vunpack.c.l.b16 %v49
  %v727 = vunpack.c.h.b16 %v49
  %v728 = vunpack.c.l.b16 %v50
  %v729 = vunpack.c.h.b16 %v50
  %v730 = vunpack.c.l.b16 %v51
  %v731 = vunpack.c.h.b16 %v51
  %v732 = vunpack.c.l.b16 %v52
  %v733 = vunpack.c.h.b16 %v52
  %v734 = vunpack.c.l.b16 %v53
  %v735 = vunpack.c.h.b16 %v53
  %v736 = vunpack.c.l.b16 %v54
  %v737 = vunpack.c.h.b16 %v54
  %v738 = vunpack.c.l.b16 %v55
  %v739 = vunpack.c.h.b16 %v55
  %v740 = vunpack.c.l.b16 %v56
  %v741 = vunpack.c.h.b16 %v56
  %v742 = vunpack.c.l.b16 %v57
  %v743 = vunpack.c.h.b16 %v57
  %v744 = vunpack.c.l.b16 %v58
  %v745 = vunpack.c.h.b16 %v58
  %v746 = vunpack.c.l.b16 %v59
  %v747 = vunpack.c.h.b16 %v59
  %v748 = vunpack.c.l.b16 %v60
  %v749 = vunpack.c.h.b16 %v60
  %v750 = vunpack.c.l.b16 %v61
  %v751 = vunpack.c.h.b16 %v61
  %v752 = vunpack.c.l.b16 %v62
  %v753 = vunpack.c.h.b16 %v62
  %v754 = vunpack.c.l.b16 %v63
  %v755 = vunpack.c.h.b16 %v63
  %v756 = vunpack.c.l.b16 %v64
  %v757 = vunpack.c.h.b16 %v64
  %v758 = vunpack.c.l.b16 %v65
  %v759 = vunpack.c.h.b16 %v65
  %v760 = vunpack.c.l.b16 %v66
  %v761 = vunpack.c.h.b16 %v66
  %v762 = vunpack.c.l.b16 %v67
  %v763 = vunpack.c.h.b16 %v67
  %v764 = vunpack.c.l.b16 %v68
  %v765 = vunpack.c.h.b16 %v68
  %v766 = vunpack.c.l.b16 %v69
  %v767 = vunpack.c.h.b16 %v69
  %v768 = vunpack.c.l.b16 %v70
  %v769 = vunpack.c.h.b16 %v70
  %v770 = vunpack.c.l.b16 %v71
  %v771 = vunpack.c.h.b16 %v71
  %v772 = vunpack.c.l.b16 %v72
  %v773 = vunpack.c.h.b16 %v72
  %v774 = vunpack.c.l.b16 %v73
  %v775 = vunpack.c.h.b16 %v73
  %v776 = vunpack.c.l.b16 %v74
  %v777 = vunpack.c.h.b16 %v74
  %v778 = vunpack.c.l.b16 %v75
  %v779 = vunpack.c.h.b16 %v75
  %v780 = vunpack.c.l.b16 %v76
  %v781 = vunpack.c.h.b16 %v76
  %v782 = vunpack.c.l.b16 %v77
  %v783 = vunpack.c.h.b16 %v77
  %v784 = vunpack.c.l.b16 %v78
  %v785 = vunpack.c.h.b16 %v78
  %v786 = vunpack.c.l.b16 %v79
  %v787 = vunpack.c.h.b16 %v79
  %v788 = vunpack.c.l.b16 %v80
  %v789 = vunpack.c.h.b16 %v80
  %v790 = vunpack.c.l.b16 %v81
  %v791 = vunpack.c.h.b16 %v81
  %v792 = vunpack.c.l.b16 %v82
  %v793 = vunpack.c.h.b16 %v82
  %v794 = vunpack.c.l.b16 %v83
  %v795 = vunpack.c.h.b16 %v83
  %v796 = vunpack.c.l.b16 %v84
  %v797 = vunpack.c.h.b16 %v84
  %v798 = vunpack.c.l.b16 %v85
  %v799 = vunpack.c.h.b16 %v85
  %v800 = vunpack.c.l.b16 %v86
  %v801 = vunpack.c.h.b16 %v86
  %v802 = vunpack.c.l.b16 %v87
  %v803 = vunpack.c.h.b16 %v87
  %v804 = vunpack.c.l.b16 %v88
  %v805 = vunpack.c.h.b16 %v88
  %v806 = vunpack.c.l.b16 %v89
  %v807 = vunpack.c.h.b16 %v89
  %v808 = vunpack.c.l.b16 %v90
  %v809 = vunpack.c.h.b16 %v90
  %v810 = vunpack.c.l.b16 %v91
  %v811 = vunpack.c.h.b16 %v91
  %v812 = vunpack.c.l.b16 %v92
  %v813 = vunpack.c.h.b16 %v92
  %v814 = vunpack.c.l.b16 %v93
  %v815 = vunpack.c.h.b16 %v93
  %v816 = vunpack.c.l.b16 %v94
  %v817 = vunpack.c.h.b16 %v94
  %v818 = vunpack.c.l.b16 %v95
  %v819 = vunpack.c.h.b16 %v95
  %v820 = vunpack.c.l.b16 %v96
  %v821 = vunpack.c.h.b16 %v96
  %v822 = vunpack.c.l.b16 %v97
  %v823 = vunpack.c.h.b16 %v97
  %v824 = vunpack.c.l.b16 %v98
  %v825 = vunpack.c.h.b16 %v98
  %v826 = vunpack.c.l.b16 %v99
  %v827 = vunpack.c.h.b16 %v99
  %v828 = vunpack.c.l.b16 %v100
  %v829 = vunpack.c.h.b16 %v100
  %v830 = vunpack.c.l.b16 %v101
  %v831 = vunpack.c.h.b16 %v101
  %v832 = vunpack.c.l.b16 %v102
  %v833 = vunpack.c.h.b16 %v102
  %v834 = vunpack.c.l.b16 %v103
  %v835 = vunpack.c.h.b16 %v103
  %v836 = vunpack.c.l.b16 %v104
  %v837 = vunpack.c.h.b16 %v104
  %v838 = vunpack.c.l.b16 %v105
  %v839 = vunpack.c.h.b16 %v105
  %v840 = vunpack.c.l.b16 %v106
  %v841 = vunpack.c.h.b16 %v106
  %v842 = vunpack.c.l.b16 %v107
  %v843 = vunpack.c.h.b16 %v107
  %v844 = vunpack.c.l.b16 %v108
  %v845 = vunpack.c.h.b16 %v108
  %v846 = vunpack.c.l.b16 %v109
  %v847 = vunpack.c.h.b16 %v109
  %v848 = vunpack.c.l.b16 %v110
  %v849 = vunpack.c.h.b16 %v110
  %v850 = vunpack.c.l.b16 %v111
  %v851 = vunpack.c.h.b16 %v111
  %v852 = vunpack.c.l.b16 %v112
  %v853 = vunpack.c.h.b16 %v112
  %v854 = vunpack.c.l.b16 %v113
  %v855 = vunpack.c.h.b16 %v113
  %v856 = vunpack.c.l.b16 %v114
  %v857 = vunpack.c.h.b16 %v114
  %v858 = vunpack.c.l.b16 %v115
  %v859 = vunpack.c.h.b16 %v115
  %v860 = vunpack.c.l.b16 %v116
  %v861 = vunpack.c.h.b16 %v116
  %v862 = vunpack.c.l.b16 %v117
  %v863 = vunpack.c.h.b16 %v117
  %v864 = vunpack.c.l.b16 %v118
  %v865 = vunpack.c.h.b16 %v118
  %v866 = vunpack.c.l.b16 %v119
  %v867 = vunpack.c.h.b16 %v119
  %v868 = vunpack.c.l.b16 %v120
  %v869 = vunpack.c.h.b16 %v120
  %v870 = vunpack.c.l.b16 %v121
  %v871 = vunpack.c.h.b16 %v121
  %v872 = vunpack.c.l.b16 %v122
  %v873 = vunpack.c.h.b16 %v122
  %v874 = vunpack.c.l.b16 %v123
  %v875 = vunpack.c.h.b16 %v123
  %v876 = vunpack.c.l.b16 %v124
  %v877 = vunpack.c.h.b16 %v124
  %v878 = vunpack.c.l.b16 %v125
  %v879 = vunpack.c.h.b16 %v125
  %v880 = vunpack.c.l.b16 %v126
  %v881 = vunpack.c.h.b16 %v126
  %v882 = vunpack.c.l.b16 %v127
  %v883 = vunpack.c.h.b16 %v127
  %v884 = vunpack.c.l.b16 %v128
  %v885 = vunpack.c.h.b16 %v128
  %v886 = vunpack.c.l.b16 %v129
  %v887 = vunpack.c.h.b16 %v129
  %v888 = vunpack.c.l.b16 %v130
  %v889 = vunpack.c.h.b16 %v130
  %v890 = vunpack.c.l.b16 %v131
  %v891 = vunpack.c.h.b16 %v131
  %v892 = vunpack.c.l.b16 %v132
  %v893 = vunpack.c.h.b16 %v132
  %v894 = vunpack.c.l.b16 %v133
  %v895 = vunpack.c.h.b16 %v133
  %v896 = vunpack.c.l.b16 %v134
  %v897 = vunpack.c.h.b16 %v134
  %v898 = vunpack.c.l.b16 %v135
  %v899 = vunpack.c.h.b16 %v135
  %v900 = vunpack.c.l.b16 %v136
  %v901 = vunpack.c.h.b16 %v136
  %v902 = vunpack.c.l.b16 %v137
  %v903 = vunpack.c.h.b16 %v137
  %v904 = vunpack.c.l.b16 %v138
  %v905 = vunpack.c.h.b16 %v138
  %v906 = vunpack.c.l.b16 %v139
  %v907 = vunpack.c.h.b16 %v139
  %v908 = vunpack.c.l.b16 %v140
  %v909 = vunpack.c.h.b16 %v140
  %v910 = vunpack.c.l.b16 %v141
  %v911 = vunpack.c.h.b16 %v141
  %v912 = vunpack.c.l.b16 %v142
  %v913 = vunpack.c.h.b16 %v142
  %v914 = vunpack.c.l.b16 %v143
  %v915 = vunpack.c.h.b16 %v143
  %v916 = vunpack.c.l.b16 %v144
  %v917 = vunpack.c.h.b16 %v144
  %v918 = vunpack.c.l.b16 %v145
  %v919 = vunpack.c.h.b16 %v145
  %v920 = vunpack.c.l.b16 %v146
  %v921 = vunpack.c.h.b16 %v146
  %v922 = vunpack.c.l.b16 %v147
  %v923 = vunpack.c.h.b16 %v147
  %v924 = vunpack.c.l.b16 %v148
  %v925 = vunpack.c.h.b16 %v148
  %v926 = vunpack.c.l.b16 %v149
  %v927 = vunpack.c.h.b16 %v149
  %v928 = vunpack.c.l.b16 %v150
  %v929 = vunpack.c.h.b16 %v150
  %v930 = vunpack.c.l.b16 %v151
  %v931 = vunpack.c.h.b16 %v151
  %v932 = vunpack.c.l.b16 %v152
  %v933 = vunpack.c.h.b16 %v152
  %v934 = vunpack.c.l.b16 %v153
  %v935 = vunpack.c.h.b16 %v153
  %v936 = vunpack.c.l.b16 %v154
  %v937 = vunpack.c.h.b16 %v154
  %v938 = vunpack.c.l.b16 %v155
  %v939 = vunpack.c.h.b16 %v155
  %v940 = vunpack.c.l.b16 %v156
  %v941 = vunpack.c.h.b16 %v156
  %v942 = vunpack.c.l.b16 %v157
  %v943 = vunpack.c.h.b16 %v157
  %v944 = vunpack.c.l.b16 %v158
  %v945 = vunpack.c.h.b16 %v158
  %v946 = vunpack.c.l.b16 %v159
  %v947 = vunpack.c.h.b16 %v159
  %v948 = vunpack.c.l.b16 %v160
  %v949 = vunpack.c.h.b16 %v160
  %v950 = vunpack.c.l.b16 %v161
  %v951 = vunpack.c.h.b16 %v161
  %v952 = vunpack.c.l.b16 %v162
  %v953 = vunpack.c.h.b16 %v162
  %v954 = vunpack.c.l.b16 %v163
  %v955 = vunpack.c.h.b16 %v163
  %v956 = vunpack.c.l.b16 %v164
  %v957 = vunpack.c.h.b16 %v164
  %v958 = vunpack.c.l.b16 %v165
  %v959 = vunpack.c.h.b16 %v165
  %v960 = vunpack.c.l.b16 %v166
  %v961 = vunpack.c.h.b16 %v166
  %v962 = vunpack.c.l.b16 %v167
  %v963 = vunpack.c.h.b16 %v167
  %v964 = vunpack.c.l.b16 %v168
  %v965 = vunpack.c.h.b16 %v168
  %v966 = vunpack.c.l.b16 %v169
  %v967 = vunpack.c.h.b16 %v169
  %v968 = vunpack.c.l.b16 %v170
  %v969 = vunpack.c.h.b16 %v170
  %v970 = vunpack.c.l.b16 %v171
  %v971 = vunpack.c.h.b16 %v171
  %v972 = vunpack.c.l.b16 %v172
  %v973 = vunpack.c.h.b16 %v172
  %v974 = vunpack.c.l.b16 %v173
  %v975 = vunpack.c.h.b16 %v173
  %v976 = vunpack.c.l.b16 %v174
  %v977 = vunpack.c.h.b16 %v174
  %v978 = vunpack.c.l.b16 %v175
  %v979 = vunpack.c.h.b16 %v175
  %v980 = vunpack.c.l.b16 %v176
  %v981 = vunpack.c.h.b16 %v176
  %v982 = vunpack.c.l.b16 %v177
  %v983 = vunpack.c.h.b16 %v177
  %v984 = vunpack.c.l.b16 %v178
  %v985 = vunpack.c.h.b16 %v178
  %v986 = vunpack.c.l.b16 %v179
  %v987 = vunpack.c.h.b16 %v179
  %v988 = vunpack.c.l.b16 %v180
  %v989 = vunpack.c.h.b16 %v180
  %v990 = vunpack.c.l.b16 %v181
  %v991 = vunpack.c.h.b16 %v181
  %v992 = vunpack.c.l.b16 %v182
  %v993 = vunpack.c.h.b16 %v182
  %v994 = vunpack.c.l.b16 %v183
  %v995 = vunpack.c.h.b16 %v183
  %v996 = vunpack.c.l.b16 %v184
  %v997 = vunpack.c.h.b16 %v184
  %v998 = vunpack.c.l.b16 %v185
  %v999 = vunpack.c.h.b16 %v185
  %v1000 = vunpack.c.l.b16 %v186
  %v1001 = vunpack.c.h.b16 %v186
  %v1002 = vunpack.c.l.b16 %v187
  %v1003 = vunpack.c.h.b16 %v187
  %v1004 = vunpack.c.l.b16 %v188
  %v1005 = vunpack.c.h.b16 %v188
  %v1006 = vunpack.c.l.b16 %v189
  %v1007 = vunpack.c.h.b16 %v189
  %v1008 = vunpack.c.l.b16 %v190
  %v1009 = vunpack.c.h.b16 %v190
  %v1010 = vunpack.c.l.b16 %v191
  %v1011 = vunpack.c.h.b16 %v191
  %v1012 = vunpack.c.l.b16 %v192
  %v1013 = vunpack.c.h.b16 %v192
  %v1014 = vunpack.c.l.b16 %v193
  %v1015 = vunpack.c.h.b16 %v193
  %v1016 = vunpack.c.l.b16 %v194
  %v1017 = vunpack.c.h.b16 %v194
  %v1018 = vunpack.c.l.b16 %v195
  %v1019 = vunpack.c.h.b16 %v195
  %v1020 = vunpack.c.l.b16 %v196
  %v1021 = vunpack.c.h.b16 %v196
  %v1022 = vunpack.c.l.b16 %v197
  %v1023 = vunpack.c.h.b16 %v197
  %v1024 = vunpack.c.l.b16 %v198
  %v1025 = vunpack.c.h.b16 %v198
  %v1026 = vunpack.c.l.b16 %v199
  %v1027 = vunpack.c.h.b16 %v199
  %v1028 = vunpack.c.l.b16 %v200
  %v1029 = vunpack.c.h.b16 %v200
  %v1030 = vunpack.c.l.b16 %v201
  %v1031 = vunpack.c.h.b16 %v201
  %v1032 = vunpack.c.l.b16 %v202
  %v1033 = vunpack.c.h.b16 %v202
  %v1034 = vunpack.c.l.b16 %v203
  %v1035 = vunpack.c.h.b16 %v203
  %v1036 = vunpack.c.l.b16 %v204
  %v1037 = vunpack.c.h.b16 %v204
  %v1038 = vunpack.c.l.b16 %v205
  %v1039 = vunpack.c.h.b16 %v205
  %v1040 = vunpack.c.l.b16 %v206
  %v1041 = vunpack.c.h.b16 %v206
  %v1042 = vunpack.c.l.b16 %v207
  %v1043 = vunpack.c.h.b16 %v207
  %v1044 = vunpack.c.l.b16 %v208
  %v1045 = vunpack.c.h.b16 %v208
  %v1046 = vunpack.c.l.b16 %v209
  %v1047 = vunpack.c.h.b16 %v209
  %v1048 = vunpack.c.l.b16 %v210
  %v1049 = vunpack.c.h.b16 %v210
  %v1050 = vunpack.c.l.b16 %v211
  %v1051 = vunpack.c.h.b16 %v211
  %v1052 = vunpack.c.l.b16 %v212
  %v1053 = vunpack.c.h.b16 %v212
  %v1054 = vunpack.c.l.b16 %v213
  %v1055 = vunpack.c.h.b16 %v213
  %v1056 = vunpack.c.l.b16 %v214
  %v1057 = vunpack.c.h.b16 %v214
  %v1058 = vunpack.c.l.b16 %v215
  %v1059 = vunpack.c.h.b16 %v215
  %v1060 = vunpack.c.l.b16 %v216
  %v1061 = vunpack.c.h.b16 %v216
  %v1062 = vunpack.c.l.b16 %v217
  %v1063 = vunpack.c.h.b16 %v217
  %v1064 = vunpack.c.l.b16 %v218
  %v1065 = vunpack.c.h.b16 %v218
  %v1066 = vunpack.c.l.b16 %v219
  %v1067 = vunpack.c.h.b16 %v219
  %v1068 = vunpack.c.l.b16 %v220
  %v1069 = vunpack.c.h.b16 %v220
  %v1070 = vunpack.c.l.b16 %v221
  %v1071 = vunpack.c.h.b16 %v221
  %v1072 = vunpack.c.l.b16 %v222
  %v1073 = vunpack.c.h.b16 %v222
  %v1074 = vunpack.c.l.b16 %v223
  %v1075 = vunpack.c.h.b16 %v223
  %v1076 = vunpack.c.l.b16 %v224
  %v1077 = vunpack.c.h.b16 %v224
  %v1078 = vunpack.c.l.b16 %v225
  %v1079 = vunpack.c.h.b16 %v225
  %v1080 = vunpack.c.l.b16 %v226
  %v1081 = vunpack.c.h.b16 %v226
  %v1082 = vunpack.c.l.b16 %v227
  %v1083 = vunpack.c.h.b16 %v227
  %v1084 = vunpack.c.l.b16 %v228
  %v1085 = vunpack.c.h.b16 %v228
  %v1086 = vunpack.c.l.b16 %v229
  %v1087 = vunpack.c.h.b16 %v229
  %v1088 = vunpack.c.l.b16 %v230
  %v1089 = vunpack.c.h.b16 %v230
  %v1090 = vunpack.c.l.b16 %v231
  %v1091 = vunpack.c.h.b16 %v231
  %v1092 = vunpack.c.l.b16 %v232
  %v1093 = vunpack.c.h.b16 %v232
  %v1094 = vunpack.c.l.b16 %v233
  %v1095 = vunpack.c.h.b16 %v233
  %v1096 = vunpack.c.l.b16 %v234
  %v1097 = vunpack.c.h.b16 %v234
  %v1098 = vunpack.c.l.b16 %v235
  %v1099 = vunpack.c.h.b16 %v235
  %v1100 = vunpack.c.l.b16 %v236
  %v1101 = vunpack.c.h.b16 %v236
  %v1102 = vunpack.c.l.b16 %v237
  %v1103 = vunpack.c.h.b16 %v237
  %v1104 = vunpack.c.l.b16 %v238
  %v1105 = vunpack.c.h.b16 %v238
  %v1106 = vunpack.c.l.b16 %v239
  %v1107 = vunpack.c.h.b16 %v239
  %v1108 = vunpack.c.l.b16 %v240
  %v1109 = vunpack.c.h.b16 %v240
  %v1110 = vunpack.c.l.b16 %v241
  %v1111 = vunpack.c.h.b16 %v241
  %v1112 = vunpack.c.l.b16 %v242
  %v1113 = vunpack.c.h.b16 %v242
  %v1114 = vunpack.c.l.b16 %v243
  %v1115 = vunpack.c.h.b16 %v243
  %v1116 = vunpack.c.l.b16 %v244
  %v1117 = vunpack.c.h.b16 %v244
  %v1118 = vunpack.c.l.b16 %v245
  %v1119 = vunpack.c.h.b16 %v245
  %v1120 = vunpack.c.l.b16 %v246
  %v1121 = vunpack.c.h.b16 %v246
  %v1122 = vunpack.c.l.b16 %v247
  %v1123 = vunpack.c.h.b16 %v247
  %v1124 = vunpack.c.l.b16 %v248
  %v1125 = vunpack.c.h.b16 %v248
  %v1126 = vunpack.c.l.b16 %v249
  %v1127 = vunpack.c.h.b16 %v249
  %v1128 = vunpack.c.l.b16 %v250
  %v1129 = vunpack.c.h.b16 %v250
  %v1130 = vunpack.c.l.b16 %v251
  %v1131 = vunpack.c.h.b16 %v251
  %v1132 = vunpack.c.l.b16 %v252
  %v1133 = vunpack.c.h.b16 %v252
  %v1134 = vunpack.c.l.b16 %v253
  %v1135 = vunpack.c.h.b16 %v253
  %v1136 = vunpack.c.l.b16 %v254
  %v1137 = vunpack.c.h.b16 %v254
  %v1138 = vunpack.c.l.b16 %v255
  %v1139 = vunpack.c.h.b16 %v255
  %v1140 = vunpack.c.l.b16 %v256
  %v1141 = vunpack.c.h.b16 %v256
  %v1142 = vunpack.c.l.b16 %v257
  %v1143 = vunpack.c.h.b16 %v257
  %v1144 = vunpack.c.l.b16 %v258
  %v1145 = vunpack.c.h.b16 %v258
  %v1146 = vunpack.c.l.b16 %v259
  %v1147 = vunpack.c.h.b16 %v259
  %v1148 = vunpack.c.l.b16 %v260
  %v1149 = vunpack.c.h.b16 %v260
  %v1150 = vunpack.c.l.b16 %v261
  %v1151 = vunpack.c.h.b16 %v261
  %v1152 = vunpack.c.l.b16 %v262
  %v1153 = vunpack.c.h.b16 %v262
  %v1154 = vunpack.c.l.b16 %v263
  %v1155 = vunpack.c.h.b16 %v263
  %v1156 = vunpack.c.l.b16 %v264
  %v1157 = vunpack.c.h.b16 %v264
  %v1158 = vunpack.c.l.b16 %v265
  %v1159 = vunpack.c.h.b16 %v265
  %v1160 = vunpack.c.l.b16 %v266
  %v1161 = vunpack.c.h.b16 %v266
  %v1162 = vunpack.c.l.b16 %v267
  %v1163 = vunpack.c.h.b16 %v267
  %v1164 = vunpack.c.l.b16 %v268
  %v1165 = vunpack.c.h.b16 %v268
  %v1166 = vunpack.c.l.b16 %v269
  %v1167 = vunpack.c.h.b16 %v269
  %v1168 = vunpack.c.l.b16 %v270
  %v1169 = vunpack.c.h.b16 %v270
  %v1170 = vunpack.c.l.b16 %v271
  %v1171 = vunpack.c.h.b16 %v271
  %v1172 = vunpack.c.l.b16 %v272
  %v1173 = vunpack.c.h.b16 %v272
  %v1174 = vunpack.c.l.b16 %v273
  %v1175 = vunpack.c.h.b16 %v273
  %v1176 = vunpack.c.l.b16 %v274
  %v1177 = vunpack.c.h.b16 %v274
  %v1178 = vunpack.c.l.b16 %v275
  %v1179 = vunpack.c.h.b16 %v275
  %v1180 = vunpack.c.l.b16 %v276
  %v1181 = vunpack.c.h.b16 %v276
  %v1182 = vunpack.c.l.b16 %v277
  %v1183 = vunpack.c.h.b16 %v277
  %v1184 = vunpack.c.l.b16 %v278
  %v1185 = vunpack.c.h.b16 %v278
  %v1186 = vunpack.c.l.b16 %v279
  %v1187 = vunpack.c.h.b16 %v279
  %v1188 = vunpack.c.l.b16 %v280
  %v1189 = vunpack.c.h.b16 %v280
  %v1190 = vunpack.c.l.b16 %v281
  %v1191 = vunpack.c.h.b16 %v281
  %v1192 = vunpack.c.l.b16 %v282
  %v1193 = vunpack.c.h.b16 %v282
  %v1194 = vunpack.c.l.b16 %v283
  %v1195 = vunpack.c.h.b16 %v283
  %v1196 = vunpack.c.l.b16 %v284
  %v1197 = vunpack.c.h.b16 %v284
  %v1198 = vunpack.c.l.b16 %v285
  %v1199 = vunpack.c.h.b16 %v285
  %v1200 = vunpack.c.l.b16 %v286
  %v1201 = vunpack.c.h.b16 %v286
  %v1202 = vunpack.c.l.b16 %v287
  %v1203 = vunpack.c.h.b16 %v287
  %v1204 = vunpack.c.l.b16 %v288
  %v1205 = vunpack.c.h.b16 %v288
  %v1206 = vunpack.c.l.b16 %v289
  %v1207 = vunpack.c.h.b16 %v289
  %v1208 = vunpack.c.l.b16 %v290
  %v1209 = vunpack.c.h.b16 %v290
  %v1210 = vunpack.c.l.b16 %v291
  %v1211 = vunpack.c.h.b16 %v291
  %v1212 = vunpack.c.l.b16 %v292
  %v1213 = vunpack.c.h.b16 %v292
  %v1214 = vunpack.c.l.b16 %v293
  %v1215 = vunpack.c.h.b16 %v293
  %v1216 = vunpack.c.l.b16 %v294
  %v1217 = vunpack.c.h.b16 %v294
  %v1218 = vunpack.c.l.b16 %v295
  %v1219 = vunpack.c.h.b16 %v295
  %v1220 = vunpack.c.l.b16 %v296
  %v1221 = vunpack.c.h.b16 %v296
  %v1222 = vunpack.c.l.b16 %v297
  %v1223 = vunpack.c.h.b16 %v297
  %v1224 = vunpack.c.l.b16 %v298
  %v1225 = vunpack.c.h.b16 %v298
  %v1226 = vunpack.c.l.b16 %v299
  %v1227 = vunpack.c.h.b16 %v299
  %v1228 = vunpack.c.l.b16 %v300
  %v1229 = vunpack.c.h.b16 %v300
  %v1230 = vunpack.c.l.b16 %v301
  %v1231 = vunpack.c.h.b16 %v301
  %v1232 = vunpack.c.l.b16 %v302
  %v1233 = vunpack.c.h.b16 %v302
  %v1234 = vunpack.c.l.b16 %v303
  %v1235 = vunpack.c.h.b16 %v303
  %v1236 = vunpack.c.l.b16 %v304
  %v1237 = vunpack.c.h.b16 %v304
  %v1238 = vunpack.c.l.b16 %v305
  %v1239 = vunpack.c.h.b16 %v305
  %v1240 = vunpack.c.l.b16 %v306
  %v1241 = vunpack.c.h.b16 %v306
  %v1242 = vunpack.c.l.b16 %v307
  %v1243 = vunpack.c.h.b16 %v307
  %v1244 = vunpack.c.l.b16 %v308
  %v1245 = vunpack.c.h.b16 %v308
  %v1246 = vunpack.c.l.b16 %v309
  %v1247 = vunpack.c.h.b16 %v309
  %v1248 = vunpack.c.l.b16 %v310
  %v1249 = vunpack.c.h.b16 %v310
  %v1250 = vpack.c.b16 %v676, %v674
  %v1251 = vpack.c.b16 %v677, %v675
  %v1252 = vpack.c.b16 %v680, %v678
  %v1253 = vpack.c.b16 %v681, %v679
  %v1254 = vpack.c.b16 %v684, %v682
  %v1255 = vpack.c.b16 %v685, %v683
  %v1256 = vpack.c.b16 %v688, %v686
  %v1257 = vpack.c.b16 %v689, %v687
  %v1258 = vpack.c.b16 %v692, %v690
  %v1259 = vpack.c.b16 %v693, %v691
  %v1260 = vpack.c.b16 %v696, %v694
  %v1261 = vpack.c.b16 %v697, %v695
  %v1262 = vpack.c.b16 %v700, %v698
  %v1263 = vpack.c.b16 %v701, %v699
  %v1264 = vpack.c.b16 %v704, %v702
  %v1265 = vpack.c.b16 %v705, %v703
  %v1266 = vpack.c.b16 %v708, %v706
  %v1267 = vpack.c.b16 %v709, %v707
  %v1268 = vpack.c.b16 %v712, %v710
  %v1269 = vpack.c.b16 %v713, %v711
  %v1270 = vpack.c.b16 %v716, %v714
  %v1271 = vpack.c.b16 %v717, %v715
  %v1272 = vpack.c.b16 %v720, %v718
  %v1273 = vpack.c.b16 %v721, %v719
  %v1274 = vpack.c.b16 %v724, %v722
  %v1275 = vpack.c.b16 %v725, %v723
  %v1276 = vpack.c.b16 %v728, %v726
  %v1277 = vpack.c.b16 %v729, %v727
  %v1278 = vpack.c.b16 %v732, %v730
  %v1279 = vpack.c.b16 %v733, %v731
  %v1280 = vpack.c.b16 %v736, %v734
  %v1281 = vpack.c.b16 %v737, %v735
  %v1282 = vpack.c.b16 %v740, %v738
  %v1283 = vpack.c.b16 %v741, %v739
  %v1284 = vpack.c.b16 %v744, %v742
  %v1285 = vpack.c.b16 %v745, %v743
  %v1286 = vpack.c.b16 %v748, %v746
  %v1287 = vpack.c.b16 %v749, %v747
  %v1288 = vpack.c.b16 %v752, %v750
  %v1289 = vpack.c.b16 %v753, %v751
  %v1290 = vpack.c.b16 %v756, %v754
  %v1291 = vpack.c.b16 %v757, %v755
  %v1292 = vpack.c.b16 %v760, %v758
  %v1293 = vpack.c.b16 %v761, %v759
  %v1294 = vpack.c.b16 %v764, %v762
  %v1295 = vpack.c.b16 %v765, %v763
  %v1296 = vpack.c.b16 %v768, %v766
  %v1297 = vpack.c.b16 %v769, %v767
  %v1298 = vpack.c.b16 %v772, %v770
  %v1299 = vpack.c.b16 %v773, %v771
  %v1300 = vpack.c.b16 %v776, %v774
  %v1301 = vpack.c.b16 %v777, %v775
  %v1302 = vpack.c.b16 %v780, %v778
  %v1303 = vpack.c.b16 %v781, %v779
  %v1304 = vpack.c.b16 %v784, %v782
  %v1305 = vpack.c.b16 %v785, %v783
  %v1306 = vpack.c.b16 %v788, %v786
  %v1307 = vpack.c.b16 %v789, %v787
  %v1308 = vpack.c.b16 %v792, %v790
  %v1309 = vpack.c.b16 %v793, %v791
  %v1310 = vpack.c.b16 %v796, %v794
  %v1311 = vpack.c.b16 %v797, %v795
  %v1312 = vpack.c.b16 %v800, %v798
  %v1313 = vpack.c.b16 %v801, %v799
  %v1314 = vpack.c.b16 %v804, %v802
  %v1315 = vpack.c.b16 %v805, %v803
  %v1316 = vpack.c.b16 %v808, %v806
  %v1317 = vpack.c.b16 %v809, %v807
  %v1318 = vpack.c.b16 %v812, %v810
  %v1319 = vpack.c.b16 %v813, %v811
  %v1320 = vpack.c.b16 %v816, %v814
  %v1321 = vpack.c.b16 %v817, %v815
  %v1322 = vpack.c.b16 %v820, %v818
  %v1323 = vpack.c.b16 %v821, %v819
  %v1324 = vpack.c.b16 %v824, %v822
  %v1325 = vpack.c.b16 %v825, %v823
  %v1326 = vpack.c.b16 %v828, %v826
  %v1327 = vpack.c.b16 %v829, %v827
  %v1328 = vpack.c.b16 %v832, %v830
  %v1329 = vpack.c.b16 %v833, %v831
  %v1330 = vpack.c.b16 %v836, %v834
  %v1331 = vpack.c.b16 %v837, %v835
  %v1332 = vpack.c.b16 %v840, %v838
  %v1333 = vpack.c.b16 %v841, %v839
  %v1334 = vpack.c.b16 %v844, %v842
  %v1335 = vpack.c.b16 %v845, %v843
  %v1336 = vpack.c.b16 %v848, %v846
  %v1337 = vpack.c.b16 %v849, %v847
  %v1338 = vpack.c.b16 %v852, %v850
  %v1339 = vpack.c.b16 %v853, %v851
  %v1340 = vpack.c.b16 %v856, %v854
  %v1341 = vpack.c.b16 %v857, %v855
  %v1342 = vpack.c.b16 %v860, %v858
  %v1343 = vpack.c.b16 %v861, %v859
  %v1344 = vpack.c.b16 %v864, %v862
  %v1345 = vpack.c.b16 %v865, %v863
  %v1346 = vpack.c.b16 %v868, %v866
  %v1347 = vpack.c.b16 %v869, %v867
  %v1348 = vpack.c.b16 %v872, %v870
  %v1349 = vpack.c.b16 %v873, %v871
  %v1350 = vpack.c.b16 %v876, %v874
  %v1351 = vpack.c.b16 %v877, %v875
  %v1352 = vpack.c.b16 %v880, %v878
  %v1353 = vpack.c.b16 %v881, %v879
  %v1354 = vpack.c.b16 %v884, %v882
  %v1355 = vpack.c.b16 %v885, %v883
  %v1356 = vpack.c.b16 %v888, %v886
  %v1357 = vpack.c.b16 %v889, %v887
  %v1358 = vpack.c.b16 %v892, %v890
  %v1359 = vpack.c.b16 %v893, %v891
  %v1360 = vpack.c.b16 %v896, %v894
  %v1361 = vpack.c.b16 %v897, %v895
  %v1362 = vpack.c.b16 %v900, %v898
  %v1363 = vpack.c.b16 %v901, %v899
  %v1364 = vpack.c.b16 %v904, %v902
  %v1365 = vpack.c.b16 %v905, %v903
  %v1366 = vpack.c.b16 %v908, %v906
  %v1367 = vpack.c.b16 %v909, %v907
  %v1368 = vpack.c.b16 %v912, %v910
  %v1369 = vpack.c.b16 %v913, %v911
  %v1370 = vpack.c.b16 %v916, %v914
  %v1371 = vpack.c.b16 %v917, %v915
  %v1372 = vpack.c.b16 %v920, %v918
  %v1373 = vpack.c.b16 %v921, %v919
  %v1374 = vpack.c.b16 %v924, %v922
  %v1375 = vpack.c.b16 %v925, %v923
  %v1376 = vpack.c.b16 %v928, %v926
  %v1377 = vpack.c.b16 %v929, %v927
  %v1378 = vpack.c.b16 %v932, %v930
  %v1379 = vpack.c.b16 %v933, %v931
  %v1380 = vpack.c.b16 %v936, %v934
  %v1381 = vpack.c.b16 %v937, %v935
  %v1382 = vpack.c.b16 %v940, %v938
  %v1383 = vpack.c.b16 %v941, %v939
  %v1384 = vpack.c.b16 %v944, %v942
  %v1385 = vpack.c.b16 %v945, %v943
  %v1386 = vpack.c.b16 %v948, %v946
  %v1387 = vpack.c.b16 %v949, %v947
  %v1388 = vpack.c.b16 %v952, %v950
  %v1389 = vpack.c.b16 %v953, %v951
  %v1390 = vpack.c.b16 %v956, %v954
  %v1391 = vpack.c.b16 %v957, %v955
  %v1392 = vpack.c.b16 %v960, %v958
  %v1393 = vpack.c.b16 %v961, %v959
  %v1394 = vpack.c.b16 %v964, %v962
  %v1395 = vpack.c.b16 %v965, %v963
  %v1396 = vpack.c.b16 %v968, %v966
  %v1397 = vpack.c.b16 %v969, %v967
  %v1398 = vpack.c.b16 %v972, %v970
  %v1399 = vpack.c.b16 %v973, %v971
  %v1400 = vpack.c.b16 %v976, %v974
  %v1401 = vpack.c.b16 %v977, %v975
  %v1402 = vpack.c.b16 %v980, %v978
  %v1403 = vpack.c.b16 %v981, %v979
  %v1404 = vpack.c.b16 %v984, %v982
  %v1405 = vpack.c.b16 %v985, %v983
  %v1406 = vpack.c.b16 %v988, %v986
  %v1407 = vpack.c.b16 %v989, %v987
  %v1408 = vpack.c.b16 %v992, %v990
  %v1409 = vpack.c.b16 %v993, %v991
  %v1410 = vpack.c.b16 %v996, %v994
  %v1411 = vpack.c.b16 %v997, %v995
  %v1412 = vpack.c.b16 %v1000, %v998
  %v1413 = vpack.c.b16 %v1001, %v999
  %v1414 = vpack.c.b16 %v1004, %v1002
  %v1415 = vpack.c.b16 %v1005, %v1003
  %v1416 = vpack.c.b16 %v1008, %v1006
  %v1417 = vpack.c.b16 %v1009, %v1007
  %v1418 = vpack.c.b16 %v1012, %v1010
  %v1419 = vpack.c.b16 %v1013, %v1011
  %v1420 = vpack.c.b16 %v1016, %v1014
  %v1421 = vpack.c.b16 %v1017, %v1015
  %v1422 = vpack.c.b16 %v1020, %v1018
  %v1423 = vpack.c.b16 %v1021, %v1019
  %v1424 = vpack.c.b16 %v1024, %v1022
  %v1425 = vpack.c.b16 %v1025, %v1023
  %v1426 = vpack.c.b16 %v1028, %v1026
  %v1427 = vpack.c.b16 %v1029, %v1027
  %v1428 = vpack.c.b16 %v1032, %v1030
  %v1429 = vpack.c.b16 %v1033, %v1031
  %v1430 = vpack.c.b16 %v1036, %v1034
  %v1431 = vpack.c.b16 %v1037, %v1035
  %v1432 = vpack.c.b16 %v1040, %v1038
  %v1433 = vpack.c.b16 %v1041, %v1039
  %v1434 = vpack.c.b16 %v1044, %v1042
  %v1435 = vpack.c.b16 %v1045, %v1043
  %v1436 = vpack.c.b16 %v1048, %v1046
  %v1437 = vpack.c.b16 %v1049, %v1047
  %v1438 = vpack.c.b16 %v1052, %v1050
  %v1439 = vpack.c.b16 %v1053, %v1051
  %v1440 = vpack.c.b16 %v1056, %v1054
  %v1441 = vpack.c.b16 %v1057, %v1055
  %v1442 = vpack.c.b16 %v1060, %v1058
  %v1443 = vpack.c.b16 %v1061, %v1059
  %v1444 = vpack.c.b16 %v1064, %v1062
  %v1445 = vpack.c.b16 %v1065, %v1063
  %v1446 = vpack.c.b16 %v1068, %v1066
  %v1447 = vpack.c.b16 %v1069, %v1067
  %v1448 = vpack.c.b16 %v1072, %v1070
  %v1449 = vpack.c.b16 %v1073, %v1071
  %v1450 = vpack.c.b16 %v1076, %v1074
  %v1451 = vpack.c.b16 %v1077, %v1075
  %v1452 = vpack.c.b16 %v1080, %v1078
  %v1453 = vpack.c.b16 %v1081, %v1079
  %v1454 = vpack.c.b16 %v1084, %v1082
  %v1455 = vpack.c.b16 %v1085, %v1083
  %v1456 = vpack.c.b16 %v1088, %v1086
  %v1457 = vpack.c.b16 %v1089, %v1087
  %v1458 = vpack.c.b16 %v1092, %v1090
  %v1459 = vpack.c.b16 %v1093, %v1091
  %v1460 = vpack.c.b16 %v1096, %v1094
  %v1461 = vpack.c.b16 %v1097, %v1095
  %v1462 = vpack.c.b16 %v1100, %v1098
  %v1463 = vpack.c.b16 %v1101, %v1099
  %v1464 = vpack.c.b16 %v1104, %v1102
  %v1465 = vpack.c.b16 %v1105, %v1103
  %v1466 = vpack.c.b16 %v1108, %v1106
  %v1467 = vpack.c.b16 %v1109, %v1107
  %v1468 = vpack.c.b16 %v1112, %v1110
  %v1469 = vpack.c.b16 %v1113, %v1111
  %v1470 = vpack.c.b16 %v1116, %v1114
  %v1471 = vpack.c.b16 %v1117, %v1115
  %v1472 = vpack.c.b16 %v1120, %v1118
  %v1473 = vpack.c.b16 %v1121, %v1119
  %v1474 = vpack.c.b16 %v1124, %v1122
  %v1475 = vpack.c.b16 %v1125, %v1123
  %v1476 = vpack.c.b16 %v1128, %v1126
  %v1477 = vpack.c.b16 %v1129, %v1127
  %v1478 = vpack.c.b16 %v1132, %v1130
  %v1479 = vpack.c.b16 %v1133, %v1131
  %v1480 = vpack.c.b16 %v1136, %v1134
  %v1481 = vpack.c.b16 %v1137, %v1135
  %v1482 = vpack.c.b16 %v1140, %v1138
  %v1483 = vpack.c.b16 %v1141, %v1139
  %v1484 = vpack.c.b16 %v1144, %v1142
  %v1485 = vpack.c.b16 %v1145, %v1143
  %v1486 = vpack.c.b16 %v1148, %v1146
  %v1487 = vpack.c.b16 %v1149, %v1147
  %v1488 = vpack.c.b16 %v1152, %v1150
  %v1489 = vpack.c.b16 %v1153, %v1151
  %v1490 = vpack.c.b16 %v1156, %v1154
  %v1491 = vpack.c.b16 %v1157, %v1155
  %v1492 = vpack.c.b16 %v1160, %v1158
  %v1493 = vpack.c.b16 %v1161, %v1159
  %v1494 = vpack.c.b16 %v1164, %v1162
  %v1495 = vpack.c.b16 %v1165, %v1163
  %v1496 = vpack.c.b16 %v1168, %v1166
  %v1497 = vpack.c.b16 %v1169, %v1167
  %v1498 = vpack.c.b16 %v1172, %v1170
  %v1499 = vpack.c.b16 %v1173, %v1171
  %v1500 = vpack.c.b16 %v1176, %v1174
  %v1501 = vpack.c.b16 %v1177, %v1175
  %v1502 = vpack.c.b16 %v1180, %v1178
  %v1503 = vpack.c.b16 %v1181, %v1179
  %v1504 = vpack.c.b16 %v1184, %v1182
  %v1505 = vpack.c.b16 %v1185, %v1183
  %v1506 = vpack.c.b16 %v1188, %v1186
  %v1507 = vpack.c.b16 %v1189, %v1187
  %v1508 = vpack.c.b16 %v1192, %v1190
  %v1509 = vpack.c.b16 %v1193, %v1191
  %v1510 = vpack.c.b16 %v1196, %v1194
  %v1511 = vpack.c.b16 %v1197, %v1195
  %v1512 = vpack.c.b16 %v1200, %v1198
  %v1513 = vpack.c.b16 %v1201, %v1199
  %v1514 = vpack.c.b16 %v1204, %v1202
  %v1515 = vpack.c.b16 %v1205, %v1203
  %v1516 = vpack.c.b16 %v1208, %v1206
  %v1517 = vpack.c.b16 %v1209, %v1207
  %v1518 = vpack.c.b16 %v1212, %v1210
  %v1519 = vpack.c.b16 %v1213, %v1211
  %v1520 = vpack.c.b16 %v1216, %v1214
  %v1521 = vpack.c.b16 %v1217, %v1215
  %v1522 = vpack.c.b16 %v1220, %v1218
  %v1523 = vpack.c.b16 %v1221, %v1219
  %v1524 = vpack.c.b16 %v1224, %v1222
  %v1525 = vpack.c.b16 %v1225, %v1223
  %v1526 = vpack.c.b16 %v1228, %v1226
  %v1527 = vpack.c.b16 %v1229, %v1227
  %v1528 = vpack.c.b16 %v1232, %v1230
  %v1529 = vpack.c.b16 %v1233, %v1231
  %v1530 = vpack.c.b16 %v1236, %v1234
  %v1531 = vpack.c.b16 %v1237, %v1235
  %v1532 = vpack.c.b16 %v1240, %v1238
  %v1533 = vpack.c.b16 %v1241, %v1239
  %v1534 = vpack.c.b16 %v1244, %v1242
  %v1535 = vpack.c.b16 %v1245, %v1243
  %v1536 = vpack.c.b16 %v1248, %v1246
  %v1537 = vpack.c.b16 %v1249, %v1247
  %1826 = vmatprep.subr.bf16.mxu0 %v1251
  %1827 = vmatpush1.bf16.msra.mxu0 %v1250
  %1828 = vmatprep.subr.bf16.mxu0 %v1253
  %1829 = vmatpush1.bf16.msra.mxu0 %v1252
  %1830 = vmatprep.subr.bf16.mxu0 %v1255
  %1831 = vmatpush1.bf16.msra.mxu0 %v1254
  %1832 = vmatprep.subr.bf16.mxu0 %v1257
  %1833 = vmatpush1.bf16.msra.mxu0 %v1256
  %1834 = vmatprep.subr.bf16.mxu0 %v1259
  %1835 = vmatpush1.bf16.msra.mxu0 %v1258
  %1836 = vmatprep.subr.bf16.mxu0 %v1261
  %1837 = vmatpush1.bf16.msra.mxu0 %v1260
  %1838 = vmatprep.subr.bf16.mxu0 %v1263
  %1839 = vmatpush1.bf16.msra.mxu0 %v1262
  %1840 = vmatprep.subr.bf16.mxu0 %v1265
  %1841 = vmatpush1.bf16.msra.mxu0 %v1264
  %1842 = vmatprep.subr.bf16.mxu0 %v1267
  %1843 = vmatpush1.bf16.msra.mxu0 %v1266
  %1844 = vmatprep.subr.bf16.mxu0 %v1269
  %1845 = vmatpush1.bf16.msra.mxu0 %v1268
  %1846 = vmatprep.subr.bf16.mxu0 %v1271
  %1847 = vmatpush1.bf16.msra.mxu0 %v1270
  %1848 = vmatprep.subr.bf16.mxu0 %v1273
  %1849 = vmatpush1.bf16.msra.mxu0 %v1272
  %1850 = vmatprep.subr.bf16.mxu0 %v1275
  %1851 = vmatpush1.bf16.msra.mxu0 %v1274
  %1852 = vmatprep.subr.bf16.mxu0 %v1277
  %1853 = vmatpush1.bf16.msra.mxu0 %v1276
  %1854 = vmatprep.subr.bf16.mxu0 %v1279
  %1855 = vmatpush1.bf16.msra.mxu0 %v1278
  %1856 = vmatprep.subr.bf16.mxu0 %v1281
  %1857 = vmatpush1.bf16.msra.mxu0 %v1280
  %1858 = vmatprep.mubr.bf16.mxu0 %v351
  %1859 = vmatmul.mubr.bf16.gmra.mrb[0].mxu0 %v350
  %v1860 = vpop.f32.mrb[0].mxu0
  %v1861 = vadd.f32 %v316, %v1860
  %v1862 = vpop.f32.mrb[0].mxu0
  %v1863 = vadd.f32 %v320, %v1862
  %v1864 = vpop.f32.mrb[0].mxu0
  %v1865 = vpop.f32.mrb[0].mxu0
  %1866 = vdwg.mxu0
  %1867 = vmatprep.subr.bf16.mxu0 %v1283
  %1868 = vmatpush1.bf16.msra.mxu0 %v1282
  %1869 = vmatprep.subr.bf16.mxu0 %v1285
  %1870 = vmatpush1.bf16.msra.mxu0 %v1284
  %1871 = vmatprep.subr.bf16.mxu0 %v1287
  %1872 = vmatpush1.bf16.msra.mxu0 %v1286
  %1873 = vmatprep.subr.bf16.mxu0 %v1289
  %1874 = vmatpush1.bf16.msra.mxu0 %v1288
  %1875 = vmatprep.subr.bf16.mxu0 %v1291
  %1876 = vmatpush1.bf16.msra.mxu0 %v1290
  %1877 = vmatprep.subr.bf16.mxu0 %v1293
  %1878 = vmatpush1.bf16.msra.mxu0 %v1292
  %1879 = vmatprep.subr.bf16.mxu0 %v1295
  %1880 = vmatpush1.bf16.msra.mxu0 %v1294
  %1881 = vmatprep.subr.bf16.mxu0 %v1297
  %1882 = vmatpush1.bf16.msra.mxu0 %v1296
  %1883 = vmatprep.subr.bf16.mxu0 %v1299
  %1884 = vmatpush1.bf16.msra.mxu0 %v1298
  %1885 = vmatprep.subr.bf16.mxu0 %v1301
  %1886 = vmatpush1.bf16.msra.mxu0 %v1300
  %1887 = vmatprep.subr.bf16.mxu0 %v1303
  %1888 = vmatpush1.bf16.msra.mxu0 %v1302
  %1889 = vmatprep.subr.bf16.mxu0 %v1305
  %1890 = vmatpush1.bf16.msra.mxu0 %v1304
  %1891 = vmatprep.subr.bf16.mxu0 %v1307
  %1892 = vmatpush1.bf16.msra.mxu0 %v1306
  %1893 = vmatprep.subr.bf16.mxu0 %v1309
  %1894 = vmatpush1.bf16.msra.mxu0 %v1308
  %1895 = vmatprep.subr.bf16.mxu0 %v1311
  %1896 = vmatpush1.bf16.msra.mxu0 %v1310
  %1897 = vmatprep.subr.bf16.mxu0 %v1313
  %1898 = vmatpush1.bf16.msra.mxu0 %v1312
  %1899 = vmatprep.mubr.bf16.mxu0 %v353
  %1900 = vmatmul.mubr.bf16.gmra.mrb[0].mxu0 %v352
  %v1901 = vpop.f32.mrb[0].mxu0
  %v1902 = vadd.f32 %v1861, %v1901
  %v1903 = vpop.f32.mrb[0].mxu0
  %v1904 = vadd.f32 %v1863, %v1903
  %v1905 = vpop.f32.mrb[0].mxu0
  %v1906 = vpop.f32.mrb[0].mxu0
  %1907 = vdwg.mxu0
  %1908 = vmatprep.subr.bf16.mxu0 %v1315
  %1909 = vmatpush1.bf16.msra.mxu0 %v1314
  %1910 = vmatprep.subr.bf16.mxu0 %v1317
  %1911 = vmatpush1.bf16.msra.mxu0 %v1316
  %1912 = vmatprep.subr.bf16.mxu0 %v1319
  %1913 = vmatpush1.bf16.msra.mxu0 %v1318
  %1914 = vmatprep.subr.bf16.mxu0 %v1321
  %1915 = vmatpush1.bf16.msra.mxu0 %v1320
  %1916 = vmatprep.subr.bf16.mxu0 %v1323
  %1917 = vmatpush1.bf16.msra.mxu0 %v1322
  %1918 = vmatprep.subr.bf16.mxu0 %v1325
  %1919 = vmatpush1.bf16.msra.mxu0 %v1324
  %1920 = vmatprep.subr.bf16.mxu0 %v1327
  %1921 = vmatpush1.bf16.msra.mxu0 %v1326
  %1922 = vmatprep.subr.bf16.mxu0 %v1329
  %1923 = vmatpush1.bf16.msra.mxu0 %v1328
  %1924 = vmatprep.subr.bf16.mxu0 %v1331
  %1925 = vmatpush1.bf16.msra.mxu0 %v1330
  %1926 = vmatprep.subr.bf16.mxu0 %v1333
  %1927 = vmatpush1.bf16.msra.mxu0 %v1332
  %1928 = vmatprep.subr.bf16.mxu0 %v1335
  %1929 = vmatpush1.bf16.msra.mxu0 %v1334
  %1930 = vmatprep.subr.bf16.mxu0 %v1337
  %1931 = vmatpush1.bf16.msra.mxu0 %v1336
  %1932 = vmatprep.subr.bf16.mxu0 %v1339
  %1933 = vmatpush1.bf16.msra.mxu0 %v1338
  %1934 = vmatprep.subr.bf16.mxu0 %v1341
  %1935 = vmatpush1.bf16.msra.mxu0 %v1340
  %1936 = vmatprep.subr.bf16.mxu0 %v1343
  %1937 = vmatpush1.bf16.msra.mxu0 %v1342
  %1938 = vmatprep.subr.bf16.mxu0 %v1345
  %1939 = vmatpush1.bf16.msra.mxu0 %v1344
  %1940 = vmatprep.mubr.bf16.mxu0 %v355
  %1941 = vmatmul.mubr.bf16.gmra.mrb[0].mxu0 %v354
  %v1942 = vpop.f32.mrb[0].mxu0
  %v1943 = vadd.f32 %v1902, %v1942
  %v1944 = vpop.f32.mrb[0].mxu0
  %v1945 = vadd.f32 %v1904, %v1944
  %v1946 = vpop.f32.mrb[0].mxu0
  %v1947 = vpop.f32.mrb[0].mxu0
  %1948 = vdwg.mxu0
  %1949 = vmatprep.subr.bf16.mxu0 %v1347
  %1950 = vmatpush1.bf16.msra.mxu0 %v1346
  %1951 = vmatprep.subr.bf16.mxu0 %v1349
  %1952 = vmatpush1.bf16.msra.mxu0 %v1348
  %1953 = vmatprep.subr.bf16.mxu0 %v1351
  %1954 = vmatpush1.bf16.msra.mxu0 %v1350
  %1955 = vmatprep.subr.bf16.mxu0 %v1353
  %1956 = vmatpush1.bf16.msra.mxu0 %v1352
  %1957 = vmatprep.subr.bf16.mxu0 %v1355
  %1958 = vmatpush1.bf16.msra.mxu0 %v1354
  %1959 = vmatprep.subr.bf16.mxu0 %v1357
  %1960 = vmatpush1.bf16.msra.mxu0 %v1356
  %1961 = vmatprep.subr.bf16.mxu0 %v1359
  %1962 = vmatpush1.bf16.msra.mxu0 %v1358
  %1963 = vmatprep.subr.bf16.mxu0 %v1361
  %1964 = vmatpush1.bf16.msra.mxu0 %v1360
  %1965 = vmatprep.subr.bf16.mxu0 %v1363
  %1966 = vmatpush1.bf16.msra.mxu0 %v1362
  %1967 = vmatprep.subr.bf16.mxu0 %v1365
  %1968 = vmatpush1.bf16.msra.mxu0 %v1364
  %1969 = vmatprep.subr.bf16.mxu0 %v1367
  %1970 = vmatpush1.bf16.msra.mxu0 %v1366
  %1971 = vmatprep.subr.bf16.mxu0 %v1369
  %1972 = vmatpush1.bf16.msra.mxu0 %v1368
  %1973 = vmatprep.subr.bf16.mxu0 %v1371
  %1974 = vmatpush1.bf16.msra.mxu0 %v1370
  %1975 = vmatprep.subr.bf16.mxu0 %v1373
  %1976 = vmatpush1.bf16.msra.mxu0 %v1372
  %1977 = vmatprep.subr.bf16.mxu0 %v1375
  %1978 = vmatpush1.bf16.msra.mxu0 %v1374
  %1979 = vmatprep.subr.bf16.mxu0 %v1377
  %1980 = vmatpush1.bf16.msra.mxu0 %v1376
  %1981 = vmatprep.mubr.bf16.mxu0 %v357
  %1982 = vmatmul.mubr.bf16.gmra.mrb[0].mxu0 %v356
  %v1983 = vpop.f32.mrb[0].mxu0
  %v1984 = vadd.f32 %v1943, %v1983
  %v1985 = vpop.f32.mrb[0].mxu0
  %v1986 = vadd.f32 %v1945, %v1985
  %v1987 = vpop.f32.mrb[0].mxu0
  %v1988 = vpop.f32.mrb[0].mxu0
  %1989 = vdwg.mxu0
  %1990 = vmatprep.subr.bf16.mxu0 %v1379
  %1991 = vmatpush1.bf16.msra.mxu0 %v1378
  %1992 = vmatprep.subr.bf16.mxu0 %v1381
  %1993 = vmatpush1.bf16.msra.mxu0 %v1380
  %1994 = vmatprep.subr.bf16.mxu0 %v1383
  %1995 = vmatpush1.bf16.msra.mxu0 %v1382
  %1996 = vmatprep.subr.bf16.mxu0 %v1385
  %1997 = vmatpush1.bf16.msra.mxu0 %v1384
  %1998 = vmatprep.subr.bf16.mxu0 %v1387
  %1999 = vmatpush1.bf16.msra.mxu0 %v1386
  %2000 = vmatprep.subr.bf16.mxu0 %v1389
  %2001 = vmatpush1.bf16.msra.mxu0 %v1388
  %2002 = vmatprep.subr.bf16.mxu0 %v1391
  %2003 = vmatpush1.bf16.msra.mxu0 %v1390
  %2004 = vmatprep.subr.bf16.mxu0 %v1393
  %2005 = vmatpush1.bf16.msra.mxu0 %v1392
  %2006 = vmatprep.subr.bf16.mxu0 %v1395
  %2007 = vmatpush1.bf16.msra.mxu0 %v1394
  %2008 = vmatprep.subr.bf16.mxu0 %v1397
  %2009 = vmatpush1.bf16.msra.mxu0 %v1396
  %2010 = vmatprep.subr.bf16.mxu0 %v1399
  %2011 = vmatpush1.bf16.msra.mxu0 %v1398
  %2012 = vmatprep.subr.bf16.mxu0 %v1401
  %2013 = vmatpush1.bf16.msra.mxu0 %v1400
  %2014 = vmatprep.subr.bf16.mxu0 %v1403
  %2015 = vmatpush1.bf16.msra.mxu0 %v1402
  %2016 = vmatprep.subr.bf16.mxu0 %v1405
  %2017 = vmatpush1.bf16.msra.mxu0 %v1404
  %2018 = vmatprep.subr.bf16.mxu0 %v1407
  %2019 = vmatpush1.bf16.msra.mxu0 %v1406
  %2020 = vmatprep.subr.bf16.mxu0 %v1409
  %2021 = vmatpush1.bf16.msra.mxu0 %v1408
  %2022 = vmatprep.mubr.bf16.mxu0 %v359
  %2023 = vmatmul.mubr.bf16.gmra.mrb[0].mxu0 %v358
  %v2024 = vpop.f32.mrb[0].mxu0
  %v2025 = vadd.f32 %v1984, %v2024
  %v2026 = vpop.f32.mrb[0].mxu0
  %v2027 = vadd.f32 %v1986, %v2026
  %v2028 = vpop.f32.mrb[0].mxu0
  %v2029 = vpop.f32.mrb[0].mxu0
  %2030 = vdwg.mxu0
  %2031 = vmatprep.subr.bf16.mxu0 %v1411
  %2032 = vmatpush1.bf16.msra.mxu0 %v1410
  %2033 = vmatprep.subr.bf16.mxu0 %v1413
  %2034 = vmatpush1.bf16.msra.mxu0 %v1412
  %2035 = vmatprep.subr.bf16.mxu0 %v1415
  %2036 = vmatpush1.bf16.msra.mxu0 %v1414
  %2037 = vmatprep.subr.bf16.mxu0 %v1417
  %2038 = vmatpush1.bf16.msra.mxu0 %v1416
  %2039 = vmatprep.subr.bf16.mxu0 %v1419
  %2040 = vmatpush1.bf16.msra.mxu0 %v1418
  %2041 = vmatprep.subr.bf16.mxu0 %v1421
  %2042 = vmatpush1.bf16.msra.mxu0 %v1420
  %2043 = vmatprep.subr.bf16.mxu0 %v1423
  %2044 = vmatpush1.bf16.msra.mxu0 %v1422
  %2045 = vmatprep.subr.bf16.mxu0 %v1425
  %2046 = vmatpush1.bf16.msra.mxu0 %v1424
  %2047 = vmatprep.subr.bf16.mxu0 %v1427
  %2048 = vmatpush1.bf16.msra.mxu0 %v1426
  %2049 = vmatprep.subr.bf16.mxu0 %v1429
  %2050 = vmatpush1.bf16.msra.mxu0 %v1428
  %2051 = vmatprep.subr.bf16.mxu0 %v1431
  %2052 = vmatpush1.bf16.msra.mxu0 %v1430
  %2053 = vmatprep.subr.bf16.mxu0 %v1433
  %2054 = vmatpush1.bf16.msra.mxu0 %v1432
  %2055 = vmatprep.subr.bf16.mxu0 %v1435
  %2056 = vmatpush1.bf16.msra.mxu0 %v1434
  %2057 = vmatprep.subr.bf16.mxu0 %v1437
  %2058 = vmatpush1.bf16.msra.mxu0 %v1436
  %2059 = vmatprep.subr.bf16.mxu0 %v1439
  %2060 = vmatpush1.bf16.msra.mxu0 %v1438
  %2061 = vmatprep.subr.bf16.mxu0 %v1441
  %2062 = vmatpush1.bf16.msra.mxu0 %v1440
  %2063 = vmatprep.mubr.bf16.mxu0 %v361
  %2064 = vmatmul.mubr.bf16.gmra.mrb[0].mxu0 %v360
  %v2065 = vpop.f32.mrb[0].mxu0
  %v2066 = vadd.f32 %v2025, %v2065
  %v2067 = vpop.f32.mrb[0].mxu0
  %v2068 = vadd.f32 %v2027, %v2067
  %v2069 = vpop.f32.mrb[0].mxu0
  %v2070 = vpop.f32.mrb[0].mxu0
  %2071 = vdwg.mxu0
  %2072 = vmatprep.subr.bf16.mxu0 %v1443
  %2073 = vmatpush1.bf16.msra.mxu0 %v1442
  %2074 = vmatprep.subr.bf16.mxu0 %v1445
  %2075 = vmatpush1.bf16.msra.mxu0 %v1444
  %2076 = vmatprep.subr.bf16.mxu0 %v1447
  %2077 = vmatpush1.bf16.msra.mxu0 %v1446
  %2078 = vmatprep.subr.bf16.mxu0 %v1449
  %2079 = vmatpush1.bf16.msra.mxu0 %v1448
  %2080 = vmatprep.subr.bf16.mxu0 %v1451
  %2081 = vmatpush1.bf16.msra.mxu0 %v1450
  %2082 = vmatprep.subr.bf16.mxu0 %v1453
  %2083 = vmatpush1.bf16.msra.mxu0 %v1452
  %2084 = vmatprep.subr.bf16.mxu0 %v1455
  %2085 = vmatpush1.bf16.msra.mxu0 %v1454
  %2086 = vmatprep.subr.bf16.mxu0 %v1457
  %2087 = vmatpush1.bf16.msra.mxu0 %v1456
  %2088 = vmatprep.subr.bf16.mxu0 %v1459
  %2089 = vmatpush1.bf16.msra.mxu0 %v1458
  %2090 = vmatprep.subr.bf16.mxu0 %v1461
  %2091 = vmatpush1.bf16.msra.mxu0 %v1460
  %2092 = vmatprep.subr.bf16.mxu0 %v1463
  %2093 = vmatpush1.bf16.msra.mxu0 %v1462
  %2094 = vmatprep.subr.bf16.mxu0 %v1465
  %2095 = vmatpush1.bf16.msra.mxu0 %v1464
  %2096 = vmatprep.subr.bf16.mxu0 %v1467
  %2097 = vmatpush1.bf16.msra.mxu0 %v1466
  %2098 = vmatprep.subr.bf16.mxu0 %v1469
  %2099 = vmatpush1.bf16.msra.mxu0 %v1468
  %2100 = vmatprep.subr.bf16.mxu0 %v1471
  %2101 = vmatpush1.bf16.msra.mxu0 %v1470
  %2102 = vmatprep.subr.bf16.mxu0 %v1473
  %2103 = vmatpush1.bf16.msra.mxu0 %v1472
  %2104 = vmatprep.mubr.bf16.mxu0 %v363
  %2105 = vmatmul.mubr.bf16.gmra.mrb[0].mxu0 %v362
  %v2106 = vpop.f32.mrb[0].mxu0
  %v2107 = vadd.f32 %v2066, %v2106
  %v2108 = vpop.f32.mrb[0].mxu0
  %v2109 = vadd.f32 %v2068, %v2108
  %v2110 = vpop.f32.mrb[0].mxu0
  %v2111 = vpop.f32.mrb[0].mxu0
  %2112 = vdwg.mxu0
  %2113 = vmatprep.subr.bf16.mxu0 %v1475
  %2114 = vmatpush1.bf16.msra.mxu0 %v1474
  %2115 = vmatprep.subr.bf16.mxu0 %v1477
  %2116 = vmatpush1.bf16.msra.mxu0 %v1476
  %2117 = vmatprep.subr.bf16.mxu0 %v1479
  %2118 = vmatpush1.bf16.msra.mxu0 %v1478
  %2119 = vmatprep.subr.bf16.mxu0 %v1481
  %2120 = vmatpush1.bf16.msra.mxu0 %v1480
  %2121 = vmatprep.subr.bf16.mxu0 %v1483
  %2122 = vmatpush1.bf16.msra.mxu0 %v1482
  %2123 = vmatprep.subr.bf16.mxu0 %v1485
  %2124 = vmatpush1.bf16.msra.mxu0 %v1484
  %2125 = vmatprep.subr.bf16.mxu0 %v1487
  %2126 = vmatpush1.bf16.msra.mxu0 %v1486
  %2127 = vmatprep.subr.bf16.mxu0 %v1489
  %2128 = vmatpush1.bf16.msra.mxu0 %v1488
  %2129 = vmatprep.subr.bf16.mxu0 %v1491
  %2130 = vmatpush1.bf16.msra.mxu0 %v1490
  %2131 = vmatprep.subr.bf16.mxu0 %v1493
  %2132 = vmatpush1.bf16.msra.mxu0 %v1492
  %2133 = vmatprep.subr.bf16.mxu0 %v1495
  %2134 = vmatpush1.bf16.msra.mxu0 %v1494
  %2135 = vmatprep.subr.bf16.mxu0 %v1497
  %2136 = vmatpush1.bf16.msra.mxu0 %v1496
  %2137 = vmatprep.subr.bf16.mxu0 %v1499
  %2138 = vmatpush1.bf16.msra.mxu0 %v1498
  %2139 = vmatprep.subr.bf16.mxu0 %v1501
  %2140 = vmatpush1.bf16.msra.mxu0 %v1500
  %2141 = vmatprep.subr.bf16.mxu0 %v1503
  %2142 = vmatpush1.bf16.msra.mxu0 %v1502
  %2143 = vmatprep.subr.bf16.mxu0 %v1505
  %2144 = vmatpush1.bf16.msra.mxu0 %v1504
  %2145 = vmatprep.mubr.bf16.mxu0 %v365
  %2146 = vmatmul.mubr.bf16.gmra.mrb[0].mxu0 %v364
  %v2147 = vpop.f32.mrb[0].mxu0
  %v2148 = vadd.f32 %v2107, %v2147
  %v2149 = vpop.f32.mrb[0].mxu0
  %v2150 = vadd.f32 %v2109, %v2149
  %v2151 = vpop.f32.mrb[0].mxu0
  %v2152 = vpop.f32.mrb[0].mxu0
  %2153 = vdwg.mxu0
  %2154 = vmatprep.subr.bf16.mxu0 %v1507
  %2155 = vmatpush1.bf16.msra.mxu0 %v1506
  %2156 = vmatprep.subr.bf16.mxu0 %v1509
  %2157 = vmatpush1.bf16.msra.mxu0 %v1508
  %2158 = vmatprep.subr.bf16.mxu0 %v1511
  %2159 = vmatpush1.bf16.msra.mxu0 %v1510
  %2160 = vmatprep.subr.bf16.mxu0 %v1513
  %2161 = vmatpush1.bf16.msra.mxu0 %v1512
  %2162 = vmatprep.subr.bf16.mxu0 %v1515
  %2163 = vmatpush1.bf16.msra.mxu0 %v1514
  %2164 = vmatprep.subr.bf16.mxu0 %v1517
  %2165 = vmatpush1.bf16.msra.mxu0 %v1516
  %2166 = vmatprep.subr.bf16.mxu0 %v1519
  %2167 = vmatpush1.bf16.msra.mxu0 %v1518
  %2168 = vmatprep.subr.bf16.mxu0 %v1521
  %2169 = vmatpush1.bf16.msra.mxu0 %v1520
  %2170 = vmatprep.subr.bf16.mxu0 %v1523
  %2171 = vmatpush1.bf16.msra.mxu0 %v1522
  %2172 = vmatprep.subr.bf16.mxu0 %v1525
  %2173 = vmatpush1.bf16.msra.mxu0 %v1524
  %2174 = vmatprep.subr.bf16.mxu0 %v1527
  %2175 = vmatpush1.bf16.msra.mxu0 %v1526
  %2176 = vmatprep.subr.bf16.mxu0 %v1529
  %2177 = vmatpush1.bf16.msra.mxu0 %v1528
  %2178 = vmatprep.subr.bf16.mxu0 %v1531
  %2179 = vmatpush1.bf16.msra.mxu0 %v1530
  %2180 = vmatprep.subr.bf16.mxu0 %v1533
  %2181 = vmatpush1.bf16.msra.mxu0 %v1532
  %2182 = vmatprep.subr.bf16.mxu0 %v1535
  %2183 = vmatpush1.bf16.msra.mxu0 %v1534
  %2184 = vmatprep.subr.bf16.mxu0 %v1537
  %2185 = vmatpush1.bf16.msra.mxu0 %v1536
  %2186 = vmatprep.mubr.bf16.mxu0 %v367
  %2187 = vmatmul.mubr.bf16.gmra.mrb[0].mxu0 %v366
  %v2188 = vpop.f32.mrb[0].mxu0
  %v2189 = vadd.f32 %v2148, %v2188
  %v2190 = vpop.f32.mrb[0].mxu0
  %v2191 = vadd.f32 %v2150, %v2190
  %v2192 = vpop.f32.mrb[0].mxu0
  %v2193 = vpop.f32.mrb[0].mxu0
  %2194 = vdwg.mxu0
  %v2195 = vpack.c.bf16 %v2189, %v2189
  %v2196 = vpack.c.bf16 %v2191, %v2191
  %v2199 = vunpack.c.l.b16 %v2195
  %v2200 = vunpack.c.l.b16 %v2196
  %v2201 = vpack.c.b16 %v2200, %v2199
  %2203 = vst [vmem:[%s3] sm:$0xff] %v2201
  // Predicated region
  $region14: #{yolo_forward.16} parent=0 // pred_check
    _
  $region15: #{yolo_forward.16} parent=0 // pred_check_branch
    %2205 = sbr.rel (0) target = $region17
  $region16: #{yolo_forward.16} parent=0 // pred_region
    _
  $region17: #{yolo_forward.16} parent=0 // pred_fallthru
    _
  // Predicated region
  $region18: #{yolo_forward.16} parent=0 // pred_check
    _
  $region19: #{yolo_forward.16} parent=0 // pred_check_branch
    %2207 = sbr.rel (0) target = $region21
  $region20: #{yolo_forward.16} parent=0 // pred_region
    _
  $region21: #{yolo_forward.16} parent=0 // pred_fallthru
    _

</llo_original>
